<compile_context>
chip_gen: v5e
topology: v5e:2x2
jax: 0.10.0
libtpu: 0.0.40
codegen_flags: <defaults>
</compile_context>

<pallas_src>
import functools

import jax
import jax.numpy as jnp
from jax.experimental import pallas as pl
from jax.experimental.pallas import tpu as pltpu


def _round_up(x, m):
    return ((x + m - 1) // m) * m


# ------------------------------ fused kernel --------------------------------

def crnn_fused_kernel(ids_ref, w32_ref, w96_ref, o_ref, *,
                      B, S, Vp, D, F, fs1, fs2):
    SB = S * B
    # static, 8-aligned row offsets inside the packed width-max(D,F) slab
    r_emb = 0
    r_w1 = r_emb + Vp
    r_w2 = r_w1 + fs1 * D
    r_misc = r_w2 + fs2 * D

    # --- embedding lookup as one-hot @ table (MXU; no gather op) -------------
    ids = ids_ref[...]                                          # (S*B, 1) int32, rows time-major (t*B+b)
    vocab_iota = jax.lax.broadcasted_iota(jnp.int32, (SB, Vp), 1)
    onehot = jnp.where(ids == vocab_iota,
                       jnp.float32(1.0), jnp.float32(0.0))      # (S*B, Vp); pad cols never match
    emb = jnp.dot(onehot, w32_ref[r_emb:r_emb + Vp, :D],
                  preferred_element_type=jnp.float32)           # (S*B, D) time-major

    misc = w32_ref[r_misc:r_misc + 8, :]                        # conv biases / b_hn / fc row / fc bias

    # --- convs as im2col: one full-K matmul each ------------------------------
    def conv(r_w, bias_row, fs):
        L = S - fs + 1
        xcol = jnp.concatenate(
            [emb[dt * B:(dt + L) * B, :] for dt in range(fs)], axis=1)     # (L*B, fs*D), 8-aligned slices
        y = jnp.dot(xcol, w32_ref[r_w:r_w + fs * D, :F],
                    preferred_element_type=jnp.float32) + misc[bias_row:bias_row + 1, :F]
        return jnp.maximum(y, 0.0)                                          # (L*B, F) time-major

    L1 = S - fs1 + 1
    L2 = S - fs2 + 1
    c1 = conv(r_w1, 0, fs1)                    # first L1 GRU timesteps
    c2 = conv(r_w2, 1, fs2)                    # next  L2 GRU timesteps
    # NOTE: no concat([c1, c2]) — the recurrence reads gi1 / gi2 directly (no full-activation copy).

    # --- GRU: gate-fused weights; only h @ Whh_all stays on the serial path ---
    wih_all = w96_ref[0:F, :]                  # (F, 3F), gate order (r, z, n)
    whh_all = w96_ref[F:2 * F, :]              # (F, 3F)
    gi_bias = w96_ref[2 * F:2 * F + 1, :]      # (1, 3F) = [b_ir+b_hr, b_iz+b_hz, b_in]

    gi1 = jnp.dot(c1, wih_all, preferred_element_type=jnp.float32) + gi_bias   # (L1*B, 3F)
    gi2 = jnp.dot(c2, wih_all, preferred_element_type=jnp.float32) + gi_bias   # (L2*B, 3F)
    gi1_r, gi1_z, gi1_n = gi1[:, :F], gi1[:, F:2 * F], gi1[:, 2 * F:]
    gi2_r, gi2_z, gi2_n = gi2[:, :F], gi2[:, F:2 * F], gi2[:, 2 * F:]

    bhh_n = jnp.broadcast_to(misc[2:3, :F], (B, F))    # hoisted once (JAX does not CSE broadcasts)

    T = L1 + L2
    h = jnp.zeros((B, F), jnp.float32)
    for t in range(T):                         # fully unrolled static recurrence
        if t < L1:
            lo = t * B
            gr, gz, gn = gi1_r[lo:lo + B, :], gi1_z[lo:lo + B, :], gi1_n[lo:lo + B, :]
        else:
            lo = (t - L1) * B
            gr, gz, gn = gi2_r[lo:lo + B, :], gi2_z[lo:lo + B, :], gi2_n[lo:lo + B, :]
        gh = jnp.dot(h, whh_all, preferred_element_type=jnp.float32)   # ONE MXU issue per step
        r = jax.nn.sigmoid(gr + gh[:, :F])
        z = jax.nn.sigmoid(gz + gh[:, F:2 * F])
        n = jnp.tanh(gn + r * (gh[:, 2 * F:] + bhh_n))
        h = (1.0 - z) * n + z * h

    # --- FC + sigmoid as a lane reduce (XLU) instead of an N=1 MXU matmul -----
    fcw = misc[3:4, :F]                        # (1, F)
    fcb = misc[4:5, 0:1]                       # (1, 1)
    logits = jnp.sum(h * fcw, axis=-1, keepdims=True) + fcb
    o_ref[...] = jax.nn.sigmoid(logits)


# --------------------------------- wrapper ----------------------------------

@jax.jit
def crnn_forward(params, x_ids, lengths):
    """x_ids: (S, B) int32 token ids. `lengths` is unused by the PyTorch forward too."""
    del lengths
    S, B = x_ids.shape
    V, D = params["embedding"].shape
    fs1, _, F = params["conv1_w"].shape
    fs2 = params["conv2_w"].shape[0]

    Bp = _round_up(B, 8)                       # pad batch to a full sublane group
    Vp = _round_up(V, 8)
    Wm = max(D, F)

    # ---- token ids, time-major, batch padded (pad token 0 is in-range) -------
    ids_pad = jnp.zeros((S, Bp), jnp.int32).at[:, :B].set(x_ids.astype(jnp.int32))
    ids_tm = ids_pad.reshape(S * Bp, 1)        # row = t*Bp + b

    # ---- slab 1 (width max(D,F)): embedding, im2col conv weights, misc rows --
    def padw(a):
        return jnp.pad(a, ((0, 0), (0, Wm - a.shape[-1])))

    emb_tab = jnp.zeros((Vp, D), jnp.float32).at[:V].set(params["embedding"])
    w1 = params["conv1_w"].reshape(fs1 * D, F)               # im2col weight (row = dt*D + d)
    w2 = params["conv2_w"].reshape(fs2 * D, F)
    misc = jnp.zeros((8, F), jnp.float32)
    misc = misc.at[0].set(params["conv1_b"][0])
    misc = misc.at[1].set(params["conv2_b"][0])
    misc = misc.at[2].set(params["gru_bhh"][2, 0])           # b_hn (stays inside r*(...))
    misc = misc.at[3].set(params["fc_w"][:, 0])              # fc weight as a lane row
    misc = misc.at[4, 0].set(params["fc_b"][0, 0])
    w32 = jnp.concatenate([padw(emb_tab), padw(w1), padw(w2), padw(misc)], axis=0)

    # ---- slab 2 (width 3F): fused GRU weights + fused input-side bias --------
    wih_all = jnp.concatenate([params["gru_wih"][g] for g in range(3)], axis=1)   # (F, 3F)
    whh_all = jnp.concatenate([params["gru_whh"][g] for g in range(3)], axis=1)   # (F, 3F)
    gi_bias = jnp.concatenate(
        [params["gru_bih"][0] + params["gru_bhh"][0],
         params["gru_bih"][1] + params["gru_bhh"][1],
         params["gru_bih"][2]], axis=1)                                            # (1, 3F)
    gib = jnp.zeros((8, 3 * F), jnp.float32).at[0:1].set(gi_bias)
    w96 = jnp.concatenate([wih_all, whh_all, gib], axis=0)                          # (2F+8, 3F)

    vmem = pl.BlockSpec(memory_space=pltpu.MemorySpace.VMEM)
    kernel = functools.partial(crnn_fused_kernel,
                               B=Bp, S=S, Vp=Vp, D=D, F=F, fs1=fs1, fs2=fs2)
    out = pl.pallas_call(
        kernel,
        out_shape=jax.ShapeDtypeStruct((Bp, 1), jnp.float32),
        in_specs=[vmem, vmem, vmem],
        out_specs=vmem,
    )(ids_tm, w32, w96)
    return out[:B]                              # drop padded batch rows


# ------------------------- pure-JAX reference (sanity) ----------------------

def crnn_reference(params, x_ids, lengths):
    del lengths
    P = jax.lax.Precision.HIGHEST
    x = jnp.transpose(x_ids, (1, 0))                       # (B, S)
    emb = jnp.take(params["embedding"], x, axis=0)         # (B, S, D)

    def conv(e, w, b):
        fs = w.shape[0]
        L = e.shape[1] - fs + 1
        acc = jnp.zeros((e.shape[0], L, w.shape[2]), jnp.float32) + b
        for dt in range(fs):
            acc = acc + jnp.einsum("bld,df->blf", e[:, dt:dt + L, :], w[dt], precision=P)
        return jnp.maximum(acc, 0.0)

    x1 = conv(emb, params["conv1_w"], params["conv1_b"])   # (B, L1, F)
    x2 = conv(emb, params["conv2_w"], params["conv2_b"])   # (B, L2, F)
    xt = jnp.concatenate([x1, x2], axis=1)                 # (B, T, F)
    Bb, T, F = xt.shape
    wih, whh = params["gru_wih"], params["gru_whh"]        # (3, F, F)
    bih, bhh = params["gru_bih"], params["gru_bhh"]        # (3, 1, F)
    h = jnp.zeros((Bb, F), jnp.float32)
    for t in range(T):
        xt_t = xt[:, t, :]
        r = jax.nn.sigmoid(jnp.matmul(xt_t, wih[0], precision=P) + bih[0]
                           + jnp.matmul(h, whh[0], precision=P) + bhh[0])
        z = jax.nn.sigmoid(jnp.matmul(xt_t, wih[1], precision=P) + bih[1]
                           + jnp.matmul(h, whh[1], precision=P) + bhh[1])
        n = jnp.tanh(jnp.matmul(xt_t, wih[2], precision=P) + bih[2]
                     + r * (jnp.matmul(h, whh[2], precision=P) + bhh[2]))
        h = (1.0 - z) * n + z * h
    return jax.nn.sigmoid(jnp.matmul(h, params["fc_w"], precision=P) + params["fc_b"])


# ----------------------------------- main ------------------------------------

if __name__ == "__main__":
    V, D, F = 50, 32, 32              # vocab size, embedding_dim, n_filters
    filter_sizes = (3, 4)
    S, B = 16, 2                      # seq_len, batch

    key = jax.random.PRNGKey(0)
    ks = jax.random.split(key, 12)
    params = {
        "embedding": jax.random.normal(ks[0], (V, D), jnp.float32),
        "conv1_w": 0.1 * jax.random.normal(ks[1], (filter_sizes[0], D, F), jnp.float32),
        "conv1_b": 0.1 * jax.random.normal(ks[2], (1, F), jnp.float32),
        "conv2_w": 0.1 * jax.random.normal(ks[3], (filter_sizes[1], D, F), jnp.float32),
        "conv2_b": 0.1 * jax.random.normal(ks[4], (1, F), jnp.float32),
        # GRU weights stored gate-major (r, z, n), pre-transposed so x @ wih[g] == W_{i,g} x.
        "gru_wih": 0.1 * jax.random.normal(ks[5], (3, F, F), jnp.float32),
        "gru_whh": 0.1 * jax.random.normal(ks[6], (3, F, F), jnp.float32),
        "gru_bih": 0.1 * jax.random.normal(ks[7], (3, 1, F), jnp.float32),
        "gru_bhh": 0.1 * jax.random.normal(ks[8], (3, 1, F), jnp.float32),
        "fc_w": 0.1 * jax.random.normal(ks[9], (F, 1), jnp.float32),
        "fc_b": 0.1 * jax.random.normal(ks[10], (1, 1), jnp.float32),
    }

    x = jax.random.randint(ks[11], (S, B), 0, V, dtype=jnp.int32)   # (seq_len, batch)
    lengths = jnp.full((B,), S, dtype=jnp.int32)                    # unused by forward

    out = jax.block_until_ready(crnn_forward(params, x, lengths))
    ref = jax.block_until_ready(jax.jit(crnn_reference)(params, x, lengths))

    assert out.shape == (B, 1), out.shape
    err = float(jnp.max(jnp.abs(out - ref)))
    assert err < 2e-3, err
    print("KERNEL_OK")
</pallas_src>

<mosaic_0001>
module attributes {stable_mosaic.version = 11 : i64} {
  func.func @crnn_fused_kernel(%arg0: memref<128x1xi32, #tpu.memory_space<vmem>>, %arg1: memref<288x32xf32, #tpu.memory_space<vmem>>, %arg2: memref<72x96xf32, #tpu.memory_space<vmem>>, %arg3: memref<8x1xf32, #tpu.memory_space<vmem>>) attributes {dimension_semantics = [], scalar_prefetch = 0 : i64, scratch_operands = 0 : i64, tpu.core_type = #tpu.core_type<tc>} {
    %c0 = arith.constant 0 : index
    %c0_0 = arith.constant 0 : index
    %0 = vector.load %arg0[%c0, %c0_0] : memref<128x1xi32, #tpu.memory_space<vmem>>, vector<128x1xi32>
    %1 = tpu.iota {dimensions = array<i32: 1>} : vector<128x56xi32>
    %2 = vector.broadcast %0 : vector<128x1xi32> to vector<128x56xi32>
    %3 = arith.cmpi eq, %2, %1 : vector<128x56xi32>
    %cst = arith.constant 1.000000e+00 : f32
    %cst_1 = arith.constant 0.000000e+00 : f32
    %4 = vector.broadcast %cst : f32 to vector<128x56xf32>
    %5 = vector.broadcast %cst_1 : f32 to vector<128x56xf32>
    %6 = arith.select %3, %4, %5 : vector<128x56xi1>, vector<128x56xf32>
    %c0_2 = arith.constant 0 : index
    %c0_3 = arith.constant 0 : index
    %7 = vector.load %arg1[%c0_2, %c0_3] : memref<288x32xf32, #tpu.memory_space<vmem>>, vector<56x32xf32>
    %cst_4 = arith.constant dense<0.000000e+00> : vector<128x32xf32>
    %8 = tpu.matmul %6, %7, %cst_4 {dimension_numbers = #tpu.dot_dimension_numbers<[1], [0], [0], [1], [0, 0, 1, 1], [], []>} : vector<128x56xf32>, vector<56x32xf32>, vector<128x32xf32> -> vector<128x32xf32>
    %c280 = arith.constant 280 : index
    %c0_5 = arith.constant 0 : index
    %9 = vector.load %arg1[%c280, %c0_5] : memref<288x32xf32, #tpu.memory_space<vmem>>, vector<8x32xf32>
    %10 = vector.extract_strided_slice %8 {offsets = [0, 0], sizes = [112, 32], strides = [1, 1]} : vector<128x32xf32> to vector<112x32xf32>
    %11 = vector.extract_strided_slice %8 {offsets = [8, 0], sizes = [112, 32], strides = [1, 1]} : vector<128x32xf32> to vector<112x32xf32>
    %12 = vector.extract_strided_slice %8 {offsets = [16, 0], sizes = [112, 32], strides = [1, 1]} : vector<128x32xf32> to vector<112x32xf32>
    %13 = tpu.concatenate %10, %11, %12 in 1 : vector<112x32xf32>, vector<112x32xf32>, vector<112x32xf32> -> vector<112x96xf32>
    %c56 = arith.constant 56 : index
    %c0_6 = arith.constant 0 : index
    %14 = vector.load %arg1[%c56, %c0_6] : memref<288x32xf32, #tpu.memory_space<vmem>>, vector<96x32xf32>
    %cst_7 = arith.constant dense<0.000000e+00> : vector<112x32xf32>
    %15 = tpu.matmul %13, %14, %cst_7 {dimension_numbers = #tpu.dot_dimension_numbers<[1], [0], [0], [1], [0, 0, 1, 1], [], []>} : vector<112x96xf32>, vector<96x32xf32>, vector<112x32xf32> -> vector<112x32xf32>
    %16 = vector.extract_strided_slice %9 {offsets = [0, 0], sizes = [1, 32], strides = [1, 1]} : vector<8x32xf32> to vector<1x32xf32>
    %17 = vector.broadcast %16 : vector<1x32xf32> to vector<112x32xf32>
    %18 = arith.addf %15, %17 : vector<112x32xf32>
    %cst_8 = arith.constant 0.000000e+00 : f32
    %19 = vector.broadcast %cst_8 : f32 to vector<112x32xf32>
    %20 = arith.maximumf %18, %19 : vector<112x32xf32>
    %21 = vector.extract_strided_slice %8 {offsets = [0, 0], sizes = [104, 32], strides = [1, 1]} : vector<128x32xf32> to vector<104x32xf32>
    %22 = vector.extract_strided_slice %8 {offsets = [8, 0], sizes = [104, 32], strides = [1, 1]} : vector<128x32xf32> to vector<104x32xf32>
    %23 = vector.extract_strided_slice %8 {offsets = [16, 0], sizes = [104, 32], strides = [1, 1]} : vector<128x32xf32> to vector<104x32xf32>
    %24 = vector.extract_strided_slice %8 {offsets = [24, 0], sizes = [104, 32], strides = [1, 1]} : vector<128x32xf32> to vector<104x32xf32>
    %25 = tpu.concatenate %21, %22, %23, %24 in 1 : vector<104x32xf32>, vector<104x32xf32>, vector<104x32xf32>, vector<104x32xf32> -> vector<104x128xf32>
    %c152 = arith.constant 152 : index
    %c0_9 = arith.constant 0 : index
    %26 = vector.load %arg1[%c152, %c0_9] : memref<288x32xf32, #tpu.memory_space<vmem>>, vector<128x32xf32>
    %cst_10 = arith.constant dense<0.000000e+00> : vector<104x32xf32>
    %27 = tpu.matmul %25, %26, %cst_10 {dimension_numbers = #tpu.dot_dimension_numbers<[1], [0], [0], [1], [0, 0, 1, 1], [], []>} : vector<104x128xf32>, vector<128x32xf32>, vector<104x32xf32> -> vector<104x32xf32>
    %28 = vector.extract_strided_slice %9 {offsets = [1, 0], sizes = [1, 32], strides = [1, 1]} : vector<8x32xf32> to vector<1x32xf32>
    %29 = vector.broadcast %28 : vector<1x32xf32> to vector<104x32xf32>
    %30 = arith.addf %27, %29 : vector<104x32xf32>
    %cst_11 = arith.constant 0.000000e+00 : f32
    %31 = vector.broadcast %cst_11 : f32 to vector<104x32xf32>
    %32 = arith.maximumf %30, %31 : vector<104x32xf32>
    %c0_12 = arith.constant 0 : index
    %c0_13 = arith.constant 0 : index
    %33 = vector.load %arg2[%c0_12, %c0_13] : memref<72x96xf32, #tpu.memory_space<vmem>>, vector<32x96xf32>
    %c32 = arith.constant 32 : index
    %c0_14 = arith.constant 0 : index
    %34 = vector.load %arg2[%c32, %c0_14] : memref<72x96xf32, #tpu.memory_space<vmem>>, vector<32x96xf32>
    %c64 = arith.constant 64 : index
    %c0_15 = arith.constant 0 : index
    %35 = vector.load %arg2[%c64, %c0_15] : memref<72x96xf32, #tpu.memory_space<vmem>>, vector<1x96xf32>
    %cst_16 = arith.constant dense<0.000000e+00> : vector<112x96xf32>
    %36 = tpu.matmul %20, %33, %cst_16 {dimension_numbers = #tpu.dot_dimension_numbers<[1], [0], [0], [1], [0, 0, 1, 1], [], []>} : vector<112x32xf32>, vector<32x96xf32>, vector<112x96xf32> -> vector<112x96xf32>
    %37 = vector.broadcast %35 : vector<1x96xf32> to vector<112x96xf32>
    %38 = arith.addf %36, %37 : vector<112x96xf32>
    %cst_17 = arith.constant dense<0.000000e+00> : vector<104x96xf32>
    %39 = tpu.matmul %32, %33, %cst_17 {dimension_numbers = #tpu.dot_dimension_numbers<[1], [0], [0], [1], [0, 0, 1, 1], [], []>} : vector<104x32xf32>, vector<32x96xf32>, vector<104x96xf32> -> vector<104x96xf32>
    %40 = vector.broadcast %35 : vector<1x96xf32> to vector<104x96xf32>
    %41 = arith.addf %39, %40 : vector<104x96xf32>
    %42 = vector.extract_strided_slice %38 {offsets = [0, 0], sizes = [112, 32], strides = [1, 1]} : vector<112x96xf32> to vector<112x32xf32>
    %43 = vector.extract_strided_slice %38 {offsets = [0, 32], sizes = [112, 32], strides = [1, 1]} : vector<112x96xf32> to vector<112x32xf32>
    %44 = vector.extract_strided_slice %38 {offsets = [0, 64], sizes = [112, 32], strides = [1, 1]} : vector<112x96xf32> to vector<112x32xf32>
    %45 = vector.extract_strided_slice %41 {offsets = [0, 0], sizes = [104, 32], strides = [1, 1]} : vector<104x96xf32> to vector<104x32xf32>
    %46 = vector.extract_strided_slice %41 {offsets = [0, 32], sizes = [104, 32], strides = [1, 1]} : vector<104x96xf32> to vector<104x32xf32>
    %47 = vector.extract_strided_slice %41 {offsets = [0, 64], sizes = [104, 32], strides = [1, 1]} : vector<104x96xf32> to vector<104x32xf32>
    %48 = vector.extract_strided_slice %9 {offsets = [2, 0], sizes = [1, 32], strides = [1, 1]} : vector<8x32xf32> to vector<1x32xf32>
    %49 = vector.shape_cast %48 : vector<1x32xf32> to vector<1x32xf32>
    %50 = vector.broadcast %49 : vector<1x32xf32> to vector<8x32xf32>
    %cst_18 = arith.constant 0.000000e+00 : f32
    %51 = vector.broadcast %cst_18 : f32 to vector<8x32xf32>
    %52 = vector.extract_strided_slice %42 {offsets = [0, 0], sizes = [8, 32], strides = [1, 1]} : vector<112x32xf32> to vector<8x32xf32>
    %53 = vector.extract_strided_slice %43 {offsets = [0, 0], sizes = [8, 32], strides = [1, 1]} : vector<112x32xf32> to vector<8x32xf32>
    %54 = vector.extract_strided_slice %44 {offsets = [0, 0], sizes = [8, 32], strides = [1, 1]} : vector<112x32xf32> to vector<8x32xf32>
    %cst_19 = arith.constant dense<0.000000e+00> : vector<8x96xf32>
    %55 = tpu.matmul %51, %34, %cst_19 {dimension_numbers = #tpu.dot_dimension_numbers<[1], [0], [0], [1], [0, 0, 1, 1], [], []>} : vector<8x32xf32>, vector<32x96xf32>, vector<8x96xf32> -> vector<8x96xf32>
    %56 = vector.extract_strided_slice %55 {offsets = [0, 0], sizes = [8, 32], strides = [1, 1]} : vector<8x96xf32> to vector<8x32xf32>
    %57 = arith.addf %52, %56 : vector<8x32xf32>
    %58 = arith.negf %57 : vector<8x32xf32>
    %59 = math.exp %58 : vector<8x32xf32>
    %cst_20 = arith.constant 1.000000e+00 : f32
    %60 = vector.broadcast %cst_20 : f32 to vector<8x32xf32>
    %61 = arith.addf %60, %59 : vector<8x32xf32>
    %62 = arith.divf %60, %61 : vector<8x32xf32>
    %63 = vector.extract_strided_slice %55 {offsets = [0, 32], sizes = [8, 32], strides = [1, 1]} : vector<8x96xf32> to vector<8x32xf32>
    %64 = arith.addf %53, %63 : vector<8x32xf32>
    %65 = arith.negf %64 : vector<8x32xf32>
    %66 = math.exp %65 : vector<8x32xf32>
    %cst_21 = arith.constant 1.000000e+00 : f32
    %67 = vector.broadcast %cst_21 : f32 to vector<8x32xf32>
    %68 = arith.addf %67, %66 : vector<8x32xf32>
    %69 = arith.divf %67, %68 : vector<8x32xf32>
    %70 = vector.extract_strided_slice %55 {offsets = [0, 64], sizes = [8, 32], strides = [1, 1]} : vector<8x96xf32> to vector<8x32xf32>
    %71 = arith.addf %70, %50 : vector<8x32xf32>
    %72 = arith.mulf %62, %71 : vector<8x32xf32>
    %73 = arith.addf %54, %72 : vector<8x32xf32>
    %74 = math.tanh %73 : vector<8x32xf32>
    %cst_22 = arith.constant 1.000000e+00 : f32
    %75 = vector.broadcast %cst_22 : f32 to vector<8x32xf32>
    %76 = arith.subf %75, %69 : vector<8x32xf32>
    %77 = arith.mulf %76, %74 : vector<8x32xf32>
    %78 = arith.mulf %69, %51 : vector<8x32xf32>
    %79 = arith.addf %77, %78 : vector<8x32xf32>
    %80 = vector.extract_strided_slice %42 {offsets = [8, 0], sizes = [8, 32], strides = [1, 1]} : vector<112x32xf32> to vector<8x32xf32>
    %81 = vector.extract_strided_slice %43 {offsets = [8, 0], sizes = [8, 32], strides = [1, 1]} : vector<112x32xf32> to vector<8x32xf32>
    %82 = vector.extract_strided_slice %44 {offsets = [8, 0], sizes = [8, 32], strides = [1, 1]} : vector<112x32xf32> to vector<8x32xf32>
    %cst_23 = arith.constant dense<0.000000e+00> : vector<8x96xf32>
    %83 = tpu.matmul %79, %34, %cst_23 {dimension_numbers = #tpu.dot_dimension_numbers<[1], [0], [0], [1], [0, 0, 1, 1], [], []>} : vector<8x32xf32>, vector<32x96xf32>, vector<8x96xf32> -> vector<8x96xf32>
    %84 = vector.extract_strided_slice %83 {offsets = [0, 0], sizes = [8, 32], strides = [1, 1]} : vector<8x96xf32> to vector<8x32xf32>
    %85 = arith.addf %80, %84 : vector<8x32xf32>
    %86 = arith.negf %85 : vector<8x32xf32>
    %87 = math.exp %86 : vector<8x32xf32>
    %cst_24 = arith.constant 1.000000e+00 : f32
    %88 = vector.broadcast %cst_24 : f32 to vector<8x32xf32>
    %89 = arith.addf %88, %87 : vector<8x32xf32>
    %90 = arith.divf %88, %89 : vector<8x32xf32>
    %91 = vector.extract_strided_slice %83 {offsets = [0, 32], sizes = [8, 32], strides = [1, 1]} : vector<8x96xf32> to vector<8x32xf32>
    %92 = arith.addf %81, %91 : vector<8x32xf32>
    %93 = arith.negf %92 : vector<8x32xf32>
    %94 = math.exp %93 : vector<8x32xf32>
    %cst_25 = arith.constant 1.000000e+00 : f32
    %95 = vector.broadcast %cst_25 : f32 to vector<8x32xf32>
    %96 = arith.addf %95, %94 : vector<8x32xf32>
    %97 = arith.divf %95, %96 : vector<8x32xf32>
    %98 = vector.extract_strided_slice %83 {offsets = [0, 64], sizes = [8, 32], strides = [1, 1]} : vector<8x96xf32> to vector<8x32xf32>
    %99 = arith.addf %98, %50 : vector<8x32xf32>
    %100 = arith.mulf %90, %99 : vector<8x32xf32>
    %101 = arith.addf %82, %100 : vector<8x32xf32>
    %102 = math.tanh %101 : vector<8x32xf32>
    %cst_26 = arith.constant 1.000000e+00 : f32
    %103 = vector.broadcast %cst_26 : f32 to vector<8x32xf32>
    %104 = arith.subf %103, %97 : vector<8x32xf32>
    %105 = arith.mulf %104, %102 : vector<8x32xf32>
    %106 = arith.mulf %97, %79 : vector<8x32xf32>
    %107 = arith.addf %105, %106 : vector<8x32xf32>
    %108 = vector.extract_strided_slice %42 {offsets = [16, 0], sizes = [8, 32], strides = [1, 1]} : vector<112x32xf32> to vector<8x32xf32>
    %109 = vector.extract_strided_slice %43 {offsets = [16, 0], sizes = [8, 32], strides = [1, 1]} : vector<112x32xf32> to vector<8x32xf32>
    %110 = vector.extract_strided_slice %44 {offsets = [16, 0], sizes = [8, 32], strides = [1, 1]} : vector<112x32xf32> to vector<8x32xf32>
    %cst_27 = arith.constant dense<0.000000e+00> : vector<8x96xf32>
    %111 = tpu.matmul %107, %34, %cst_27 {dimension_numbers = #tpu.dot_dimension_numbers<[1], [0], [0], [1], [0, 0, 1, 1], [], []>} : vector<8x32xf32>, vector<32x96xf32>, vector<8x96xf32> -> vector<8x96xf32>
    %112 = vector.extract_strided_slice %111 {offsets = [0, 0], sizes = [8, 32], strides = [1, 1]} : vector<8x96xf32> to vector<8x32xf32>
    %113 = arith.addf %108, %112 : vector<8x32xf32>
    %114 = arith.negf %113 : vector<8x32xf32>
    %115 = math.exp %114 : vector<8x32xf32>
    %cst_28 = arith.constant 1.000000e+00 : f32
    %116 = vector.broadcast %cst_28 : f32 to vector<8x32xf32>
    %117 = arith.addf %116, %115 : vector<8x32xf32>
    %118 = arith.divf %116, %117 : vector<8x32xf32>
    %119 = vector.extract_strided_slice %111 {offsets = [0, 32], sizes = [8, 32], strides = [1, 1]} : vector<8x96xf32> to vector<8x32xf32>
    %120 = arith.addf %109, %119 : vector<8x32xf32>
    %121 = arith.negf %120 : vector<8x32xf32>
    %122 = math.exp %121 : vector<8x32xf32>
    %cst_29 = arith.constant 1.000000e+00 : f32
    %123 = vector.broadcast %cst_29 : f32 to vector<8x32xf32>
    %124 = arith.addf %123, %122 : vector<8x32xf32>
    %125 = arith.divf %123, %124 : vector<8x32xf32>
    %126 = vector.extract_strided_slice %111 {offsets = [0, 64], sizes = [8, 32], strides = [1, 1]} : vector<8x96xf32> to vector<8x32xf32>
    %127 = arith.addf %126, %50 : vector<8x32xf32>
    %128 = arith.mulf %118, %127 : vector<8x32xf32>
    %129 = arith.addf %110, %128 : vector<8x32xf32>
    %130 = math.tanh %129 : vector<8x32xf32>
    %cst_30 = arith.constant 1.000000e+00 : f32
    %131 = vector.broadcast %cst_30 : f32 to vector<8x32xf32>
    %132 = arith.subf %131, %125 : vector<8x32xf32>
    %133 = arith.mulf %132, %130 : vector<8x32xf32>
    %134 = arith.mulf %125, %107 : vector<8x32xf32>
    %135 = arith.addf %133, %134 : vector<8x32xf32>
    %136 = vector.extract_strided_slice %42 {offsets = [24, 0], sizes = [8, 32], strides = [1, 1]} : vector<112x32xf32> to vector<8x32xf32>
    %137 = vector.extract_strided_slice %43 {offsets = [24, 0], sizes = [8, 32], strides = [1, 1]} : vector<112x32xf32> to vector<8x32xf32>
    %138 = vector.extract_strided_slice %44 {offsets = [24, 0], sizes = [8, 32], strides = [1, 1]} : vector<112x32xf32> to vector<8x32xf32>
    %cst_31 = arith.constant dense<0.000000e+00> : vector<8x96xf32>
    %139 = tpu.matmul %135, %34, %cst_31 {dimension_numbers = #tpu.dot_dimension_numbers<[1], [0], [0], [1], [0, 0, 1, 1], [], []>} : vector<8x32xf32>, vector<32x96xf32>, vector<8x96xf32> -> vector<8x96xf32>
    %140 = vector.extract_strided_slice %139 {offsets = [0, 0], sizes = [8, 32], strides = [1, 1]} : vector<8x96xf32> to vector<8x32xf32>
    %141 = arith.addf %136, %140 : vector<8x32xf32>
    %142 = arith.negf %141 : vector<8x32xf32>
    %143 = math.exp %142 : vector<8x32xf32>
    %cst_32 = arith.constant 1.000000e+00 : f32
    %144 = vector.broadcast %cst_32 : f32 to vector<8x32xf32>
    %145 = arith.addf %144, %143 : vector<8x32xf32>
    %146 = arith.divf %144, %145 : vector<8x32xf32>
    %147 = vector.extract_strided_slice %139 {offsets = [0, 32], sizes = [8, 32], strides = [1, 1]} : vector<8x96xf32> to vector<8x32xf32>
    %148 = arith.addf %137, %147 : vector<8x32xf32>
    %149 = arith.negf %148 : vector<8x32xf32>
    %150 = math.exp %149 : vector<8x32xf32>
    %cst_33 = arith.constant 1.000000e+00 : f32
    %151 = vector.broadcast %cst_33 : f32 to vector<8x32xf32>
    %152 = arith.addf %151, %150 : vector<8x32xf32>
    %153 = arith.divf %151, %152 : vector<8x32xf32>
    %154 = vector.extract_strided_slice %139 {offsets = [0, 64], sizes = [8, 32], strides = [1, 1]} : vector<8x96xf32> to vector<8x32xf32>
    %155 = arith.addf %154, %50 : vector<8x32xf32>
    %156 = arith.mulf %146, %155 : vector<8x32xf32>
    %157 = arith.addf %138, %156 : vector<8x32xf32>
    %158 = math.tanh %157 : vector<8x32xf32>
    %cst_34 = arith.constant 1.000000e+00 : f32
    %159 = vector.broadcast %cst_34 : f32 to vector<8x32xf32>
    %160 = arith.subf %159, %153 : vector<8x32xf32>
    %161 = arith.mulf %160, %158 : vector<8x32xf32>
    %162 = arith.mulf %153, %135 : vector<8x32xf32>
    %163 = arith.addf %161, %162 : vector<8x32xf32>
    %164 = vector.extract_strided_slice %42 {offsets = [32, 0], sizes = [8, 32], strides = [1, 1]} : vector<112x32xf32> to vector<8x32xf32>
    %165 = vector.extract_strided_slice %43 {offsets = [32, 0], sizes = [8, 32], strides = [1, 1]} : vector<112x32xf32> to vector<8x32xf32>
    %166 = vector.extract_strided_slice %44 {offsets = [32, 0], sizes = [8, 32], strides = [1, 1]} : vector<112x32xf32> to vector<8x32xf32>
    %cst_35 = arith.constant dense<0.000000e+00> : vector<8x96xf32>
    %167 = tpu.matmul %163, %34, %cst_35 {dimension_numbers = #tpu.dot_dimension_numbers<[1], [0], [0], [1], [0, 0, 1, 1], [], []>} : vector<8x32xf32>, vector<32x96xf32>, vector<8x96xf32> -> vector<8x96xf32>
    %168 = vector.extract_strided_slice %167 {offsets = [0, 0], sizes = [8, 32], strides = [1, 1]} : vector<8x96xf32> to vector<8x32xf32>
    %169 = arith.addf %164, %168 : vector<8x32xf32>
    %170 = arith.negf %169 : vector<8x32xf32>
    %171 = math.exp %170 : vector<8x32xf32>
    %cst_36 = arith.constant 1.000000e+00 : f32
    %172 = vector.broadcast %cst_36 : f32 to vector<8x32xf32>
    %173 = arith.addf %172, %171 : vector<8x32xf32>
    %174 = arith.divf %172, %173 : vector<8x32xf32>
    %175 = vector.extract_strided_slice %167 {offsets = [0, 32], sizes = [8, 32], strides = [1, 1]} : vector<8x96xf32> to vector<8x32xf32>
    %176 = arith.addf %165, %175 : vector<8x32xf32>
    %177 = arith.negf %176 : vector<8x32xf32>
    %178 = math.exp %177 : vector<8x32xf32>
    %cst_37 = arith.constant 1.000000e+00 : f32
    %179 = vector.broadcast %cst_37 : f32 to vector<8x32xf32>
    %180 = arith.addf %179, %178 : vector<8x32xf32>
    %181 = arith.divf %179, %180 : vector<8x32xf32>
    %182 = vector.extract_strided_slice %167 {offsets = [0, 64], sizes = [8, 32], strides = [1, 1]} : vector<8x96xf32> to vector<8x32xf32>
    %183 = arith.addf %182, %50 : vector<8x32xf32>
    %184 = arith.mulf %174, %183 : vector<8x32xf32>
    %185 = arith.addf %166, %184 : vector<8x32xf32>
    %186 = math.tanh %185 : vector<8x32xf32>
    %cst_38 = arith.constant 1.000000e+00 : f32
    %187 = vector.broadcast %cst_38 : f32 to vector<8x32xf32>
    %188 = arith.subf %187, %181 : vector<8x32xf32>
    %189 = arith.mulf %188, %186 : vector<8x32xf32>
    %190 = arith.mulf %181, %163 : vector<8x32xf32>
    %191 = arith.addf %189, %190 : vector<8x32xf32>
    %192 = vector.extract_strided_slice %42 {offsets = [40, 0], sizes = [8, 32], strides = [1, 1]} : vector<112x32xf32> to vector<8x32xf32>
    %193 = vector.extract_strided_slice %43 {offsets = [40, 0], sizes = [8, 32], strides = [1, 1]} : vector<112x32xf32> to vector<8x32xf32>
    %194 = vector.extract_strided_slice %44 {offsets = [40, 0], sizes = [8, 32], strides = [1, 1]} : vector<112x32xf32> to vector<8x32xf32>
    %cst_39 = arith.constant dense<0.000000e+00> : vector<8x96xf32>
    %195 = tpu.matmul %191, %34, %cst_39 {dimension_numbers = #tpu.dot_dimension_numbers<[1], [0], [0], [1], [0, 0, 1, 1], [], []>} : vector<8x32xf32>, vector<32x96xf32>, vector<8x96xf32> -> vector<8x96xf32>
    %196 = vector.extract_strided_slice %195 {offsets = [0, 0], sizes = [8, 32], strides = [1, 1]} : vector<8x96xf32> to vector<8x32xf32>
    %197 = arith.addf %192, %196 : vector<8x32xf32>
    %198 = arith.negf %197 : vector<8x32xf32>
    %199 = math.exp %198 : vector<8x32xf32>
    %cst_40 = arith.constant 1.000000e+00 : f32
    %200 = vector.broadcast %cst_40 : f32 to vector<8x32xf32>
    %201 = arith.addf %200, %199 : vector<8x32xf32>
    %202 = arith.divf %200, %201 : vector<8x32xf32>
    %203 = vector.extract_strided_slice %195 {offsets = [0, 32], sizes = [8, 32], strides = [1, 1]} : vector<8x96xf32> to vector<8x32xf32>
    %204 = arith.addf %193, %203 : vector<8x32xf32>
    %205 = arith.negf %204 : vector<8x32xf32>
    %206 = math.exp %205 : vector<8x32xf32>
    %cst_41 = arith.constant 1.000000e+00 : f32
    %207 = vector.broadcast %cst_41 : f32 to vector<8x32xf32>
    %208 = arith.addf %207, %206 : vector<8x32xf32>
    %209 = arith.divf %207, %208 : vector<8x32xf32>
    %210 = vector.extract_strided_slice %195 {offsets = [0, 64], sizes = [8, 32], strides = [1, 1]} : vector<8x96xf32> to vector<8x32xf32>
    %211 = arith.addf %210, %50 : vector<8x32xf32>
    %212 = arith.mulf %202, %211 : vector<8x32xf32>
    %213 = arith.addf %194, %212 : vector<8x32xf32>
    %214 = math.tanh %213 : vector<8x32xf32>
    %cst_42 = arith.constant 1.000000e+00 : f32
    %215 = vector.broadcast %cst_42 : f32 to vector<8x32xf32>
    %216 = arith.subf %215, %209 : vector<8x32xf32>
    %217 = arith.mulf %216, %214 : vector<8x32xf32>
    %218 = arith.mulf %209, %191 : vector<8x32xf32>
    %219 = arith.addf %217, %218 : vector<8x32xf32>
    %220 = vector.extract_strided_slice %42 {offsets = [48, 0], sizes = [8, 32], strides = [1, 1]} : vector<112x32xf32> to vector<8x32xf32>
    %221 = vector.extract_strided_slice %43 {offsets = [48, 0], sizes = [8, 32], strides = [1, 1]} : vector<112x32xf32> to vector<8x32xf32>
    %222 = vector.extract_strided_slice %44 {offsets = [48, 0], sizes = [8, 32], strides = [1, 1]} : vector<112x32xf32> to vector<8x32xf32>
    %cst_43 = arith.constant dense<0.000000e+00> : vector<8x96xf32>
    %223 = tpu.matmul %219, %34, %cst_43 {dimension_numbers = #tpu.dot_dimension_numbers<[1], [0], [0], [1], [0, 0, 1, 1], [], []>} : vector<8x32xf32>, vector<32x96xf32>, vector<8x96xf32> -> vector<8x96xf32>
    %224 = vector.extract_strided_slice %223 {offsets = [0, 0], sizes = [8, 32], strides = [1, 1]} : vector<8x96xf32> to vector<8x32xf32>
    %225 = arith.addf %220, %224 : vector<8x32xf32>
    %226 = arith.negf %225 : vector<8x32xf32>
    %227 = math.exp %226 : vector<8x32xf32>
    %cst_44 = arith.constant 1.000000e+00 : f32
    %228 = vector.broadcast %cst_44 : f32 to vector<8x32xf32>
    %229 = arith.addf %228, %227 : vector<8x32xf32>
    %230 = arith.divf %228, %229 : vector<8x32xf32>
    %231 = vector.extract_strided_slice %223 {offsets = [0, 32], sizes = [8, 32], strides = [1, 1]} : vector<8x96xf32> to vector<8x32xf32>
    %232 = arith.addf %221, %231 : vector<8x32xf32>
    %233 = arith.negf %232 : vector<8x32xf32>
    %234 = math.exp %233 : vector<8x32xf32>
    %cst_45 = arith.constant 1.000000e+00 : f32
    %235 = vector.broadcast %cst_45 : f32 to vector<8x32xf32>
    %236 = arith.addf %235, %234 : vector<8x32xf32>
    %237 = arith.divf %235, %236 : vector<8x32xf32>
    %238 = vector.extract_strided_slice %223 {offsets = [0, 64], sizes = [8, 32], strides = [1, 1]} : vector<8x96xf32> to vector<8x32xf32>
    %239 = arith.addf %238, %50 : vector<8x32xf32>
    %240 = arith.mulf %230, %239 : vector<8x32xf32>
    %241 = arith.addf %222, %240 : vector<8x32xf32>
    %242 = math.tanh %241 : vector<8x32xf32>
    %cst_46 = arith.constant 1.000000e+00 : f32
    %243 = vector.broadcast %cst_46 : f32 to vector<8x32xf32>
    %244 = arith.subf %243, %237 : vector<8x32xf32>
    %245 = arith.mulf %244, %242 : vector<8x32xf32>
    %246 = arith.mulf %237, %219 : vector<8x32xf32>
    %247 = arith.addf %245, %246 : vector<8x32xf32>
    %248 = vector.extract_strided_slice %42 {offsets = [56, 0], sizes = [8, 32], strides = [1, 1]} : vector<112x32xf32> to vector<8x32xf32>
    %249 = vector.extract_strided_slice %43 {offsets = [56, 0], sizes = [8, 32], strides = [1, 1]} : vector<112x32xf32> to vector<8x32xf32>
    %250 = vector.extract_strided_slice %44 {offsets = [56, 0], sizes = [8, 32], strides = [1, 1]} : vector<112x32xf32> to vector<8x32xf32>
    %cst_47 = arith.constant dense<0.000000e+00> : vector<8x96xf32>
    %251 = tpu.matmul %247, %34, %cst_47 {dimension_numbers = #tpu.dot_dimension_numbers<[1], [0], [0], [1], [0, 0, 1, 1], [], []>} : vector<8x32xf32>, vector<32x96xf32>, vector<8x96xf32> -> vector<8x96xf32>
    %252 = vector.extract_strided_slice %251 {offsets = [0, 0], sizes = [8, 32], strides = [1, 1]} : vector<8x96xf32> to vector<8x32xf32>
    %253 = arith.addf %248, %252 : vector<8x32xf32>
    %254 = arith.negf %253 : vector<8x32xf32>
    %255 = math.exp %254 : vector<8x32xf32>
    %cst_48 = arith.constant 1.000000e+00 : f32
    %256 = vector.broadcast %cst_48 : f32 to vector<8x32xf32>
    %257 = arith.addf %256, %255 : vector<8x32xf32>
    %258 = arith.divf %256, %257 : vector<8x32xf32>
    %259 = vector.extract_strided_slice %251 {offsets = [0, 32], sizes = [8, 32], strides = [1, 1]} : vector<8x96xf32> to vector<8x32xf32>
    %260 = arith.addf %249, %259 : vector<8x32xf32>
    %261 = arith.negf %260 : vector<8x32xf32>
    %262 = math.exp %261 : vector<8x32xf32>
    %cst_49 = arith.constant 1.000000e+00 : f32
    %263 = vector.broadcast %cst_49 : f32 to vector<8x32xf32>
    %264 = arith.addf %263, %262 : vector<8x32xf32>
    %265 = arith.divf %263, %264 : vector<8x32xf32>
    %266 = vector.extract_strided_slice %251 {offsets = [0, 64], sizes = [8, 32], strides = [1, 1]} : vector<8x96xf32> to vector<8x32xf32>
    %267 = arith.addf %266, %50 : vector<8x32xf32>
    %268 = arith.mulf %258, %267 : vector<8x32xf32>
    %269 = arith.addf %250, %268 : vector<8x32xf32>
    %270 = math.tanh %269 : vector<8x32xf32>
    %cst_50 = arith.constant 1.000000e+00 : f32
    %271 = vector.broadcast %cst_50 : f32 to vector<8x32xf32>
    %272 = arith.subf %271, %265 : vector<8x32xf32>
    %273 = arith.mulf %272, %270 : vector<8x32xf32>
    %274 = arith.mulf %265, %247 : vector<8x32xf32>
    %275 = arith.addf %273, %274 : vector<8x32xf32>
    %276 = vector.extract_strided_slice %42 {offsets = [64, 0], sizes = [8, 32], strides = [1, 1]} : vector<112x32xf32> to vector<8x32xf32>
    %277 = vector.extract_strided_slice %43 {offsets = [64, 0], sizes = [8, 32], strides = [1, 1]} : vector<112x32xf32> to vector<8x32xf32>
    %278 = vector.extract_strided_slice %44 {offsets = [64, 0], sizes = [8, 32], strides = [1, 1]} : vector<112x32xf32> to vector<8x32xf32>
    %cst_51 = arith.constant dense<0.000000e+00> : vector<8x96xf32>
    %279 = tpu.matmul %275, %34, %cst_51 {dimension_numbers = #tpu.dot_dimension_numbers<[1], [0], [0], [1], [0, 0, 1, 1], [], []>} : vector<8x32xf32>, vector<32x96xf32>, vector<8x96xf32> -> vector<8x96xf32>
    %280 = vector.extract_strided_slice %279 {offsets = [0, 0], sizes = [8, 32], strides = [1, 1]} : vector<8x96xf32> to vector<8x32xf32>
    %281 = arith.addf %276, %280 : vector<8x32xf32>
    %282 = arith.negf %281 : vector<8x32xf32>
    %283 = math.exp %282 : vector<8x32xf32>
    %cst_52 = arith.constant 1.000000e+00 : f32
    %284 = vector.broadcast %cst_52 : f32 to vector<8x32xf32>
    %285 = arith.addf %284, %283 : vector<8x32xf32>
    %286 = arith.divf %284, %285 : vector<8x32xf32>
    %287 = vector.extract_strided_slice %279 {offsets = [0, 32], sizes = [8, 32], strides = [1, 1]} : vector<8x96xf32> to vector<8x32xf32>
    %288 = arith.addf %277, %287 : vector<8x32xf32>
    %289 = arith.negf %288 : vector<8x32xf32>
    %290 = math.exp %289 : vector<8x32xf32>
    %cst_53 = arith.constant 1.000000e+00 : f32
    %291 = vector.broadcast %cst_53 : f32 to vector<8x32xf32>
    %292 = arith.addf %291, %290 : vector<8x32xf32>
    %293 = arith.divf %291, %292 : vector<8x32xf32>
    %294 = vector.extract_strided_slice %279 {offsets = [0, 64], sizes = [8, 32], strides = [1, 1]} : vector<8x96xf32> to vector<8x32xf32>
    %295 = arith.addf %294, %50 : vector<8x32xf32>
    %296 = arith.mulf %286, %295 : vector<8x32xf32>
    %297 = arith.addf %278, %296 : vector<8x32xf32>
    %298 = math.tanh %297 : vector<8x32xf32>
    %cst_54 = arith.constant 1.000000e+00 : f32
    %299 = vector.broadcast %cst_54 : f32 to vector<8x32xf32>
    %300 = arith.subf %299, %293 : vector<8x32xf32>
    %301 = arith.mulf %300, %298 : vector<8x32xf32>
    %302 = arith.mulf %293, %275 : vector<8x32xf32>
    %303 = arith.addf %301, %302 : vector<8x32xf32>
    %304 = vector.extract_strided_slice %42 {offsets = [72, 0], sizes = [8, 32], strides = [1, 1]} : vector<112x32xf32> to vector<8x32xf32>
    %305 = vector.extract_strided_slice %43 {offsets = [72, 0], sizes = [8, 32], strides = [1, 1]} : vector<112x32xf32> to vector<8x32xf32>
    %306 = vector.extract_strided_slice %44 {offsets = [72, 0], sizes = [8, 32], strides = [1, 1]} : vector<112x32xf32> to vector<8x32xf32>
    %cst_55 = arith.constant dense<0.000000e+00> : vector<8x96xf32>
    %307 = tpu.matmul %303, %34, %cst_55 {dimension_numbers = #tpu.dot_dimension_numbers<[1], [0], [0], [1], [0, 0, 1, 1], [], []>} : vector<8x32xf32>, vector<32x96xf32>, vector<8x96xf32> -> vector<8x96xf32>
    %308 = vector.extract_strided_slice %307 {offsets = [0, 0], sizes = [8, 32], strides = [1, 1]} : vector<8x96xf32> to vector<8x32xf32>
    %309 = arith.addf %304, %308 : vector<8x32xf32>
    %310 = arith.negf %309 : vector<8x32xf32>
    %311 = math.exp %310 : vector<8x32xf32>
    %cst_56 = arith.constant 1.000000e+00 : f32
    %312 = vector.broadcast %cst_56 : f32 to vector<8x32xf32>
    %313 = arith.addf %312, %311 : vector<8x32xf32>
    %314 = arith.divf %312, %313 : vector<8x32xf32>
    %315 = vector.extract_strided_slice %307 {offsets = [0, 32], sizes = [8, 32], strides = [1, 1]} : vector<8x96xf32> to vector<8x32xf32>
    %316 = arith.addf %305, %315 : vector<8x32xf32>
    %317 = arith.negf %316 : vector<8x32xf32>
    %318 = math.exp %317 : vector<8x32xf32>
    %cst_57 = arith.constant 1.000000e+00 : f32
    %319 = vector.broadcast %cst_57 : f32 to vector<8x32xf32>
    %320 = arith.addf %319, %318 : vector<8x32xf32>
    %321 = arith.divf %319, %320 : vector<8x32xf32>
    %322 = vector.extract_strided_slice %307 {offsets = [0, 64], sizes = [8, 32], strides = [1, 1]} : vector<8x96xf32> to vector<8x32xf32>
    %323 = arith.addf %322, %50 : vector<8x32xf32>
    %324 = arith.mulf %314, %323 : vector<8x32xf32>
    %325 = arith.addf %306, %324 : vector<8x32xf32>
    %326 = math.tanh %325 : vector<8x32xf32>
    %cst_58 = arith.constant 1.000000e+00 : f32
    %327 = vector.broadcast %cst_58 : f32 to vector<8x32xf32>
    %328 = arith.subf %327, %321 : vector<8x32xf32>
    %329 = arith.mulf %328, %326 : vector<8x32xf32>
    %330 = arith.mulf %321, %303 : vector<8x32xf32>
    %331 = arith.addf %329, %330 : vector<8x32xf32>
    %332 = vector.extract_strided_slice %42 {offsets = [80, 0], sizes = [8, 32], strides = [1, 1]} : vector<112x32xf32> to vector<8x32xf32>
    %333 = vector.extract_strided_slice %43 {offsets = [80, 0], sizes = [8, 32], strides = [1, 1]} : vector<112x32xf32> to vector<8x32xf32>
    %334 = vector.extract_strided_slice %44 {offsets = [80, 0], sizes = [8, 32], strides = [1, 1]} : vector<112x32xf32> to vector<8x32xf32>
    %cst_59 = arith.constant dense<0.000000e+00> : vector<8x96xf32>
    %335 = tpu.matmul %331, %34, %cst_59 {dimension_numbers = #tpu.dot_dimension_numbers<[1], [0], [0], [1], [0, 0, 1, 1], [], []>} : vector<8x32xf32>, vector<32x96xf32>, vector<8x96xf32> -> vector<8x96xf32>
    %336 = vector.extract_strided_slice %335 {offsets = [0, 0], sizes = [8, 32], strides = [1, 1]} : vector<8x96xf32> to vector<8x32xf32>
    %337 = arith.addf %332, %336 : vector<8x32xf32>
    %338 = arith.negf %337 : vector<8x32xf32>
    %339 = math.exp %338 : vector<8x32xf32>
    %cst_60 = arith.constant 1.000000e+00 : f32
    %340 = vector.broadcast %cst_60 : f32 to vector<8x32xf32>
    %341 = arith.addf %340, %339 : vector<8x32xf32>
    %342 = arith.divf %340, %341 : vector<8x32xf32>
    %343 = vector.extract_strided_slice %335 {offsets = [0, 32], sizes = [8, 32], strides = [1, 1]} : vector<8x96xf32> to vector<8x32xf32>
    %344 = arith.addf %333, %343 : vector<8x32xf32>
    %345 = arith.negf %344 : vector<8x32xf32>
    %346 = math.exp %345 : vector<8x32xf32>
    %cst_61 = arith.constant 1.000000e+00 : f32
    %347 = vector.broadcast %cst_61 : f32 to vector<8x32xf32>
    %348 = arith.addf %347, %346 : vector<8x32xf32>
    %349 = arith.divf %347, %348 : vector<8x32xf32>
    %350 = vector.extract_strided_slice %335 {offsets = [0, 64], sizes = [8, 32], strides = [1, 1]} : vector<8x96xf32> to vector<8x32xf32>
    %351 = arith.addf %350, %50 : vector<8x32xf32>
    %352 = arith.mulf %342, %351 : vector<8x32xf32>
    %353 = arith.addf %334, %352 : vector<8x32xf32>
    %354 = math.tanh %353 : vector<8x32xf32>
    %cst_62 = arith.constant 1.000000e+00 : f32
    %355 = vector.broadcast %cst_62 : f32 to vector<8x32xf32>
    %356 = arith.subf %355, %349 : vector<8x32xf32>
    %357 = arith.mulf %356, %354 : vector<8x32xf32>
    %358 = arith.mulf %349, %331 : vector<8x32xf32>
    %359 = arith.addf %357, %358 : vector<8x32xf32>
    %360 = vector.extract_strided_slice %42 {offsets = [88, 0], sizes = [8, 32], strides = [1, 1]} : vector<112x32xf32> to vector<8x32xf32>
    %361 = vector.extract_strided_slice %43 {offsets = [88, 0], sizes = [8, 32], strides = [1, 1]} : vector<112x32xf32> to vector<8x32xf32>
    %362 = vector.extract_strided_slice %44 {offsets = [88, 0], sizes = [8, 32], strides = [1, 1]} : vector<112x32xf32> to vector<8x32xf32>
    %cst_63 = arith.constant dense<0.000000e+00> : vector<8x96xf32>
    %363 = tpu.matmul %359, %34, %cst_63 {dimension_numbers = #tpu.dot_dimension_numbers<[1], [0], [0], [1], [0, 0, 1, 1], [], []>} : vector<8x32xf32>, vector<32x96xf32>, vector<8x96xf32> -> vector<8x96xf32>
    %364 = vector.extract_strided_slice %363 {offsets = [0, 0], sizes = [8, 32], strides = [1, 1]} : vector<8x96xf32> to vector<8x32xf32>
    %365 = arith.addf %360, %364 : vector<8x32xf32>
    %366 = arith.negf %365 : vector<8x32xf32>
    %367 = math.exp %366 : vector<8x32xf32>
    %cst_64 = arith.constant 1.000000e+00 : f32
    %368 = vector.broadcast %cst_64 : f32 to vector<8x32xf32>
    %369 = arith.addf %368, %367 : vector<8x32xf32>
    %370 = arith.divf %368, %369 : vector<8x32xf32>
    %371 = vector.extract_strided_slice %363 {offsets = [0, 32], sizes = [8, 32], strides = [1, 1]} : vector<8x96xf32> to vector<8x32xf32>
    %372 = arith.addf %361, %371 : vector<8x32xf32>
    %373 = arith.negf %372 : vector<8x32xf32>
    %374 = math.exp %373 : vector<8x32xf32>
    %cst_65 = arith.constant 1.000000e+00 : f32
    %375 = vector.broadcast %cst_65 : f32 to vector<8x32xf32>
    %376 = arith.addf %375, %374 : vector<8x32xf32>
    %377 = arith.divf %375, %376 : vector<8x32xf32>
    %378 = vector.extract_strided_slice %363 {offsets = [0, 64], sizes = [8, 32], strides = [1, 1]} : vector<8x96xf32> to vector<8x32xf32>
    %379 = arith.addf %378, %50 : vector<8x32xf32>
    %380 = arith.mulf %370, %379 : vector<8x32xf32>
    %381 = arith.addf %362, %380 : vector<8x32xf32>
    %382 = math.tanh %381 : vector<8x32xf32>
    %cst_66 = arith.constant 1.000000e+00 : f32
    %383 = vector.broadcast %cst_66 : f32 to vector<8x32xf32>
    %384 = arith.subf %383, %377 : vector<8x32xf32>
    %385 = arith.mulf %384, %382 : vector<8x32xf32>
    %386 = arith.mulf %377, %359 : vector<8x32xf32>
    %387 = arith.addf %385, %386 : vector<8x32xf32>
    %388 = vector.extract_strided_slice %42 {offsets = [96, 0], sizes = [8, 32], strides = [1, 1]} : vector<112x32xf32> to vector<8x32xf32>
    %389 = vector.extract_strided_slice %43 {offsets = [96, 0], sizes = [8, 32], strides = [1, 1]} : vector<112x32xf32> to vector<8x32xf32>
    %390 = vector.extract_strided_slice %44 {offsets = [96, 0], sizes = [8, 32], strides = [1, 1]} : vector<112x32xf32> to vector<8x32xf32>
    %cst_67 = arith.constant dense<0.000000e+00> : vector<8x96xf32>
    %391 = tpu.matmul %387, %34, %cst_67 {dimension_numbers = #tpu.dot_dimension_numbers<[1], [0], [0], [1], [0, 0, 1, 1], [], []>} : vector<8x32xf32>, vector<32x96xf32>, vector<8x96xf32> -> vector<8x96xf32>
    %392 = vector.extract_strided_slice %391 {offsets = [0, 0], sizes = [8, 32], strides = [1, 1]} : vector<8x96xf32> to vector<8x32xf32>
    %393 = arith.addf %388, %392 : vector<8x32xf32>
    %394 = arith.negf %393 : vector<8x32xf32>
    %395 = math.exp %394 : vector<8x32xf32>
    %cst_68 = arith.constant 1.000000e+00 : f32
    %396 = vector.broadcast %cst_68 : f32 to vector<8x32xf32>
    %397 = arith.addf %396, %395 : vector<8x32xf32>
    %398 = arith.divf %396, %397 : vector<8x32xf32>
    %399 = vector.extract_strided_slice %391 {offsets = [0, 32], sizes = [8, 32], strides = [1, 1]} : vector<8x96xf32> to vector<8x32xf32>
    %400 = arith.addf %389, %399 : vector<8x32xf32>
    %401 = arith.negf %400 : vector<8x32xf32>
    %402 = math.exp %401 : vector<8x32xf32>
    %cst_69 = arith.constant 1.000000e+00 : f32
    %403 = vector.broadcast %cst_69 : f32 to vector<8x32xf32>
    %404 = arith.addf %403, %402 : vector<8x32xf32>
    %405 = arith.divf %403, %404 : vector<8x32xf32>
    %406 = vector.extract_strided_slice %391 {offsets = [0, 64], sizes = [8, 32], strides = [1, 1]} : vector<8x96xf32> to vector<8x32xf32>
    %407 = arith.addf %406, %50 : vector<8x32xf32>
    %408 = arith.mulf %398, %407 : vector<8x32xf32>
    %409 = arith.addf %390, %408 : vector<8x32xf32>
    %410 = math.tanh %409 : vector<8x32xf32>
    %cst_70 = arith.constant 1.000000e+00 : f32
    %411 = vector.broadcast %cst_70 : f32 to vector<8x32xf32>
    %412 = arith.subf %411, %405 : vector<8x32xf32>
    %413 = arith.mulf %412, %410 : vector<8x32xf32>
    %414 = arith.mulf %405, %387 : vector<8x32xf32>
    %415 = arith.addf %413, %414 : vector<8x32xf32>
    %416 = vector.extract_strided_slice %42 {offsets = [104, 0], sizes = [8, 32], strides = [1, 1]} : vector<112x32xf32> to vector<8x32xf32>
    %417 = vector.extract_strided_slice %43 {offsets = [104, 0], sizes = [8, 32], strides = [1, 1]} : vector<112x32xf32> to vector<8x32xf32>
    %418 = vector.extract_strided_slice %44 {offsets = [104, 0], sizes = [8, 32], strides = [1, 1]} : vector<112x32xf32> to vector<8x32xf32>
    %cst_71 = arith.constant dense<0.000000e+00> : vector<8x96xf32>
    %419 = tpu.matmul %415, %34, %cst_71 {dimension_numbers = #tpu.dot_dimension_numbers<[1], [0], [0], [1], [0, 0, 1, 1], [], []>} : vector<8x32xf32>, vector<32x96xf32>, vector<8x96xf32> -> vector<8x96xf32>
    %420 = vector.extract_strided_slice %419 {offsets = [0, 0], sizes = [8, 32], strides = [1, 1]} : vector<8x96xf32> to vector<8x32xf32>
    %421 = arith.addf %416, %420 : vector<8x32xf32>
    %422 = arith.negf %421 : vector<8x32xf32>
    %423 = math.exp %422 : vector<8x32xf32>
    %cst_72 = arith.constant 1.000000e+00 : f32
    %424 = vector.broadcast %cst_72 : f32 to vector<8x32xf32>
    %425 = arith.addf %424, %423 : vector<8x32xf32>
    %426 = arith.divf %424, %425 : vector<8x32xf32>
    %427 = vector.extract_strided_slice %419 {offsets = [0, 32], sizes = [8, 32], strides = [1, 1]} : vector<8x96xf32> to vector<8x32xf32>
    %428 = arith.addf %417, %427 : vector<8x32xf32>
    %429 = arith.negf %428 : vector<8x32xf32>
    %430 = math.exp %429 : vector<8x32xf32>
    %cst_73 = arith.constant 1.000000e+00 : f32
    %431 = vector.broadcast %cst_73 : f32 to vector<8x32xf32>
    %432 = arith.addf %431, %430 : vector<8x32xf32>
    %433 = arith.divf %431, %432 : vector<8x32xf32>
    %434 = vector.extract_strided_slice %419 {offsets = [0, 64], sizes = [8, 32], strides = [1, 1]} : vector<8x96xf32> to vector<8x32xf32>
    %435 = arith.addf %434, %50 : vector<8x32xf32>
    %436 = arith.mulf %426, %435 : vector<8x32xf32>
    %437 = arith.addf %418, %436 : vector<8x32xf32>
    %438 = math.tanh %437 : vector<8x32xf32>
    %cst_74 = arith.constant 1.000000e+00 : f32
    %439 = vector.broadcast %cst_74 : f32 to vector<8x32xf32>
    %440 = arith.subf %439, %433 : vector<8x32xf32>
    %441 = arith.mulf %440, %438 : vector<8x32xf32>
    %442 = arith.mulf %433, %415 : vector<8x32xf32>
    %443 = arith.addf %441, %442 : vector<8x32xf32>
    %444 = vector.extract_strided_slice %45 {offsets = [0, 0], sizes = [8, 32], strides = [1, 1]} : vector<104x32xf32> to vector<8x32xf32>
    %445 = vector.extract_strided_slice %46 {offsets = [0, 0], sizes = [8, 32], strides = [1, 1]} : vector<104x32xf32> to vector<8x32xf32>
    %446 = vector.extract_strided_slice %47 {offsets = [0, 0], sizes = [8, 32], strides = [1, 1]} : vector<104x32xf32> to vector<8x32xf32>
    %cst_75 = arith.constant dense<0.000000e+00> : vector<8x96xf32>
    %447 = tpu.matmul %443, %34, %cst_75 {dimension_numbers = #tpu.dot_dimension_numbers<[1], [0], [0], [1], [0, 0, 1, 1], [], []>} : vector<8x32xf32>, vector<32x96xf32>, vector<8x96xf32> -> vector<8x96xf32>
    %448 = vector.extract_strided_slice %447 {offsets = [0, 0], sizes = [8, 32], strides = [1, 1]} : vector<8x96xf32> to vector<8x32xf32>
    %449 = arith.addf %444, %448 : vector<8x32xf32>
    %450 = arith.negf %449 : vector<8x32xf32>
    %451 = math.exp %450 : vector<8x32xf32>
    %cst_76 = arith.constant 1.000000e+00 : f32
    %452 = vector.broadcast %cst_76 : f32 to vector<8x32xf32>
    %453 = arith.addf %452, %451 : vector<8x32xf32>
    %454 = arith.divf %452, %453 : vector<8x32xf32>
    %455 = vector.extract_strided_slice %447 {offsets = [0, 32], sizes = [8, 32], strides = [1, 1]} : vector<8x96xf32> to vector<8x32xf32>
    %456 = arith.addf %445, %455 : vector<8x32xf32>
    %457 = arith.negf %456 : vector<8x32xf32>
    %458 = math.exp %457 : vector<8x32xf32>
    %cst_77 = arith.constant 1.000000e+00 : f32
    %459 = vector.broadcast %cst_77 : f32 to vector<8x32xf32>
    %460 = arith.addf %459, %458 : vector<8x32xf32>
    %461 = arith.divf %459, %460 : vector<8x32xf32>
    %462 = vector.extract_strided_slice %447 {offsets = [0, 64], sizes = [8, 32], strides = [1, 1]} : vector<8x96xf32> to vector<8x32xf32>
    %463 = arith.addf %462, %50 : vector<8x32xf32>
    %464 = arith.mulf %454, %463 : vector<8x32xf32>
    %465 = arith.addf %446, %464 : vector<8x32xf32>
    %466 = math.tanh %465 : vector<8x32xf32>
    %cst_78 = arith.constant 1.000000e+00 : f32
    %467 = vector.broadcast %cst_78 : f32 to vector<8x32xf32>
    %468 = arith.subf %467, %461 : vector<8x32xf32>
    %469 = arith.mulf %468, %466 : vector<8x32xf32>
    %470 = arith.mulf %461, %443 : vector<8x32xf32>
    %471 = arith.addf %469, %470 : vector<8x32xf32>
    %472 = vector.extract_strided_slice %45 {offsets = [8, 0], sizes = [8, 32], strides = [1, 1]} : vector<104x32xf32> to vector<8x32xf32>
    %473 = vector.extract_strided_slice %46 {offsets = [8, 0], sizes = [8, 32], strides = [1, 1]} : vector<104x32xf32> to vector<8x32xf32>
    %474 = vector.extract_strided_slice %47 {offsets = [8, 0], sizes = [8, 32], strides = [1, 1]} : vector<104x32xf32> to vector<8x32xf32>
    %cst_79 = arith.constant dense<0.000000e+00> : vector<8x96xf32>
    %475 = tpu.matmul %471, %34, %cst_79 {dimension_numbers = #tpu.dot_dimension_numbers<[1], [0], [0], [1], [0, 0, 1, 1], [], []>} : vector<8x32xf32>, vector<32x96xf32>, vector<8x96xf32> -> vector<8x96xf32>
    %476 = vector.extract_strided_slice %475 {offsets = [0, 0], sizes = [8, 32], strides = [1, 1]} : vector<8x96xf32> to vector<8x32xf32>
    %477 = arith.addf %472, %476 : vector<8x32xf32>
    %478 = arith.negf %477 : vector<8x32xf32>
    %479 = math.exp %478 : vector<8x32xf32>
    %cst_80 = arith.constant 1.000000e+00 : f32
    %480 = vector.broadcast %cst_80 : f32 to vector<8x32xf32>
    %481 = arith.addf %480, %479 : vector<8x32xf32>
    %482 = arith.divf %480, %481 : vector<8x32xf32>
    %483 = vector.extract_strided_slice %475 {offsets = [0, 32], sizes = [8, 32], strides = [1, 1]} : vector<8x96xf32> to vector<8x32xf32>
    %484 = arith.addf %473, %483 : vector<8x32xf32>
    %485 = arith.negf %484 : vector<8x32xf32>
    %486 = math.exp %485 : vector<8x32xf32>
    %cst_81 = arith.constant 1.000000e+00 : f32
    %487 = vector.broadcast %cst_81 : f32 to vector<8x32xf32>
    %488 = arith.addf %487, %486 : vector<8x32xf32>
    %489 = arith.divf %487, %488 : vector<8x32xf32>
    %490 = vector.extract_strided_slice %475 {offsets = [0, 64], sizes = [8, 32], strides = [1, 1]} : vector<8x96xf32> to vector<8x32xf32>
    %491 = arith.addf %490, %50 : vector<8x32xf32>
    %492 = arith.mulf %482, %491 : vector<8x32xf32>
    %493 = arith.addf %474, %492 : vector<8x32xf32>
    %494 = math.tanh %493 : vector<8x32xf32>
    %cst_82 = arith.constant 1.000000e+00 : f32
    %495 = vector.broadcast %cst_82 : f32 to vector<8x32xf32>
    %496 = arith.subf %495, %489 : vector<8x32xf32>
    %497 = arith.mulf %496, %494 : vector<8x32xf32>
    %498 = arith.mulf %489, %471 : vector<8x32xf32>
    %499 = arith.addf %497, %498 : vector<8x32xf32>
    %500 = vector.extract_strided_slice %45 {offsets = [16, 0], sizes = [8, 32], strides = [1, 1]} : vector<104x32xf32> to vector<8x32xf32>
    %501 = vector.extract_strided_slice %46 {offsets = [16, 0], sizes = [8, 32], strides = [1, 1]} : vector<104x32xf32> to vector<8x32xf32>
    %502 = vector.extract_strided_slice %47 {offsets = [16, 0], sizes = [8, 32], strides = [1, 1]} : vector<104x32xf32> to vector<8x32xf32>
    %cst_83 = arith.constant dense<0.000000e+00> : vector<8x96xf32>
    %503 = tpu.matmul %499, %34, %cst_83 {dimension_numbers = #tpu.dot_dimension_numbers<[1], [0], [0], [1], [0, 0, 1, 1], [], []>} : vector<8x32xf32>, vector<32x96xf32>, vector<8x96xf32> -> vector<8x96xf32>
    %504 = vector.extract_strided_slice %503 {offsets = [0, 0], sizes = [8, 32], strides = [1, 1]} : vector<8x96xf32> to vector<8x32xf32>
    %505 = arith.addf %500, %504 : vector<8x32xf32>
    %506 = arith.negf %505 : vector<8x32xf32>
    %507 = math.exp %506 : vector<8x32xf32>
    %cst_84 = arith.constant 1.000000e+00 : f32
    %508 = vector.broadcast %cst_84 : f32 to vector<8x32xf32>
    %509 = arith.addf %508, %507 : vector<8x32xf32>
    %510 = arith.divf %508, %509 : vector<8x32xf32>
    %511 = vector.extract_strided_slice %503 {offsets = [0, 32], sizes = [8, 32], strides = [1, 1]} : vector<8x96xf32> to vector<8x32xf32>
    %512 = arith.addf %501, %511 : vector<8x32xf32>
    %513 = arith.negf %512 : vector<8x32xf32>
    %514 = math.exp %513 : vector<8x32xf32>
    %cst_85 = arith.constant 1.000000e+00 : f32
    %515 = vector.broadcast %cst_85 : f32 to vector<8x32xf32>
    %516 = arith.addf %515, %514 : vector<8x32xf32>
    %517 = arith.divf %515, %516 : vector<8x32xf32>
    %518 = vector.extract_strided_slice %503 {offsets = [0, 64], sizes = [8, 32], strides = [1, 1]} : vector<8x96xf32> to vector<8x32xf32>
    %519 = arith.addf %518, %50 : vector<8x32xf32>
    %520 = arith.mulf %510, %519 : vector<8x32xf32>
    %521 = arith.addf %502, %520 : vector<8x32xf32>
    %522 = math.tanh %521 : vector<8x32xf32>
    %cst_86 = arith.constant 1.000000e+00 : f32
    %523 = vector.broadcast %cst_86 : f32 to vector<8x32xf32>
    %524 = arith.subf %523, %517 : vector<8x32xf32>
    %525 = arith.mulf %524, %522 : vector<8x32xf32>
    %526 = arith.mulf %517, %499 : vector<8x32xf32>
    %527 = arith.addf %525, %526 : vector<8x32xf32>
    %528 = vector.extract_strided_slice %45 {offsets = [24, 0], sizes = [8, 32], strides = [1, 1]} : vector<104x32xf32> to vector<8x32xf32>
    %529 = vector.extract_strided_slice %46 {offsets = [24, 0], sizes = [8, 32], strides = [1, 1]} : vector<104x32xf32> to vector<8x32xf32>
    %530 = vector.extract_strided_slice %47 {offsets = [24, 0], sizes = [8, 32], strides = [1, 1]} : vector<104x32xf32> to vector<8x32xf32>
    %cst_87 = arith.constant dense<0.000000e+00> : vector<8x96xf32>
    %531 = tpu.matmul %527, %34, %cst_87 {dimension_numbers = #tpu.dot_dimension_numbers<[1], [0], [0], [1], [0, 0, 1, 1], [], []>} : vector<8x32xf32>, vector<32x96xf32>, vector<8x96xf32> -> vector<8x96xf32>
    %532 = vector.extract_strided_slice %531 {offsets = [0, 0], sizes = [8, 32], strides = [1, 1]} : vector<8x96xf32> to vector<8x32xf32>
    %533 = arith.addf %528, %532 : vector<8x32xf32>
    %534 = arith.negf %533 : vector<8x32xf32>
    %535 = math.exp %534 : vector<8x32xf32>
    %cst_88 = arith.constant 1.000000e+00 : f32
    %536 = vector.broadcast %cst_88 : f32 to vector<8x32xf32>
    %537 = arith.addf %536, %535 : vector<8x32xf32>
    %538 = arith.divf %536, %537 : vector<8x32xf32>
    %539 = vector.extract_strided_slice %531 {offsets = [0, 32], sizes = [8, 32], strides = [1, 1]} : vector<8x96xf32> to vector<8x32xf32>
    %540 = arith.addf %529, %539 : vector<8x32xf32>
    %541 = arith.negf %540 : vector<8x32xf32>
    %542 = math.exp %541 : vector<8x32xf32>
    %cst_89 = arith.constant 1.000000e+00 : f32
    %543 = vector.broadcast %cst_89 : f32 to vector<8x32xf32>
    %544 = arith.addf %543, %542 : vector<8x32xf32>
    %545 = arith.divf %543, %544 : vector<8x32xf32>
    %546 = vector.extract_strided_slice %531 {offsets = [0, 64], sizes = [8, 32], strides = [1, 1]} : vector<8x96xf32> to vector<8x32xf32>
    %547 = arith.addf %546, %50 : vector<8x32xf32>
    %548 = arith.mulf %538, %547 : vector<8x32xf32>
    %549 = arith.addf %530, %548 : vector<8x32xf32>
    %550 = math.tanh %549 : vector<8x32xf32>
    %cst_90 = arith.constant 1.000000e+00 : f32
    %551 = vector.broadcast %cst_90 : f32 to vector<8x32xf32>
    %552 = arith.subf %551, %545 : vector<8x32xf32>
    %553 = arith.mulf %552, %550 : vector<8x32xf32>
    %554 = arith.mulf %545, %527 : vector<8x32xf32>
    %555 = arith.addf %553, %554 : vector<8x32xf32>
    %556 = vector.extract_strided_slice %45 {offsets = [32, 0], sizes = [8, 32], strides = [1, 1]} : vector<104x32xf32> to vector<8x32xf32>
    %557 = vector.extract_strided_slice %46 {offsets = [32, 0], sizes = [8, 32], strides = [1, 1]} : vector<104x32xf32> to vector<8x32xf32>
    %558 = vector.extract_strided_slice %47 {offsets = [32, 0], sizes = [8, 32], strides = [1, 1]} : vector<104x32xf32> to vector<8x32xf32>
    %cst_91 = arith.constant dense<0.000000e+00> : vector<8x96xf32>
    %559 = tpu.matmul %555, %34, %cst_91 {dimension_numbers = #tpu.dot_dimension_numbers<[1], [0], [0], [1], [0, 0, 1, 1], [], []>} : vector<8x32xf32>, vector<32x96xf32>, vector<8x96xf32> -> vector<8x96xf32>
    %560 = vector.extract_strided_slice %559 {offsets = [0, 0], sizes = [8, 32], strides = [1, 1]} : vector<8x96xf32> to vector<8x32xf32>
    %561 = arith.addf %556, %560 : vector<8x32xf32>
    %562 = arith.negf %561 : vector<8x32xf32>
    %563 = math.exp %562 : vector<8x32xf32>
    %cst_92 = arith.constant 1.000000e+00 : f32
    %564 = vector.broadcast %cst_92 : f32 to vector<8x32xf32>
    %565 = arith.addf %564, %563 : vector<8x32xf32>
    %566 = arith.divf %564, %565 : vector<8x32xf32>
    %567 = vector.extract_strided_slice %559 {offsets = [0, 32], sizes = [8, 32], strides = [1, 1]} : vector<8x96xf32> to vector<8x32xf32>
    %568 = arith.addf %557, %567 : vector<8x32xf32>
    %569 = arith.negf %568 : vector<8x32xf32>
    %570 = math.exp %569 : vector<8x32xf32>
    %cst_93 = arith.constant 1.000000e+00 : f32
    %571 = vector.broadcast %cst_93 : f32 to vector<8x32xf32>
    %572 = arith.addf %571, %570 : vector<8x32xf32>
    %573 = arith.divf %571, %572 : vector<8x32xf32>
    %574 = vector.extract_strided_slice %559 {offsets = [0, 64], sizes = [8, 32], strides = [1, 1]} : vector<8x96xf32> to vector<8x32xf32>
    %575 = arith.addf %574, %50 : vector<8x32xf32>
    %576 = arith.mulf %566, %575 : vector<8x32xf32>
    %577 = arith.addf %558, %576 : vector<8x32xf32>
    %578 = math.tanh %577 : vector<8x32xf32>
    %cst_94 = arith.constant 1.000000e+00 : f32
    %579 = vector.broadcast %cst_94 : f32 to vector<8x32xf32>
    %580 = arith.subf %579, %573 : vector<8x32xf32>
    %581 = arith.mulf %580, %578 : vector<8x32xf32>
    %582 = arith.mulf %573, %555 : vector<8x32xf32>
    %583 = arith.addf %581, %582 : vector<8x32xf32>
    %584 = vector.extract_strided_slice %45 {offsets = [40, 0], sizes = [8, 32], strides = [1, 1]} : vector<104x32xf32> to vector<8x32xf32>
    %585 = vector.extract_strided_slice %46 {offsets = [40, 0], sizes = [8, 32], strides = [1, 1]} : vector<104x32xf32> to vector<8x32xf32>
    %586 = vector.extract_strided_slice %47 {offsets = [40, 0], sizes = [8, 32], strides = [1, 1]} : vector<104x32xf32> to vector<8x32xf32>
    %cst_95 = arith.constant dense<0.000000e+00> : vector<8x96xf32>
    %587 = tpu.matmul %583, %34, %cst_95 {dimension_numbers = #tpu.dot_dimension_numbers<[1], [0], [0], [1], [0, 0, 1, 1], [], []>} : vector<8x32xf32>, vector<32x96xf32>, vector<8x96xf32> -> vector<8x96xf32>
    %588 = vector.extract_strided_slice %587 {offsets = [0, 0], sizes = [8, 32], strides = [1, 1]} : vector<8x96xf32> to vector<8x32xf32>
    %589 = arith.addf %584, %588 : vector<8x32xf32>
    %590 = arith.negf %589 : vector<8x32xf32>
    %591 = math.exp %590 : vector<8x32xf32>
    %cst_96 = arith.constant 1.000000e+00 : f32
    %592 = vector.broadcast %cst_96 : f32 to vector<8x32xf32>
    %593 = arith.addf %592, %591 : vector<8x32xf32>
    %594 = arith.divf %592, %593 : vector<8x32xf32>
    %595 = vector.extract_strided_slice %587 {offsets = [0, 32], sizes = [8, 32], strides = [1, 1]} : vector<8x96xf32> to vector<8x32xf32>
    %596 = arith.addf %585, %595 : vector<8x32xf32>
    %597 = arith.negf %596 : vector<8x32xf32>
    %598 = math.exp %597 : vector<8x32xf32>
    %cst_97 = arith.constant 1.000000e+00 : f32
    %599 = vector.broadcast %cst_97 : f32 to vector<8x32xf32>
    %600 = arith.addf %599, %598 : vector<8x32xf32>
    %601 = arith.divf %599, %600 : vector<8x32xf32>
    %602 = vector.extract_strided_slice %587 {offsets = [0, 64], sizes = [8, 32], strides = [1, 1]} : vector<8x96xf32> to vector<8x32xf32>
    %603 = arith.addf %602, %50 : vector<8x32xf32>
    %604 = arith.mulf %594, %603 : vector<8x32xf32>
    %605 = arith.addf %586, %604 : vector<8x32xf32>
    %606 = math.tanh %605 : vector<8x32xf32>
    %cst_98 = arith.constant 1.000000e+00 : f32
    %607 = vector.broadcast %cst_98 : f32 to vector<8x32xf32>
    %608 = arith.subf %607, %601 : vector<8x32xf32>
    %609 = arith.mulf %608, %606 : vector<8x32xf32>
    %610 = arith.mulf %601, %583 : vector<8x32xf32>
    %611 = arith.addf %609, %610 : vector<8x32xf32>
    %612 = vector.extract_strided_slice %45 {offsets = [48, 0], sizes = [8, 32], strides = [1, 1]} : vector<104x32xf32> to vector<8x32xf32>
    %613 = vector.extract_strided_slice %46 {offsets = [48, 0], sizes = [8, 32], strides = [1, 1]} : vector<104x32xf32> to vector<8x32xf32>
    %614 = vector.extract_strided_slice %47 {offsets = [48, 0], sizes = [8, 32], strides = [1, 1]} : vector<104x32xf32> to vector<8x32xf32>
    %cst_99 = arith.constant dense<0.000000e+00> : vector<8x96xf32>
    %615 = tpu.matmul %611, %34, %cst_99 {dimension_numbers = #tpu.dot_dimension_numbers<[1], [0], [0], [1], [0, 0, 1, 1], [], []>} : vector<8x32xf32>, vector<32x96xf32>, vector<8x96xf32> -> vector<8x96xf32>
    %616 = vector.extract_strided_slice %615 {offsets = [0, 0], sizes = [8, 32], strides = [1, 1]} : vector<8x96xf32> to vector<8x32xf32>
    %617 = arith.addf %612, %616 : vector<8x32xf32>
    %618 = arith.negf %617 : vector<8x32xf32>
    %619 = math.exp %618 : vector<8x32xf32>
    %cst_100 = arith.constant 1.000000e+00 : f32
    %620 = vector.broadcast %cst_100 : f32 to vector<8x32xf32>
    %621 = arith.addf %620, %619 : vector<8x32xf32>
    %622 = arith.divf %620, %621 : vector<8x32xf32>
    %623 = vector.extract_strided_slice %615 {offsets = [0, 32], sizes = [8, 32], strides = [1, 1]} : vector<8x96xf32> to vector<8x32xf32>
    %624 = arith.addf %613, %623 : vector<8x32xf32>
    %625 = arith.negf %624 : vector<8x32xf32>
    %626 = math.exp %625 : vector<8x32xf32>
    %cst_101 = arith.constant 1.000000e+00 : f32
    %627 = vector.broadcast %cst_101 : f32 to vector<8x32xf32>
    %628 = arith.addf %627, %626 : vector<8x32xf32>
    %629 = arith.divf %627, %628 : vector<8x32xf32>
    %630 = vector.extract_strided_slice %615 {offsets = [0, 64], sizes = [8, 32], strides = [1, 1]} : vector<8x96xf32> to vector<8x32xf32>
    %631 = arith.addf %630, %50 : vector<8x32xf32>
    %632 = arith.mulf %622, %631 : vector<8x32xf32>
    %633 = arith.addf %614, %632 : vector<8x32xf32>
    %634 = math.tanh %633 : vector<8x32xf32>
    %cst_102 = arith.constant 1.000000e+00 : f32
    %635 = vector.broadcast %cst_102 : f32 to vector<8x32xf32>
    %636 = arith.subf %635, %629 : vector<8x32xf32>
    %637 = arith.mulf %636, %634 : vector<8x32xf32>
    %638 = arith.mulf %629, %611 : vector<8x32xf32>
    %639 = arith.addf %637, %638 : vector<8x32xf32>
    %640 = vector.extract_strided_slice %45 {offsets = [56, 0], sizes = [8, 32], strides = [1, 1]} : vector<104x32xf32> to vector<8x32xf32>
    %641 = vector.extract_strided_slice %46 {offsets = [56, 0], sizes = [8, 32], strides = [1, 1]} : vector<104x32xf32> to vector<8x32xf32>
    %642 = vector.extract_strided_slice %47 {offsets = [56, 0], sizes = [8, 32], strides = [1, 1]} : vector<104x32xf32> to vector<8x32xf32>
    %cst_103 = arith.constant dense<0.000000e+00> : vector<8x96xf32>
    %643 = tpu.matmul %639, %34, %cst_103 {dimension_numbers = #tpu.dot_dimension_numbers<[1], [0], [0], [1], [0, 0, 1, 1], [], []>} : vector<8x32xf32>, vector<32x96xf32>, vector<8x96xf32> -> vector<8x96xf32>
    %644 = vector.extract_strided_slice %643 {offsets = [0, 0], sizes = [8, 32], strides = [1, 1]} : vector<8x96xf32> to vector<8x32xf32>
    %645 = arith.addf %640, %644 : vector<8x32xf32>
    %646 = arith.negf %645 : vector<8x32xf32>
    %647 = math.exp %646 : vector<8x32xf32>
    %cst_104 = arith.constant 1.000000e+00 : f32
    %648 = vector.broadcast %cst_104 : f32 to vector<8x32xf32>
    %649 = arith.addf %648, %647 : vector<8x32xf32>
    %650 = arith.divf %648, %649 : vector<8x32xf32>
    %651 = vector.extract_strided_slice %643 {offsets = [0, 32], sizes = [8, 32], strides = [1, 1]} : vector<8x96xf32> to vector<8x32xf32>
    %652 = arith.addf %641, %651 : vector<8x32xf32>
    %653 = arith.negf %652 : vector<8x32xf32>
    %654 = math.exp %653 : vector<8x32xf32>
    %cst_105 = arith.constant 1.000000e+00 : f32
    %655 = vector.broadcast %cst_105 : f32 to vector<8x32xf32>
    %656 = arith.addf %655, %654 : vector<8x32xf32>
    %657 = arith.divf %655, %656 : vector<8x32xf32>
    %658 = vector.extract_strided_slice %643 {offsets = [0, 64], sizes = [8, 32], strides = [1, 1]} : vector<8x96xf32> to vector<8x32xf32>
    %659 = arith.addf %658, %50 : vector<8x32xf32>
    %660 = arith.mulf %650, %659 : vector<8x32xf32>
    %661 = arith.addf %642, %660 : vector<8x32xf32>
    %662 = math.tanh %661 : vector<8x32xf32>
    %cst_106 = arith.constant 1.000000e+00 : f32
    %663 = vector.broadcast %cst_106 : f32 to vector<8x32xf32>
    %664 = arith.subf %663, %657 : vector<8x32xf32>
    %665 = arith.mulf %664, %662 : vector<8x32xf32>
    %666 = arith.mulf %657, %639 : vector<8x32xf32>
    %667 = arith.addf %665, %666 : vector<8x32xf32>
    %668 = vector.extract_strided_slice %45 {offsets = [64, 0], sizes = [8, 32], strides = [1, 1]} : vector<104x32xf32> to vector<8x32xf32>
    %669 = vector.extract_strided_slice %46 {offsets = [64, 0], sizes = [8, 32], strides = [1, 1]} : vector<104x32xf32> to vector<8x32xf32>
    %670 = vector.extract_strided_slice %47 {offsets = [64, 0], sizes = [8, 32], strides = [1, 1]} : vector<104x32xf32> to vector<8x32xf32>
    %cst_107 = arith.constant dense<0.000000e+00> : vector<8x96xf32>
    %671 = tpu.matmul %667, %34, %cst_107 {dimension_numbers = #tpu.dot_dimension_numbers<[1], [0], [0], [1], [0, 0, 1, 1], [], []>} : vector<8x32xf32>, vector<32x96xf32>, vector<8x96xf32> -> vector<8x96xf32>
    %672 = vector.extract_strided_slice %671 {offsets = [0, 0], sizes = [8, 32], strides = [1, 1]} : vector<8x96xf32> to vector<8x32xf32>
    %673 = arith.addf %668, %672 : vector<8x32xf32>
    %674 = arith.negf %673 : vector<8x32xf32>
    %675 = math.exp %674 : vector<8x32xf32>
    %cst_108 = arith.constant 1.000000e+00 : f32
    %676 = vector.broadcast %cst_108 : f32 to vector<8x32xf32>
    %677 = arith.addf %676, %675 : vector<8x32xf32>
    %678 = arith.divf %676, %677 : vector<8x32xf32>
    %679 = vector.extract_strided_slice %671 {offsets = [0, 32], sizes = [8, 32], strides = [1, 1]} : vector<8x96xf32> to vector<8x32xf32>
    %680 = arith.addf %669, %679 : vector<8x32xf32>
    %681 = arith.negf %680 : vector<8x32xf32>
    %682 = math.exp %681 : vector<8x32xf32>
    %cst_109 = arith.constant 1.000000e+00 : f32
    %683 = vector.broadcast %cst_109 : f32 to vector<8x32xf32>
    %684 = arith.addf %683, %682 : vector<8x32xf32>
    %685 = arith.divf %683, %684 : vector<8x32xf32>
    %686 = vector.extract_strided_slice %671 {offsets = [0, 64], sizes = [8, 32], strides = [1, 1]} : vector<8x96xf32> to vector<8x32xf32>
    %687 = arith.addf %686, %50 : vector<8x32xf32>
    %688 = arith.mulf %678, %687 : vector<8x32xf32>
    %689 = arith.addf %670, %688 : vector<8x32xf32>
    %690 = math.tanh %689 : vector<8x32xf32>
    %cst_110 = arith.constant 1.000000e+00 : f32
    %691 = vector.broadcast %cst_110 : f32 to vector<8x32xf32>
    %692 = arith.subf %691, %685 : vector<8x32xf32>
    %693 = arith.mulf %692, %690 : vector<8x32xf32>
    %694 = arith.mulf %685, %667 : vector<8x32xf32>
    %695 = arith.addf %693, %694 : vector<8x32xf32>
    %696 = vector.extract_strided_slice %45 {offsets = [72, 0], sizes = [8, 32], strides = [1, 1]} : vector<104x32xf32> to vector<8x32xf32>
    %697 = vector.extract_strided_slice %46 {offsets = [72, 0], sizes = [8, 32], strides = [1, 1]} : vector<104x32xf32> to vector<8x32xf32>
    %698 = vector.extract_strided_slice %47 {offsets = [72, 0], sizes = [8, 32], strides = [1, 1]} : vector<104x32xf32> to vector<8x32xf32>
    %cst_111 = arith.constant dense<0.000000e+00> : vector<8x96xf32>
    %699 = tpu.matmul %695, %34, %cst_111 {dimension_numbers = #tpu.dot_dimension_numbers<[1], [0], [0], [1], [0, 0, 1, 1], [], []>} : vector<8x32xf32>, vector<32x96xf32>, vector<8x96xf32> -> vector<8x96xf32>
    %700 = vector.extract_strided_slice %699 {offsets = [0, 0], sizes = [8, 32], strides = [1, 1]} : vector<8x96xf32> to vector<8x32xf32>
    %701 = arith.addf %696, %700 : vector<8x32xf32>
    %702 = arith.negf %701 : vector<8x32xf32>
    %703 = math.exp %702 : vector<8x32xf32>
    %cst_112 = arith.constant 1.000000e+00 : f32
    %704 = vector.broadcast %cst_112 : f32 to vector<8x32xf32>
    %705 = arith.addf %704, %703 : vector<8x32xf32>
    %706 = arith.divf %704, %705 : vector<8x32xf32>
    %707 = vector.extract_strided_slice %699 {offsets = [0, 32], sizes = [8, 32], strides = [1, 1]} : vector<8x96xf32> to vector<8x32xf32>
    %708 = arith.addf %697, %707 : vector<8x32xf32>
    %709 = arith.negf %708 : vector<8x32xf32>
    %710 = math.exp %709 : vector<8x32xf32>
    %cst_113 = arith.constant 1.000000e+00 : f32
    %711 = vector.broadcast %cst_113 : f32 to vector<8x32xf32>
    %712 = arith.addf %711, %710 : vector<8x32xf32>
    %713 = arith.divf %711, %712 : vector<8x32xf32>
    %714 = vector.extract_strided_slice %699 {offsets = [0, 64], sizes = [8, 32], strides = [1, 1]} : vector<8x96xf32> to vector<8x32xf32>
    %715 = arith.addf %714, %50 : vector<8x32xf32>
    %716 = arith.mulf %706, %715 : vector<8x32xf32>
    %717 = arith.addf %698, %716 : vector<8x32xf32>
    %718 = math.tanh %717 : vector<8x32xf32>
    %cst_114 = arith.constant 1.000000e+00 : f32
    %719 = vector.broadcast %cst_114 : f32 to vector<8x32xf32>
    %720 = arith.subf %719, %713 : vector<8x32xf32>
    %721 = arith.mulf %720, %718 : vector<8x32xf32>
    %722 = arith.mulf %713, %695 : vector<8x32xf32>
    %723 = arith.addf %721, %722 : vector<8x32xf32>
    %724 = vector.extract_strided_slice %45 {offsets = [80, 0], sizes = [8, 32], strides = [1, 1]} : vector<104x32xf32> to vector<8x32xf32>
    %725 = vector.extract_strided_slice %46 {offsets = [80, 0], sizes = [8, 32], strides = [1, 1]} : vector<104x32xf32> to vector<8x32xf32>
    %726 = vector.extract_strided_slice %47 {offsets = [80, 0], sizes = [8, 32], strides = [1, 1]} : vector<104x32xf32> to vector<8x32xf32>
    %cst_115 = arith.constant dense<0.000000e+00> : vector<8x96xf32>
    %727 = tpu.matmul %723, %34, %cst_115 {dimension_numbers = #tpu.dot_dimension_numbers<[1], [0], [0], [1], [0, 0, 1, 1], [], []>} : vector<8x32xf32>, vector<32x96xf32>, vector<8x96xf32> -> vector<8x96xf32>
    %728 = vector.extract_strided_slice %727 {offsets = [0, 0], sizes = [8, 32], strides = [1, 1]} : vector<8x96xf32> to vector<8x32xf32>
    %729 = arith.addf %724, %728 : vector<8x32xf32>
    %730 = arith.negf %729 : vector<8x32xf32>
    %731 = math.exp %730 : vector<8x32xf32>
    %cst_116 = arith.constant 1.000000e+00 : f32
    %732 = vector.broadcast %cst_116 : f32 to vector<8x32xf32>
    %733 = arith.addf %732, %731 : vector<8x32xf32>
    %734 = arith.divf %732, %733 : vector<8x32xf32>
    %735 = vector.extract_strided_slice %727 {offsets = [0, 32], sizes = [8, 32], strides = [1, 1]} : vector<8x96xf32> to vector<8x32xf32>
    %736 = arith.addf %725, %735 : vector<8x32xf32>
    %737 = arith.negf %736 : vector<8x32xf32>
    %738 = math.exp %737 : vector<8x32xf32>
    %cst_117 = arith.constant 1.000000e+00 : f32
    %739 = vector.broadcast %cst_117 : f32 to vector<8x32xf32>
    %740 = arith.addf %739, %738 : vector<8x32xf32>
    %741 = arith.divf %739, %740 : vector<8x32xf32>
    %742 = vector.extract_strided_slice %727 {offsets = [0, 64], sizes = [8, 32], strides = [1, 1]} : vector<8x96xf32> to vector<8x32xf32>
    %743 = arith.addf %742, %50 : vector<8x32xf32>
    %744 = arith.mulf %734, %743 : vector<8x32xf32>
    %745 = arith.addf %726, %744 : vector<8x32xf32>
    %746 = math.tanh %745 : vector<8x32xf32>
    %cst_118 = arith.constant 1.000000e+00 : f32
    %747 = vector.broadcast %cst_118 : f32 to vector<8x32xf32>
    %748 = arith.subf %747, %741 : vector<8x32xf32>
    %749 = arith.mulf %748, %746 : vector<8x32xf32>
    %750 = arith.mulf %741, %723 : vector<8x32xf32>
    %751 = arith.addf %749, %750 : vector<8x32xf32>
    %752 = vector.extract_strided_slice %45 {offsets = [88, 0], sizes = [8, 32], strides = [1, 1]} : vector<104x32xf32> to vector<8x32xf32>
    %753 = vector.extract_strided_slice %46 {offsets = [88, 0], sizes = [8, 32], strides = [1, 1]} : vector<104x32xf32> to vector<8x32xf32>
    %754 = vector.extract_strided_slice %47 {offsets = [88, 0], sizes = [8, 32], strides = [1, 1]} : vector<104x32xf32> to vector<8x32xf32>
    %cst_119 = arith.constant dense<0.000000e+00> : vector<8x96xf32>
    %755 = tpu.matmul %751, %34, %cst_119 {dimension_numbers = #tpu.dot_dimension_numbers<[1], [0], [0], [1], [0, 0, 1, 1], [], []>} : vector<8x32xf32>, vector<32x96xf32>, vector<8x96xf32> -> vector<8x96xf32>
    %756 = vector.extract_strided_slice %755 {offsets = [0, 0], sizes = [8, 32], strides = [1, 1]} : vector<8x96xf32> to vector<8x32xf32>
    %757 = arith.addf %752, %756 : vector<8x32xf32>
    %758 = arith.negf %757 : vector<8x32xf32>
    %759 = math.exp %758 : vector<8x32xf32>
    %cst_120 = arith.constant 1.000000e+00 : f32
    %760 = vector.broadcast %cst_120 : f32 to vector<8x32xf32>
    %761 = arith.addf %760, %759 : vector<8x32xf32>
    %762 = arith.divf %760, %761 : vector<8x32xf32>
    %763 = vector.extract_strided_slice %755 {offsets = [0, 32], sizes = [8, 32], strides = [1, 1]} : vector<8x96xf32> to vector<8x32xf32>
    %764 = arith.addf %753, %763 : vector<8x32xf32>
    %765 = arith.negf %764 : vector<8x32xf32>
    %766 = math.exp %765 : vector<8x32xf32>
    %cst_121 = arith.constant 1.000000e+00 : f32
    %767 = vector.broadcast %cst_121 : f32 to vector<8x32xf32>
    %768 = arith.addf %767, %766 : vector<8x32xf32>
    %769 = arith.divf %767, %768 : vector<8x32xf32>
    %770 = vector.extract_strided_slice %755 {offsets = [0, 64], sizes = [8, 32], strides = [1, 1]} : vector<8x96xf32> to vector<8x32xf32>
    %771 = arith.addf %770, %50 : vector<8x32xf32>
    %772 = arith.mulf %762, %771 : vector<8x32xf32>
    %773 = arith.addf %754, %772 : vector<8x32xf32>
    %774 = math.tanh %773 : vector<8x32xf32>
    %cst_122 = arith.constant 1.000000e+00 : f32
    %775 = vector.broadcast %cst_122 : f32 to vector<8x32xf32>
    %776 = arith.subf %775, %769 : vector<8x32xf32>
    %777 = arith.mulf %776, %774 : vector<8x32xf32>
    %778 = arith.mulf %769, %751 : vector<8x32xf32>
    %779 = arith.addf %777, %778 : vector<8x32xf32>
    %780 = vector.extract_strided_slice %45 {offsets = [96, 0], sizes = [8, 32], strides = [1, 1]} : vector<104x32xf32> to vector<8x32xf32>
    %781 = vector.extract_strided_slice %46 {offsets = [96, 0], sizes = [8, 32], strides = [1, 1]} : vector<104x32xf32> to vector<8x32xf32>
    %782 = vector.extract_strided_slice %47 {offsets = [96, 0], sizes = [8, 32], strides = [1, 1]} : vector<104x32xf32> to vector<8x32xf32>
    %cst_123 = arith.constant dense<0.000000e+00> : vector<8x96xf32>
    %783 = tpu.matmul %779, %34, %cst_123 {dimension_numbers = #tpu.dot_dimension_numbers<[1], [0], [0], [1], [0, 0, 1, 1], [], []>} : vector<8x32xf32>, vector<32x96xf32>, vector<8x96xf32> -> vector<8x96xf32>
    %784 = vector.extract_strided_slice %783 {offsets = [0, 0], sizes = [8, 32], strides = [1, 1]} : vector<8x96xf32> to vector<8x32xf32>
    %785 = arith.addf %780, %784 : vector<8x32xf32>
    %786 = arith.negf %785 : vector<8x32xf32>
    %787 = math.exp %786 : vector<8x32xf32>
    %cst_124 = arith.constant 1.000000e+00 : f32
    %788 = vector.broadcast %cst_124 : f32 to vector<8x32xf32>
    %789 = arith.addf %788, %787 : vector<8x32xf32>
    %790 = arith.divf %788, %789 : vector<8x32xf32>
    %791 = vector.extract_strided_slice %783 {offsets = [0, 32], sizes = [8, 32], strides = [1, 1]} : vector<8x96xf32> to vector<8x32xf32>
    %792 = arith.addf %781, %791 : vector<8x32xf32>
    %793 = arith.negf %792 : vector<8x32xf32>
    %794 = math.exp %793 : vector<8x32xf32>
    %cst_125 = arith.constant 1.000000e+00 : f32
    %795 = vector.broadcast %cst_125 : f32 to vector<8x32xf32>
    %796 = arith.addf %795, %794 : vector<8x32xf32>
    %797 = arith.divf %795, %796 : vector<8x32xf32>
    %798 = vector.extract_strided_slice %783 {offsets = [0, 64], sizes = [8, 32], strides = [1, 1]} : vector<8x96xf32> to vector<8x32xf32>
    %799 = arith.addf %798, %50 : vector<8x32xf32>
    %800 = arith.mulf %790, %799 : vector<8x32xf32>
    %801 = arith.addf %782, %800 : vector<8x32xf32>
    %802 = math.tanh %801 : vector<8x32xf32>
    %cst_126 = arith.constant 1.000000e+00 : f32
    %803 = vector.broadcast %cst_126 : f32 to vector<8x32xf32>
    %804 = arith.subf %803, %797 : vector<8x32xf32>
    %805 = arith.mulf %804, %802 : vector<8x32xf32>
    %806 = arith.mulf %797, %779 : vector<8x32xf32>
    %807 = arith.addf %805, %806 : vector<8x32xf32>
    %808 = vector.extract_strided_slice %9 {offsets = [3, 0], sizes = [1, 32], strides = [1, 1]} : vector<8x32xf32> to vector<1x32xf32>
    %809 = vector.extract_strided_slice %9 {offsets = [4, 0], sizes = [1, 1], strides = [1, 1]} : vector<8x32xf32> to vector<1x1xf32>
    %810 = vector.broadcast %808 : vector<1x32xf32> to vector<8x32xf32>
    %811 = arith.mulf %807, %810 : vector<8x32xf32>
    %cst_127 = arith.constant dense<0.000000e+00> : vector<8xf32>
    %812 = vector.multi_reduction <add>, %811, %cst_127 [1] : vector<8x32xf32> to vector<8xf32>
    %813 = vector.shape_cast %812 : vector<8xf32> to vector<8x1xf32>
    %814 = vector.broadcast %809 : vector<1x1xf32> to vector<8x1xf32>
    %815 = arith.addf %813, %814 : vector<8x1xf32>
    %816 = arith.negf %815 : vector<8x1xf32>
    %817 = math.exp %816 : vector<8x1xf32>
    %cst_128 = arith.constant 1.000000e+00 : f32
    %818 = vector.broadcast %cst_128 : f32 to vector<8x1xf32>
    %819 = arith.addf %818, %817 : vector<8x1xf32>
    %820 = arith.divf %818, %819 : vector<8x1xf32>
    %c0_129 = arith.constant 0 : index
    %c0_130 = arith.constant 0 : index
    %821 = vector.load %arg3[%c0_129, %c0_130] : memref<8x1xf32, #tpu.memory_space<vmem>>, vector<8x1xf32>
    tpu.vector_store %arg3[%c0_129, %c0_130], %820 {strides = array<i32>} : memref<8x1xf32, #tpu.memory_space<vmem>>, vector<8x1xf32>,
    return
  }
}

</mosaic_0001>

<llo_original>
// kernel: crnn_forward.1
$region0: #{crnn_forward.1}
  #allocation0 [shape = 'u32[]', space=smem, size = 0x4, offset = 0x4, fixed_abs, tag = 'smem constant byte address 0x4 - core index']
  #allocation1 [shape = 'u32[72,128]{1,0:T(1,128)}', space=vmem, size = 0x9000, scoped, tag = 'internal scratch']
  %s0 = inlined_call_operand.vmem [shape: s32[128,1], index: 0, kind: input, shape index: {}]
  %s1 = inlined_call_operand.vmem [shape: f32[288,32], index: 1, kind: input, shape index: {}]
  %s2 = inlined_call_operand.vmem [shape: f32[72,96], index: 2, kind: input, shape index: {}]
  %s3 = inlined_call_operand.vmem [shape: f32[8,1], index: 3, kind: output, shape index: {}]
  %s4 = sld [smem:[#allocation0]]
  $region22: #{crnn_forward.1} parent=0
    _
  %s6 = ssub.s32 1, %s4
  %s7 = scalar_select 0, %s6, %s4
  // Predicated region
  $region2: #{crnn_forward.1} parent=0 // pred_check
    _
  $region3: #{crnn_forward.1} parent=0 // pred_check_branch
    %9 = sbr.rel (0) target = $region5
  $region4: #{crnn_forward.1} parent=0 // pred_region
    _
  $region5: #{crnn_forward.1} parent=0 // pred_fallthru
    _
  // Predicated region
  $region6: #{crnn_forward.1} parent=0 // pred_check
    _
  $region7: #{crnn_forward.1} parent=0 // pred_check_branch
    %11 = sbr.rel (0) target = $region9
  $region8: #{crnn_forward.1} parent=0 // pred_region
    _
  $region9: #{crnn_forward.1} parent=0 // pred_fallthru
    _
  // Predicated region
  $region10: #{crnn_forward.1} parent=0 // pred_check
    _
  $region11: #{crnn_forward.1} parent=0 // pred_check_branch
    %13 = sbr.rel (0) target = $region13
  $region12: #{crnn_forward.1} parent=0 // pred_region
    _
  $region13: #{crnn_forward.1} parent=0 // pred_fallthru
    _
  %v14 = vld [vmem:[%s0] sm:$0xff]
  %v15 = vld [vmem:[%s0 + $0x8] sm:$0xff]
  %v16 = vld [vmem:[%s0 + $0x10] sm:$0xff]
  %v17 = vld [vmem:[%s0 + $0x18] sm:$0xff]
  %v18 = vld [vmem:[%s0 + $0x20] sm:$0xff]
  %v19 = vld [vmem:[%s0 + $0x28] sm:$0xff]
  %v20 = vld [vmem:[%s0 + $0x30] sm:$0xff]
  %v21 = vld [vmem:[%s0 + $0x38] sm:$0xff]
  %v22 = vld [vmem:[%s0 + $0x40] sm:$0xff]
  %v23 = vld [vmem:[%s0 + $0x48] sm:$0xff]
  %v24 = vld [vmem:[%s0 + $0x50] sm:$0xff]
  %v25 = vld [vmem:[%s0 + $0x58] sm:$0xff]
  %v26 = vld [vmem:[%s0 + $0x60] sm:$0xff]
  %v27 = vld [vmem:[%s0 + $0x68] sm:$0xff]
  %v28 = vld [vmem:[%s0 + $0x70] sm:$0xff]
  %v29 = vld [vmem:[%s0 + $0x78] sm:$0xff]
  %v30 = vlaneseq
  %v31 = vand.u32 %v30, 127
  %32 = vset.pattern.permute.xlu0 0
  %33 = vperm.xlu0 %32, %v14
  %v34 = vpop.permute.xlu0 %33
  %35 = vset.pattern.permute.xlu0 0
  %36 = vperm.xlu0 %35, %v15
  %v37 = vpop.permute.xlu0 %36
  %38 = vset.pattern.permute.xlu0 0
  %39 = vperm.xlu0 %38, %v16
  %v40 = vpop.permute.xlu0 %39
  %41 = vset.pattern.permute.xlu0 0
  %42 = vperm.xlu0 %41, %v17
  %v43 = vpop.permute.xlu0 %42
  %44 = vset.pattern.permute.xlu0 0
  %45 = vperm.xlu0 %44, %v18
  %v46 = vpop.permute.xlu0 %45
  %47 = vset.pattern.permute.xlu0 0
  %48 = vperm.xlu0 %47, %v19
  %v49 = vpop.permute.xlu0 %48
  %50 = vset.pattern.permute.xlu0 0
  %51 = vperm.xlu0 %50, %v20
  %v52 = vpop.permute.xlu0 %51
  %53 = vset.pattern.permute.xlu0 0
  %54 = vperm.xlu0 %53, %v21
  %v55 = vpop.permute.xlu0 %54
  %56 = vset.pattern.permute.xlu0 0
  %57 = vperm.xlu0 %56, %v22
  %v58 = vpop.permute.xlu0 %57
  %59 = vset.pattern.permute.xlu0 0
  %60 = vperm.xlu0 %59, %v23
  %v61 = vpop.permute.xlu0 %60
  %62 = vset.pattern.permute.xlu0 0
  %63 = vperm.xlu0 %62, %v24
  %v64 = vpop.permute.xlu0 %63
  %65 = vset.pattern.permute.xlu0 0
  %66 = vperm.xlu0 %65, %v25
  %v67 = vpop.permute.xlu0 %66
  %68 = vset.pattern.permute.xlu0 0
  %69 = vperm.xlu0 %68, %v26
  %v70 = vpop.permute.xlu0 %69
  %71 = vset.pattern.permute.xlu0 0
  %72 = vperm.xlu0 %71, %v27
  %v73 = vpop.permute.xlu0 %72
  %74 = vset.pattern.permute.xlu0 0
  %75 = vperm.xlu0 %74, %v28
  %v76 = vpop.permute.xlu0 %75
  %77 = vset.pattern.permute.xlu0 0
  %78 = vperm.xlu0 %77, %v29
  %v79 = vpop.permute.xlu0 %78
  %vm80 = vcmp.eq.s32.totalorder %v34, %v31
  %vm81 = vcmp.eq.s32.totalorder %v37, %v31
  %vm82 = vcmp.eq.s32.totalorder %v40, %v31
  %vm83 = vcmp.eq.s32.totalorder %v43, %v31
  %vm84 = vcmp.eq.s32.totalorder %v46, %v31
  %vm85 = vcmp.eq.s32.totalorder %v49, %v31
  %vm86 = vcmp.eq.s32.totalorder %v52, %v31
  %vm87 = vcmp.eq.s32.totalorder %v55, %v31
  %vm88 = vcmp.eq.s32.totalorder %v58, %v31
  %vm89 = vcmp.eq.s32.totalorder %v61, %v31
  %vm90 = vcmp.eq.s32.totalorder %v64, %v31
  %vm91 = vcmp.eq.s32.totalorder %v67, %v31
  %vm92 = vcmp.eq.s32.totalorder %v70, %v31
  %vm93 = vcmp.eq.s32.totalorder %v73, %v31
  %vm94 = vcmp.eq.s32.totalorder %v76, %v31
  %vm95 = vcmp.eq.s32.totalorder %v79, %v31
  %v96 = vsel %vm80, 1.0, 0.0
  %v97 = vsel %vm81, 1.0, 0.0
  %v98 = vsel %vm82, 1.0, 0.0
  %v99 = vsel %vm83, 1.0, 0.0
  %v100 = vsel %vm84, 1.0, 0.0
  %v101 = vsel %vm85, 1.0, 0.0
  %v102 = vsel %vm86, 1.0, 0.0
  %v103 = vsel %vm87, 1.0, 0.0
  %v104 = vsel %vm88, 1.0, 0.0
  %v105 = vsel %vm89, 1.0, 0.0
  %v106 = vsel %vm90, 1.0, 0.0
  %v107 = vsel %vm91, 1.0, 0.0
  %v108 = vsel %vm92, 1.0, 0.0
  %v109 = vsel %vm93, 1.0, 0.0
  %v110 = vsel %vm94, 1.0, 0.0
  %v111 = vsel %vm95, 1.0, 0.0
  %v112 = vld [vmem:[%s1] sm:$0xff]
  %v113 = vld [vmem:[%s1 + $0x8] sm:$0xff]
  %v114 = vld [vmem:[%s1 + $0x10] sm:$0xff]
  %v115 = vld [vmem:[%s1 + $0x18] sm:$0xff]
  %v116 = vld [vmem:[%s1 + $0x20] sm:$0xff]
  %v117 = vld [vmem:[%s1 + $0x28] sm:$0xff]
  %v118 = vld [vmem:[%s1 + $0x30] sm:$0xff]
  %vm119 = vcmask 457728
  %v121 = vsel %vm119, %v96, 0
  %v124 = vsel %vm119, %v97, 0
  %v127 = vsel %vm119, %v98, 0
  %v130 = vsel %vm119, %v99, 0
  %v133 = vsel %vm119, %v100, 0
  %v136 = vsel %vm119, %v101, 0
  %v139 = vsel %vm119, %v102, 0
  %v142 = vsel %vm119, %v103, 0
  %v145 = vsel %vm119, %v104, 0
  %v148 = vsel %vm119, %v105, 0
  %v151 = vsel %vm119, %v106, 0
  %v154 = vsel %vm119, %v107, 0
  %v157 = vsel %vm119, %v108, 0
  %v160 = vsel %vm119, %v109, 0
  %v163 = vsel %vm119, %v110, 0
  %v166 = vsel %vm119, %v111, 0
  %168 = vmatpush.msra.mxu0 0.0
  %169 = vmatpush.msra.mxu0 0.0
  %170 = vmatpush.msra.mxu0 0.0
  %171 = vmatpush.msra.mxu0 0.0
  %172 = vmatpush.msra.mxu0 0.0
  %173 = vmatpush.msra.mxu0 0.0
  %174 = vmatpush.msra.mxu0 0.0
  %175 = vmatpush.msra.mxu0 0.0
  %176 = vmatpush.msra.mxu0 0.0
  %177 = vmatpush.msra.mxu0 %v118
  %178 = vmatpush.msra.mxu0 %v117
  %179 = vmatpush.msra.mxu0 %v116
  %180 = vmatpush.msra.mxu0 %v115
  %181 = vmatpush.msra.mxu0 %v114
  %182 = vmatpush.msra.mxu0 %v113
  %183 = vmatpush.msra.mxu0 %v112
  %184 = vmatmul.f32.gmra.mxu0 %v121
  %v185 = vpop.f32.mrf.mxu0
  %v186 = vadd.f32 0.0, %v185
  %187 = vmatmul.f32.gmra.mxu0 %v124
  %v188 = vpop.f32.mrf.mxu0
  %v189 = vadd.f32 0.0, %v188
  %190 = vmatmul.f32.gmra.mxu0 %v127
  %v191 = vpop.f32.mrf.mxu0
  %v192 = vadd.f32 0.0, %v191
  %193 = vmatmul.f32.gmra.mxu0 %v130
  %v194 = vpop.f32.mrf.mxu0
  %v195 = vadd.f32 0.0, %v194
  %196 = vmatmul.f32.gmra.mxu0 %v133
  %v197 = vpop.f32.mrf.mxu0
  %v198 = vadd.f32 0.0, %v197
  %199 = vmatmul.f32.gmra.mxu0 %v136
  %v200 = vpop.f32.mrf.mxu0
  %v201 = vadd.f32 0.0, %v200
  %202 = vmatmul.f32.gmra.mxu0 %v139
  %v203 = vpop.f32.mrf.mxu0
  %v204 = vadd.f32 0.0, %v203
  %205 = vmatmul.f32.gmra.mxu0 %v142
  %v206 = vpop.f32.mrf.mxu0
  %v207 = vadd.f32 0.0, %v206
  %208 = vmatmul.f32.gmra.mxu0 %v145
  %v209 = vpop.f32.mrf.mxu0
  %v210 = vadd.f32 0.0, %v209
  %211 = vmatmul.f32.gmra.mxu0 %v148
  %v212 = vpop.f32.mrf.mxu0
  %v213 = vadd.f32 0.0, %v212
  %214 = vmatmul.f32.gmra.mxu0 %v151
  %v215 = vpop.f32.mrf.mxu0
  %v216 = vadd.f32 0.0, %v215
  %217 = vmatmul.f32.gmra.mxu0 %v154
  %v218 = vpop.f32.mrf.mxu0
  %v219 = vadd.f32 0.0, %v218
  %220 = vmatmul.f32.gmra.mxu0 %v157
  %v221 = vpop.f32.mrf.mxu0
  %v222 = vadd.f32 0.0, %v221
  %223 = vmatmul.f32.gmra.mxu0 %v160
  %v224 = vpop.f32.mrf.mxu0
  %v225 = vadd.f32 0.0, %v224
  %226 = vmatmul.f32.gmra.mxu0 %v163
  %v227 = vpop.f32.mrf.mxu0
  %v228 = vadd.f32 0.0, %v227
  %229 = vmatmul.f32.gmra.mxu0 %v166
  %v230 = vpop.f32.mrf.mxu0
  %v231 = vadd.f32 0.0, %v230
  %232 = vdwg.mxu0
  %v233 = vld [vmem:[%s1 + $0x118] sm:$0xff]
  %248 = vrot.lane.b32.xlu0 %v189, 32
  %v249 = vpop.permute.xlu0 %248
  %250 = vrot.lane.b32.xlu0 %v192, 32
  %v251 = vpop.permute.xlu0 %250
  %252 = vrot.lane.b32.xlu0 %v195, 32
  %v253 = vpop.permute.xlu0 %252
  %254 = vrot.lane.b32.xlu0 %v198, 32
  %v255 = vpop.permute.xlu0 %254
  %256 = vrot.lane.b32.xlu0 %v201, 32
  %v257 = vpop.permute.xlu0 %256
  %258 = vrot.lane.b32.xlu0 %v204, 32
  %v259 = vpop.permute.xlu0 %258
  %260 = vrot.lane.b32.xlu0 %v207, 32
  %v261 = vpop.permute.xlu0 %260
  %262 = vrot.lane.b32.xlu0 %v210, 32
  %v263 = vpop.permute.xlu0 %262
  %264 = vrot.lane.b32.xlu0 %v213, 32
  %v265 = vpop.permute.xlu0 %264
  %266 = vrot.lane.b32.xlu0 %v216, 32
  %v267 = vpop.permute.xlu0 %266
  %268 = vrot.lane.b32.xlu0 %v219, 32
  %v269 = vpop.permute.xlu0 %268
  %270 = vrot.lane.b32.xlu0 %v222, 32
  %v271 = vpop.permute.xlu0 %270
  %272 = vrot.lane.b32.xlu0 %v225, 32
  %v273 = vpop.permute.xlu0 %272
  %274 = vrot.lane.b32.xlu0 %v228, 32
  %v275 = vpop.permute.xlu0 %274
  %291 = vrot.lane.b32.xlu0 %v192, 64
  %v292 = vpop.permute.xlu0 %291
  %293 = vrot.lane.b32.xlu0 %v195, 64
  %v294 = vpop.permute.xlu0 %293
  %295 = vrot.lane.b32.xlu0 %v198, 64
  %v296 = vpop.permute.xlu0 %295
  %297 = vrot.lane.b32.xlu0 %v201, 64
  %v298 = vpop.permute.xlu0 %297
  %299 = vrot.lane.b32.xlu0 %v204, 64
  %v300 = vpop.permute.xlu0 %299
  %301 = vrot.lane.b32.xlu0 %v207, 64
  %v302 = vpop.permute.xlu0 %301
  %303 = vrot.lane.b32.xlu0 %v210, 64
  %v304 = vpop.permute.xlu0 %303
  %305 = vrot.lane.b32.xlu0 %v213, 64
  %v306 = vpop.permute.xlu0 %305
  %307 = vrot.lane.b32.xlu0 %v216, 64
  %v308 = vpop.permute.xlu0 %307
  %309 = vrot.lane.b32.xlu0 %v219, 64
  %v310 = vpop.permute.xlu0 %309
  %311 = vrot.lane.b32.xlu0 %v222, 64
  %v312 = vpop.permute.xlu0 %311
  %313 = vrot.lane.b32.xlu0 %v225, 64
  %v314 = vpop.permute.xlu0 %313
  %315 = vrot.lane.b32.xlu0 %v228, 64
  %v316 = vpop.permute.xlu0 %315
  %317 = vrot.lane.b32.xlu0 %v231, 64
  %v318 = vpop.permute.xlu0 %317
  %vm333 = vcmask 261120
  %v334 = vsel %vm333, %v186, %v249
  %v335 = vsel %vm333, %v189, %v251
  %v336 = vsel %vm333, %v192, %v253
  %v337 = vsel %vm333, %v195, %v255
  %v338 = vsel %vm333, %v198, %v257
  %v339 = vsel %vm333, %v201, %v259
  %v340 = vsel %vm333, %v204, %v261
  %v341 = vsel %vm333, %v207, %v263
  %v342 = vsel %vm333, %v210, %v265
  %v343 = vsel %vm333, %v213, %v267
  %v344 = vsel %vm333, %v216, %v269
  %v345 = vsel %vm333, %v219, %v271
  %v346 = vsel %vm333, %v222, %v273
  %v347 = vsel %vm333, %v225, %v275
  %vm348 = vcmask 523264
  %v349 = vsel %vm348, %v334, %v292
  %v350 = vsel %vm348, %v335, %v294
  %v351 = vsel %vm348, %v336, %v296
  %v352 = vsel %vm348, %v337, %v298
  %v353 = vsel %vm348, %v338, %v300
  %v354 = vsel %vm348, %v339, %v302
  %v355 = vsel %vm348, %v340, %v304
  %v356 = vsel %vm348, %v341, %v306
  %v357 = vsel %vm348, %v342, %v308
  %v358 = vsel %vm348, %v343, %v310
  %v359 = vsel %vm348, %v344, %v312
  %v360 = vsel %vm348, %v345, %v314
  %v361 = vsel %vm348, %v346, %v316
  %v362 = vsel %vm348, %v347, %v318
  %v363 = vld [vmem:[%s1 + $0x38] sm:$0xff]
  %v364 = vld [vmem:[%s1 + $0x40] sm:$0xff]
  %v365 = vld [vmem:[%s1 + $0x48] sm:$0xff]
  %v366 = vld [vmem:[%s1 + $0x50] sm:$0xff]
  %v367 = vld [vmem:[%s1 + $0x58] sm:$0xff]
  %v368 = vld [vmem:[%s1 + $0x60] sm:$0xff]
  %v369 = vld [vmem:[%s1 + $0x68] sm:$0xff]
  %v370 = vld [vmem:[%s1 + $0x70] sm:$0xff]
  %v371 = vld [vmem:[%s1 + $0x78] sm:$0xff]
  %v372 = vld [vmem:[%s1 + $0x80] sm:$0xff]
  %v373 = vld [vmem:[%s1 + $0x88] sm:$0xff]
  %v374 = vld [vmem:[%s1 + $0x90] sm:$0xff]
  %v375 = vperm.slane %v233, 0
  %vm376 = vcmask 785408
  %v378 = vsel %vm376, %v349, 0
  %v381 = vsel %vm376, %v350, 0
  %v384 = vsel %vm376, %v351, 0
  %v387 = vsel %vm376, %v352, 0
  %v390 = vsel %vm376, %v353, 0
  %v393 = vsel %vm376, %v354, 0
  %v396 = vsel %vm376, %v355, 0
  %v399 = vsel %vm376, %v356, 0
  %v402 = vsel %vm376, %v357, 0
  %v405 = vsel %vm376, %v358, 0
  %v408 = vsel %vm376, %v359, 0
  %v411 = vsel %vm376, %v360, 0
  %v414 = vsel %vm376, %v361, 0
  %v417 = vsel %vm376, %v362, 0
  %419 = vmatpush.msra.mxu0 0.0
  %420 = vmatpush.msra.mxu0 0.0
  %421 = vmatpush.msra.mxu0 0.0
  %422 = vmatpush.msra.mxu0 0.0
  %423 = vmatpush.msra.mxu0 %v374
  %424 = vmatpush.msra.mxu0 %v373
  %425 = vmatpush.msra.mxu0 %v372
  %426 = vmatpush.msra.mxu0 %v371
  %427 = vmatpush.msra.mxu0 %v370
  %428 = vmatpush.msra.mxu0 %v369
  %429 = vmatpush.msra.mxu0 %v368
  %430 = vmatpush.msra.mxu0 %v367
  %431 = vmatpush.msra.mxu0 %v366
  %432 = vmatpush.msra.mxu0 %v365
  %433 = vmatpush.msra.mxu0 %v364
  %434 = vmatpush.msra.mxu0 %v363
  %435 = vmatmul.f32.gmra.mxu0 %v378
  %v436 = vpop.f32.mrf.mxu0
  %v437 = vadd.f32 %v375, %v436
  %438 = vmatmul.f32.gmra.mxu0 %v381
  %v439 = vpop.f32.mrf.mxu0
  %v440 = vadd.f32 %v375, %v439
  %441 = vmatmul.f32.gmra.mxu0 %v384
  %v442 = vpop.f32.mrf.mxu0
  %v443 = vadd.f32 %v375, %v442
  %444 = vmatmul.f32.gmra.mxu0 %v387
  %v445 = vpop.f32.mrf.mxu0
  %v446 = vadd.f32 %v375, %v445
  %447 = vmatmul.f32.gmra.mxu0 %v390
  %v448 = vpop.f32.mrf.mxu0
  %v449 = vadd.f32 %v375, %v448
  %450 = vmatmul.f32.gmra.mxu0 %v393
  %v451 = vpop.f32.mrf.mxu0
  %v452 = vadd.f32 %v375, %v451
  %453 = vmatmul.f32.gmra.mxu0 %v396
  %v454 = vpop.f32.mrf.mxu0
  %v455 = vadd.f32 %v375, %v454
  %456 = vmatmul.f32.gmra.mxu0 %v399
  %v457 = vpop.f32.mrf.mxu0
  %v458 = vadd.f32 %v375, %v457
  %459 = vmatmul.f32.gmra.mxu0 %v402
  %v460 = vpop.f32.mrf.mxu0
  %v461 = vadd.f32 %v375, %v460
  %462 = vmatmul.f32.gmra.mxu0 %v405
  %v463 = vpop.f32.mrf.mxu0
  %v464 = vadd.f32 %v375, %v463
  %465 = vmatmul.f32.gmra.mxu0 %v408
  %v466 = vpop.f32.mrf.mxu0
  %v467 = vadd.f32 %v375, %v466
  %468 = vmatmul.f32.gmra.mxu0 %v411
  %v469 = vpop.f32.mrf.mxu0
  %v470 = vadd.f32 %v375, %v469
  %471 = vmatmul.f32.gmra.mxu0 %v414
  %v472 = vpop.f32.mrf.mxu0
  %v473 = vadd.f32 %v375, %v472
  %474 = vmatmul.f32.gmra.mxu0 %v417
  %v475 = vpop.f32.mrf.mxu0
  %v476 = vadd.f32 %v375, %v475
  %477 = vdwg.mxu0
  %v478 = vmax.f32 %v437, 0.0
  %v479 = vmax.f32 %v440, 0.0
  %v480 = vmax.f32 %v443, 0.0
  %v481 = vmax.f32 %v446, 0.0
  %v482 = vmax.f32 %v449, 0.0
  %v483 = vmax.f32 %v452, 0.0
  %v484 = vmax.f32 %v455, 0.0
  %v485 = vmax.f32 %v458, 0.0
  %v486 = vmax.f32 %v461, 0.0
  %v487 = vmax.f32 %v464, 0.0
  %v488 = vmax.f32 %v467, 0.0
  %v489 = vmax.f32 %v470, 0.0
  %v490 = vmax.f32 %v473, 0.0
  %v491 = vmax.f32 %v476, 0.0
  %492 = vrot.lane.b32.xlu0 %v195, 96
  %v493 = vpop.permute.xlu0 %492
  %494 = vrot.lane.b32.xlu0 %v198, 96
  %v495 = vpop.permute.xlu0 %494
  %496 = vrot.lane.b32.xlu0 %v201, 96
  %v497 = vpop.permute.xlu0 %496
  %498 = vrot.lane.b32.xlu0 %v204, 96
  %v499 = vpop.permute.xlu0 %498
  %500 = vrot.lane.b32.xlu0 %v207, 96
  %v501 = vpop.permute.xlu0 %500
  %502 = vrot.lane.b32.xlu0 %v210, 96
  %v503 = vpop.permute.xlu0 %502
  %504 = vrot.lane.b32.xlu0 %v213, 96
  %v505 = vpop.permute.xlu0 %504
  %506 = vrot.lane.b32.xlu0 %v216, 96
  %v507 = vpop.permute.xlu0 %506
  %508 = vrot.lane.b32.xlu0 %v219, 96
  %v509 = vpop.permute.xlu0 %508
  %510 = vrot.lane.b32.xlu0 %v222, 96
  %v511 = vpop.permute.xlu0 %510
  %512 = vrot.lane.b32.xlu0 %v225, 96
  %v513 = vpop.permute.xlu0 %512
  %514 = vrot.lane.b32.xlu0 %v228, 96
  %v515 = vpop.permute.xlu0 %514
  %516 = vrot.lane.b32.xlu0 %v231, 96
  %v517 = vpop.permute.xlu0 %516
  %v531 = vsel %vm376, %v349, %v493
  %v532 = vsel %vm376, %v350, %v495
  %v533 = vsel %vm376, %v351, %v497
  %v534 = vsel %vm376, %v352, %v499
  %v535 = vsel %vm376, %v353, %v501
  %v536 = vsel %vm376, %v354, %v503
  %v537 = vsel %vm376, %v355, %v505
  %v538 = vsel %vm376, %v356, %v507
  %v539 = vsel %vm376, %v357, %v509
  %v540 = vsel %vm376, %v358, %v511
  %v541 = vsel %vm376, %v359, %v513
  %v542 = vsel %vm376, %v360, %v515
  %v543 = vsel %vm376, %v361, %v517
  %v544 = vld [vmem:[%s1 + $0x98] sm:$0xff]
  %v545 = vld [vmem:[%s1 + $0xa0] sm:$0xff]
  %v546 = vld [vmem:[%s1 + $0xa8] sm:$0xff]
  %v547 = vld [vmem:[%s1 + $0xb0] sm:$0xff]
  %v548 = vld [vmem:[%s1 + $0xb8] sm:$0xff]
  %v549 = vld [vmem:[%s1 + $0xc0] sm:$0xff]
  %v550 = vld [vmem:[%s1 + $0xc8] sm:$0xff]
  %v551 = vld [vmem:[%s1 + $0xd0] sm:$0xff]
  %v552 = vld [vmem:[%s1 + $0xd8] sm:$0xff]
  %v553 = vld [vmem:[%s1 + $0xe0] sm:$0xff]
  %v554 = vld [vmem:[%s1 + $0xe8] sm:$0xff]
  %v555 = vld [vmem:[%s1 + $0xf0] sm:$0xff]
  %v556 = vld [vmem:[%s1 + $0xf8] sm:$0xff]
  %v557 = vld [vmem:[%s1 + $0x100] sm:$0xff]
  %v558 = vld [vmem:[%s1 + $0x108] sm:$0xff]
  %v559 = vld [vmem:[%s1 + $0x110] sm:$0xff]
  %v560 = vperm.slane %v233, 1
  %561 = vmatpush.msra.mxu0 %v559
  %562 = vmatpush.msra.mxu0 %v558
  %563 = vmatpush.msra.mxu0 %v557
  %564 = vmatpush.msra.mxu0 %v556
  %565 = vmatpush.msra.mxu0 %v555
  %566 = vmatpush.msra.mxu0 %v554
  %567 = vmatpush.msra.mxu0 %v553
  %568 = vmatpush.msra.mxu0 %v552
  %569 = vmatpush.msra.mxu0 %v551
  %570 = vmatpush.msra.mxu0 %v550
  %571 = vmatpush.msra.mxu0 %v549
  %572 = vmatpush.msra.mxu0 %v548
  %573 = vmatpush.msra.mxu0 %v547
  %574 = vmatpush.msra.mxu0 %v546
  %575 = vmatpush.msra.mxu0 %v545
  %576 = vmatpush.msra.mxu0 %v544
  %577 = vmatmul.f32.gmra.mxu0 %v531
  %v578 = vpop.f32.mrf.mxu0
  %v579 = vadd.f32 %v560, %v578
  %580 = vmatmul.f32.gmra.mxu0 %v532
  %v581 = vpop.f32.mrf.mxu0
  %v582 = vadd.f32 %v560, %v581
  %583 = vmatmul.f32.gmra.mxu0 %v533
  %v584 = vpop.f32.mrf.mxu0
  %v585 = vadd.f32 %v560, %v584
  %586 = vmatmul.f32.gmra.mxu0 %v534
  %v587 = vpop.f32.mrf.mxu0
  %v588 = vadd.f32 %v560, %v587
  %589 = vmatmul.f32.gmra.mxu0 %v535
  %v590 = vpop.f32.mrf.mxu0
  %v591 = vadd.f32 %v560, %v590
  %592 = vmatmul.f32.gmra.mxu0 %v536
  %v593 = vpop.f32.mrf.mxu0
  %v594 = vadd.f32 %v560, %v593
  %595 = vmatmul.f32.gmra.mxu0 %v537
  %v596 = vpop.f32.mrf.mxu0
  %v597 = vadd.f32 %v560, %v596
  %598 = vmatmul.f32.gmra.mxu0 %v538
  %v599 = vpop.f32.mrf.mxu0
  %v600 = vadd.f32 %v560, %v599
  %601 = vmatmul.f32.gmra.mxu0 %v539
  %v602 = vpop.f32.mrf.mxu0
  %v603 = vadd.f32 %v560, %v602
  %604 = vmatmul.f32.gmra.mxu0 %v540
  %v605 = vpop.f32.mrf.mxu0
  %v606 = vadd.f32 %v560, %v605
  %607 = vmatmul.f32.gmra.mxu0 %v541
  %v608 = vpop.f32.mrf.mxu0
  %v609 = vadd.f32 %v560, %v608
  %610 = vmatmul.f32.gmra.mxu0 %v542
  %v611 = vpop.f32.mrf.mxu0
  %v612 = vadd.f32 %v560, %v611
  %613 = vmatmul.f32.gmra.mxu0 %v543
  %v614 = vpop.f32.mrf.mxu0
  %v615 = vadd.f32 %v560, %v614
  %616 = vdwg.mxu0
  %v617 = vmax.f32 %v579, 0.0
  %v618 = vmax.f32 %v582, 0.0
  %v619 = vmax.f32 %v585, 0.0
  %v620 = vmax.f32 %v588, 0.0
  %v621 = vmax.f32 %v591, 0.0
  %v622 = vmax.f32 %v594, 0.0
  %v623 = vmax.f32 %v597, 0.0
  %v624 = vmax.f32 %v600, 0.0
  %v625 = vmax.f32 %v603, 0.0
  %v626 = vmax.f32 %v606, 0.0
  %v627 = vmax.f32 %v609, 0.0
  %v628 = vmax.f32 %v612, 0.0
  %v629 = vmax.f32 %v615, 0.0
  %v630 = vld [vmem:[%s2] sm:$0xff]
  %v631 = vld [vmem:[%s2 + $0x8] sm:$0xff]
  %v632 = vld [vmem:[%s2 + $0x10] sm:$0xff]
  %v633 = vld [vmem:[%s2 + $0x18] sm:$0xff]
  %v634 = vld [vmem:[%s2 + $0x20] sm:$0xff]
  %v635 = vld [vmem:[%s2 + $0x28] sm:$0xff]
  %v636 = vld [vmem:[%s2 + $0x30] sm:$0xff]
  %v637 = vld [vmem:[%s2 + $0x38] sm:$0xff]
  %v638 = vld [vmem:[%s2 + $0x40] sm:$0x1]
  %v639 = vperm.slane %v638, 0
  %v641 = vsel %vm333, %v478, 0
  %v644 = vsel %vm333, %v479, 0
  %v647 = vsel %vm333, %v480, 0
  %v650 = vsel %vm333, %v481, 0
  %v653 = vsel %vm333, %v482, 0
  %v656 = vsel %vm333, %v483, 0
  %v659 = vsel %vm333, %v484, 0
  %v662 = vsel %vm333, %v485, 0
  %v665 = vsel %vm333, %v486, 0
  %v668 = vsel %vm333, %v487, 0
  %v671 = vsel %vm333, %v488, 0
  %v674 = vsel %vm333, %v489, 0
  %v677 = vsel %vm333, %v490, 0
  %v680 = vsel %vm333, %v491, 0
  %682 = vmatpush.msra.mxu0 0.0
  %683 = vmatpush.msra.mxu0 0.0
  %684 = vmatpush.msra.mxu0 0.0
  %685 = vmatpush.msra.mxu0 0.0
  %686 = vmatpush.msra.mxu0 0.0
  %687 = vmatpush.msra.mxu0 0.0
  %688 = vmatpush.msra.mxu0 0.0
  %689 = vmatpush.msra.mxu0 0.0
  %690 = vmatpush.msra.mxu0 0.0
  %691 = vmatpush.msra.mxu0 0.0
  %692 = vmatpush.msra.mxu0 0.0
  %693 = vmatpush.msra.mxu0 0.0
  %694 = vmatpush.msra.mxu0 %v633
  %695 = vmatpush.msra.mxu0 %v632
  %696 = vmatpush.msra.mxu0 %v631
  %697 = vmatpush.msra.mxu0 %v630
  %698 = vmatmul.f32.gmra.mxu0 %v641
  %v699 = vpop.f32.mrf.mxu0
  %v700 = vadd.f32 %v639, %v699
  %701 = vmatmul.f32.gmra.mxu0 %v644
  %v702 = vpop.f32.mrf.mxu0
  %v703 = vadd.f32 %v639, %v702
  %704 = vmatmul.f32.gmra.mxu0 %v647
  %v705 = vpop.f32.mrf.mxu0
  %v706 = vadd.f32 %v639, %v705
  %707 = vmatmul.f32.gmra.mxu0 %v650
  %v708 = vpop.f32.mrf.mxu0
  %v709 = vadd.f32 %v639, %v708
  %710 = vmatmul.f32.gmra.mxu0 %v653
  %v711 = vpop.f32.mrf.mxu0
  %v712 = vadd.f32 %v639, %v711
  %713 = vmatmul.f32.gmra.mxu0 %v656
  %v714 = vpop.f32.mrf.mxu0
  %v715 = vadd.f32 %v639, %v714
  %716 = vmatmul.f32.gmra.mxu0 %v659
  %v717 = vpop.f32.mrf.mxu0
  %v718 = vadd.f32 %v639, %v717
  %719 = vmatmul.f32.gmra.mxu0 %v662
  %v720 = vpop.f32.mrf.mxu0
  %v721 = vadd.f32 %v639, %v720
  %722 = vmatmul.f32.gmra.mxu0 %v665
  %v723 = vpop.f32.mrf.mxu0
  %v724 = vadd.f32 %v639, %v723
  %725 = vmatmul.f32.gmra.mxu0 %v668
  %v726 = vpop.f32.mrf.mxu0
  %v727 = vadd.f32 %v639, %v726
  %728 = vmatmul.f32.gmra.mxu0 %v671
  %v729 = vpop.f32.mrf.mxu0
  %v730 = vadd.f32 %v639, %v729
  %731 = vmatmul.f32.gmra.mxu0 %v674
  %v732 = vpop.f32.mrf.mxu0
  %v733 = vadd.f32 %v639, %v732
  %734 = vmatmul.f32.gmra.mxu0 %v677
  %v735 = vpop.f32.mrf.mxu0
  %v736 = vadd.f32 %v639, %v735
  %737 = vmatmul.f32.gmra.mxu0 %v680
  %v738 = vpop.f32.mrf.mxu0
  %v739 = vadd.f32 %v639, %v738
  %740 = vdwg.mxu0
  %v742 = vsel %vm333, %v617, 0
  %v745 = vsel %vm333, %v618, 0
  %v748 = vsel %vm333, %v619, 0
  %v751 = vsel %vm333, %v620, 0
  %v754 = vsel %vm333, %v621, 0
  %v757 = vsel %vm333, %v622, 0
  %v760 = vsel %vm333, %v623, 0
  %v763 = vsel %vm333, %v624, 0
  %v766 = vsel %vm333, %v625, 0
  %v769 = vsel %vm333, %v626, 0
  %v772 = vsel %vm333, %v627, 0
  %v775 = vsel %vm333, %v628, 0
  %v778 = vsel %vm333, %v629, 0
  %780 = vmatpush.msra.mxu0 0.0
  %781 = vmatpush.msra.mxu0 0.0
  %782 = vmatpush.msra.mxu0 0.0
  %783 = vmatpush.msra.mxu0 0.0
  %784 = vmatpush.msra.mxu0 0.0
  %785 = vmatpush.msra.mxu0 0.0
  %786 = vmatpush.msra.mxu0 0.0
  %787 = vmatpush.msra.mxu0 0.0
  %788 = vmatpush.msra.mxu0 0.0
  %789 = vmatpush.msra.mxu0 0.0
  %790 = vmatpush.msra.mxu0 0.0
  %791 = vmatpush.msra.mxu0 0.0
  %792 = vmatpush.msra.mxu0 %v633
  %793 = vmatpush.msra.mxu0 %v632
  %794 = vmatpush.msra.mxu0 %v631
  %795 = vmatpush.msra.mxu0 %v630
  %796 = vmatmul.f32.gmra.mxu0 %v742
  %v797 = vpop.f32.mrf.mxu0
  %v798 = vadd.f32 %v639, %v797
  %799 = vmatmul.f32.gmra.mxu0 %v745
  %v800 = vpop.f32.mrf.mxu0
  %v801 = vadd.f32 %v639, %v800
  %802 = vmatmul.f32.gmra.mxu0 %v748
  %v803 = vpop.f32.mrf.mxu0
  %v804 = vadd.f32 %v639, %v803
  %805 = vmatmul.f32.gmra.mxu0 %v751
  %v806 = vpop.f32.mrf.mxu0
  %v807 = vadd.f32 %v639, %v806
  %808 = vmatmul.f32.gmra.mxu0 %v754
  %v809 = vpop.f32.mrf.mxu0
  %v810 = vadd.f32 %v639, %v809
  %811 = vmatmul.f32.gmra.mxu0 %v757
  %v812 = vpop.f32.mrf.mxu0
  %v813 = vadd.f32 %v639, %v812
  %814 = vmatmul.f32.gmra.mxu0 %v760
  %v815 = vpop.f32.mrf.mxu0
  %v816 = vadd.f32 %v639, %v815
  %817 = vmatmul.f32.gmra.mxu0 %v763
  %v818 = vpop.f32.mrf.mxu0
  %v819 = vadd.f32 %v639, %v818
  %820 = vmatmul.f32.gmra.mxu0 %v766
  %v821 = vpop.f32.mrf.mxu0
  %v822 = vadd.f32 %v639, %v821
  %823 = vmatmul.f32.gmra.mxu0 %v769
  %v824 = vpop.f32.mrf.mxu0
  %v825 = vadd.f32 %v639, %v824
  %826 = vmatmul.f32.gmra.mxu0 %v772
  %v827 = vpop.f32.mrf.mxu0
  %v828 = vadd.f32 %v639, %v827
  %829 = vmatmul.f32.gmra.mxu0 %v775
  %v830 = vpop.f32.mrf.mxu0
  %v831 = vadd.f32 %v639, %v830
  %832 = vmatmul.f32.gmra.mxu0 %v778
  %v833 = vpop.f32.mrf.mxu0
  %v834 = vadd.f32 %v639, %v833
  %835 = vdwg.mxu0
  %v836 = vperm.slane %v233, 2
  %v838 = vsel %vm333, 0.0, 0
  %840 = vmatpush.msra.mxu0 0.0
  %841 = vmatpush.msra.mxu0 0.0
  %842 = vmatpush.msra.mxu0 0.0
  %843 = vmatpush.msra.mxu0 0.0
  %844 = vmatpush.msra.mxu0 0.0
  %845 = vmatpush.msra.mxu0 0.0
  %846 = vmatpush.msra.mxu0 0.0
  %847 = vmatpush.msra.mxu0 0.0
  %848 = vmatpush.msra.mxu0 0.0
  %849 = vmatpush.msra.mxu0 0.0
  %850 = vmatpush.msra.mxu0 0.0
  %851 = vmatpush.msra.mxu0 0.0
  %852 = vmatpush.msra.mxu0 %v637
  %853 = vmatpush.msra.mxu0 %v636
  %854 = vmatpush.msra.mxu0 %v635
  %855 = vmatpush.msra.mxu0 %v634
  %856 = vmatmul.f32.gmra.mxu0 %v838
  %v857 = vpop.f32.mrf.mxu0
  %v858 = vadd.f32 0.0, %v857
  %859 = vdwg.mxu0
  %v860 = vadd.f32 %v700, %v858
  %v861 = vxor.u32 %v860, 2147483648
  %v862 = vmul.f32 %v861, 1.442695
  %v863 = vpow.pop %v862
  %v864 = vadd.f32 %v863, 1.0
  %v865 = vrcp.pop %v864
  %v866 = vmul.f32 %v864, %v865
  %v867 = vsub.f32 1.0, %v866
  %v868 = vmul.f32 %v865, %v867
  %v869 = vadd.f32 %v865, %v868
  %vm870 = vweird.f32 %v864
  %vm871 = vweird.f32 %v865
  %vm872 = vmor %vm870, %vm871
  %v873 = vsel %vm872, %v865, %v869
  %v874 = vand.u32 2147483647, %v864
  %vm875 = vcmp.eq.f32.partialorder %v874, 8.507059e+37
  %v876 = vand.u32 %v864, 2147483648
  %v877 = vor.u32 1.1754944e-38, %v876
  %v878 = vsel %vm875, %v877, %v873
  %v879 = vmul.f32 1.0, %v878
  %881 = vrot.lane.b32.xlu0 %v836, 64
  %v882 = vpop.permute.xlu0 %881
  %v884 = vadd.f32 %v858, %v882
  %886 = vrot.lane.b32.xlu0 %v884, 64
  %v887 = vpop.permute.xlu0 %886
  %v889 = vmul.f32 %v879, %v887
  %891 = vrot.lane.b32.xlu0 %v889, 64
  %v892 = vpop.permute.xlu0 %891
  %v894 = vadd.f32 %v700, %v892
  %v895 = vtanh.pop %v894
  %v896 = vsub.f32 1.0, %v879
  %898 = vrot.lane.b32.xlu0 %v895, 96
  %v899 = vpop.permute.xlu0 %898
  %v901 = vmul.f32 %v896, %v899
  %v902 = vmul.f32 %v879, 0.0
  %v903 = vadd.f32 %v901, %v902
  %905 = vrot.lane.b32.xlu0 %v903, 96
  %v906 = vpop.permute.xlu0 %905
  %v907 = vsel %vm333, %v906, 0
  %909 = vmatpush.msra.mxu0 0.0
  %910 = vmatpush.msra.mxu0 0.0
  %911 = vmatpush.msra.mxu0 0.0
  %912 = vmatpush.msra.mxu0 0.0
  %913 = vmatpush.msra.mxu0 0.0
  %914 = vmatpush.msra.mxu0 0.0
  %915 = vmatpush.msra.mxu0 0.0
  %916 = vmatpush.msra.mxu0 0.0
  %917 = vmatpush.msra.mxu0 0.0
  %918 = vmatpush.msra.mxu0 0.0
  %919 = vmatpush.msra.mxu0 0.0
  %920 = vmatpush.msra.mxu0 0.0
  %921 = vmatpush.msra.mxu0 %v637
  %922 = vmatpush.msra.mxu0 %v636
  %923 = vmatpush.msra.mxu0 %v635
  %924 = vmatpush.msra.mxu0 %v634
  %925 = vmatmul.f32.gmra.mxu0 %v907
  %v926 = vpop.f32.mrf.mxu0
  %v927 = vadd.f32 0.0, %v926
  %928 = vdwg.mxu0
  %v929 = vadd.f32 %v703, %v927
  %v930 = vxor.u32 %v929, 2147483648
  %v931 = vmul.f32 %v930, 1.442695
  %v932 = vpow.pop %v931
  %v933 = vadd.f32 %v932, 1.0
  %v934 = vrcp.pop %v933
  %v935 = vmul.f32 %v933, %v934
  %v936 = vsub.f32 1.0, %v935
  %v937 = vmul.f32 %v934, %v936
  %v938 = vadd.f32 %v934, %v937
  %vm939 = vweird.f32 %v933
  %vm940 = vweird.f32 %v934
  %vm941 = vmor %vm939, %vm940
  %v942 = vsel %vm941, %v934, %v938
  %v943 = vand.u32 2147483647, %v933
  %vm944 = vcmp.eq.f32.partialorder %v943, 8.507059e+37
  %v945 = vand.u32 %v933, 2147483648
  %v946 = vor.u32 1.1754944e-38, %v945
  %v947 = vsel %vm944, %v946, %v942
  %v948 = vmul.f32 1.0, %v947
  %v949 = vadd.f32 %v927, %v882
  %951 = vrot.lane.b32.xlu0 %v949, 64
  %v952 = vpop.permute.xlu0 %951
  %v954 = vmul.f32 %v948, %v952
  %956 = vrot.lane.b32.xlu0 %v954, 64
  %v957 = vpop.permute.xlu0 %956
  %v959 = vadd.f32 %v703, %v957
  %v960 = vtanh.pop %v959
  %v961 = vsub.f32 1.0, %v948
  %963 = vrot.lane.b32.xlu0 %v960, 96
  %v964 = vpop.permute.xlu0 %963
  %v966 = vmul.f32 %v961, %v964
  %v967 = vmul.f32 %v948, %v903
  %v968 = vadd.f32 %v966, %v967
  %970 = vrot.lane.b32.xlu0 %v968, 96
  %v971 = vpop.permute.xlu0 %970
  %v972 = vsel %vm333, %v971, 0
  %974 = vmatpush.msra.mxu0 0.0
  %975 = vmatpush.msra.mxu0 0.0
  %976 = vmatpush.msra.mxu0 0.0
  %977 = vmatpush.msra.mxu0 0.0
  %978 = vmatpush.msra.mxu0 0.0
  %979 = vmatpush.msra.mxu0 0.0
  %980 = vmatpush.msra.mxu0 0.0
  %981 = vmatpush.msra.mxu0 0.0
  %982 = vmatpush.msra.mxu0 0.0
  %983 = vmatpush.msra.mxu0 0.0
  %984 = vmatpush.msra.mxu0 0.0
  %985 = vmatpush.msra.mxu0 0.0
  %986 = vmatpush.msra.mxu0 %v637
  %987 = vmatpush.msra.mxu0 %v636
  %988 = vmatpush.msra.mxu0 %v635
  %989 = vmatpush.msra.mxu0 %v634
  %990 = vmatmul.f32.gmra.mxu0 %v972
  %v991 = vpop.f32.mrf.mxu0
  %v992 = vadd.f32 0.0, %v991
  %993 = vdwg.mxu0
  %v994 = vadd.f32 %v706, %v992
  %v995 = vxor.u32 %v994, 2147483648
  %v996 = vmul.f32 %v995, 1.442695
  %v997 = vpow.pop %v996
  %v998 = vadd.f32 %v997, 1.0
  %v999 = vrcp.pop %v998
  %v1000 = vmul.f32 %v998, %v999
  %v1001 = vsub.f32 1.0, %v1000
  %v1002 = vmul.f32 %v999, %v1001
  %v1003 = vadd.f32 %v999, %v1002
  %vm1004 = vweird.f32 %v998
  %vm1005 = vweird.f32 %v999
  %vm1006 = vmor %vm1004, %vm1005
  %v1007 = vsel %vm1006, %v999, %v1003
  %v1008 = vand.u32 2147483647, %v998
  %vm1009 = vcmp.eq.f32.partialorder %v1008, 8.507059e+37
  %v1010 = vand.u32 %v998, 2147483648
  %v1011 = vor.u32 1.1754944e-38, %v1010
  %v1012 = vsel %vm1009, %v1011, %v1007
  %v1013 = vmul.f32 1.0, %v1012
  %v1014 = vadd.f32 %v992, %v882
  %1016 = vrot.lane.b32.xlu0 %v1014, 64
  %v1017 = vpop.permute.xlu0 %1016
  %v1019 = vmul.f32 %v1013, %v1017
  %1021 = vrot.lane.b32.xlu0 %v1019, 64
  %v1022 = vpop.permute.xlu0 %1021
  %v1024 = vadd.f32 %v706, %v1022
  %v1025 = vtanh.pop %v1024
  %v1026 = vsub.f32 1.0, %v1013
  %1028 = vrot.lane.b32.xlu0 %v1025, 96
  %v1029 = vpop.permute.xlu0 %1028
  %v1031 = vmul.f32 %v1026, %v1029
  %v1032 = vmul.f32 %v1013, %v968
  %v1033 = vadd.f32 %v1031, %v1032
  %1035 = vrot.lane.b32.xlu0 %v1033, 96
  %v1036 = vpop.permute.xlu0 %1035
  %v1037 = vsel %vm333, %v1036, 0
  %1039 = vmatpush.msra.mxu0 0.0
  %1040 = vmatpush.msra.mxu0 0.0
  %1041 = vmatpush.msra.mxu0 0.0
  %1042 = vmatpush.msra.mxu0 0.0
  %1043 = vmatpush.msra.mxu0 0.0
  %1044 = vmatpush.msra.mxu0 0.0
  %1045 = vmatpush.msra.mxu0 0.0
  %1046 = vmatpush.msra.mxu0 0.0
  %1047 = vmatpush.msra.mxu0 0.0
  %1048 = vmatpush.msra.mxu0 0.0
  %1049 = vmatpush.msra.mxu0 0.0
  %1050 = vmatpush.msra.mxu0 0.0
  %1051 = vmatpush.msra.mxu0 %v637
  %1052 = vmatpush.msra.mxu0 %v636
  %1053 = vmatpush.msra.mxu0 %v635
  %1054 = vmatpush.msra.mxu0 %v634
  %1055 = vmatmul.f32.gmra.mxu0 %v1037
  %v1056 = vpop.f32.mrf.mxu0
  %v1057 = vadd.f32 0.0, %v1056
  %1058 = vdwg.mxu0
  %v1059 = vadd.f32 %v709, %v1057
  %v1060 = vxor.u32 %v1059, 2147483648
  %v1061 = vmul.f32 %v1060, 1.442695
  %v1062 = vpow.pop %v1061
  %v1063 = vadd.f32 %v1062, 1.0
  %v1064 = vrcp.pop %v1063
  %v1065 = vmul.f32 %v1063, %v1064
  %v1066 = vsub.f32 1.0, %v1065
  %v1067 = vmul.f32 %v1064, %v1066
  %v1068 = vadd.f32 %v1064, %v1067
  %vm1069 = vweird.f32 %v1063
  %vm1070 = vweird.f32 %v1064
  %vm1071 = vmor %vm1069, %vm1070
  %v1072 = vsel %vm1071, %v1064, %v1068
  %v1073 = vand.u32 2147483647, %v1063
  %vm1074 = vcmp.eq.f32.partialorder %v1073, 8.507059e+37
  %v1075 = vand.u32 %v1063, 2147483648
  %v1076 = vor.u32 1.1754944e-38, %v1075
  %v1077 = vsel %vm1074, %v1076, %v1072
  %v1078 = vmul.f32 1.0, %v1077
  %v1079 = vadd.f32 %v1057, %v882
  %1081 = vrot.lane.b32.xlu0 %v1079, 64
  %v1082 = vpop.permute.xlu0 %1081
  %v1084 = vmul.f32 %v1078, %v1082
  %1086 = vrot.lane.b32.xlu0 %v1084, 64
  %v1087 = vpop.permute.xlu0 %1086
  %v1089 = vadd.f32 %v709, %v1087
  %v1090 = vtanh.pop %v1089
  %v1091 = vsub.f32 1.0, %v1078
  %1093 = vrot.lane.b32.xlu0 %v1090, 96
  %v1094 = vpop.permute.xlu0 %1093
  %v1096 = vmul.f32 %v1091, %v1094
  %v1097 = vmul.f32 %v1078, %v1033
  %v1098 = vadd.f32 %v1096, %v1097
  %1100 = vrot.lane.b32.xlu0 %v1098, 96
  %v1101 = vpop.permute.xlu0 %1100
  %v1102 = vsel %vm333, %v1101, 0
  %1104 = vmatpush.msra.mxu0 0.0
  %1105 = vmatpush.msra.mxu0 0.0
  %1106 = vmatpush.msra.mxu0 0.0
  %1107 = vmatpush.msra.mxu0 0.0
  %1108 = vmatpush.msra.mxu0 0.0
  %1109 = vmatpush.msra.mxu0 0.0
  %1110 = vmatpush.msra.mxu0 0.0
  %1111 = vmatpush.msra.mxu0 0.0
  %1112 = vmatpush.msra.mxu0 0.0
  %1113 = vmatpush.msra.mxu0 0.0
  %1114 = vmatpush.msra.mxu0 0.0
  %1115 = vmatpush.msra.mxu0 0.0
  %1116 = vmatpush.msra.mxu0 %v637
  %1117 = vmatpush.msra.mxu0 %v636
  %1118 = vmatpush.msra.mxu0 %v635
  %1119 = vmatpush.msra.mxu0 %v634
  %1120 = vmatmul.f32.gmra.mxu0 %v1102
  %v1121 = vpop.f32.mrf.mxu0
  %v1122 = vadd.f32 0.0, %v1121
  %1123 = vdwg.mxu0
  %v1124 = vadd.f32 %v712, %v1122
  %v1125 = vxor.u32 %v1124, 2147483648
  %v1126 = vmul.f32 %v1125, 1.442695
  %v1127 = vpow.pop %v1126
  %v1128 = vadd.f32 %v1127, 1.0
  %v1129 = vrcp.pop %v1128
  %v1130 = vmul.f32 %v1128, %v1129
  %v1131 = vsub.f32 1.0, %v1130
  %v1132 = vmul.f32 %v1129, %v1131
  %v1133 = vadd.f32 %v1129, %v1132
  %vm1134 = vweird.f32 %v1128
  %vm1135 = vweird.f32 %v1129
  %vm1136 = vmor %vm1134, %vm1135
  %v1137 = vsel %vm1136, %v1129, %v1133
  %v1138 = vand.u32 2147483647, %v1128
  %vm1139 = vcmp.eq.f32.partialorder %v1138, 8.507059e+37
  %v1140 = vand.u32 %v1128, 2147483648
  %v1141 = vor.u32 1.1754944e-38, %v1140
  %v1142 = vsel %vm1139, %v1141, %v1137
  %v1143 = vmul.f32 1.0, %v1142
  %v1144 = vadd.f32 %v1122, %v882
  %1146 = vrot.lane.b32.xlu0 %v1144, 64
  %v1147 = vpop.permute.xlu0 %1146
  %v1149 = vmul.f32 %v1143, %v1147
  %1151 = vrot.lane.b32.xlu0 %v1149, 64
  %v1152 = vpop.permute.xlu0 %1151
  %v1154 = vadd.f32 %v712, %v1152
  %v1155 = vtanh.pop %v1154
  %v1156 = vsub.f32 1.0, %v1143
  %1158 = vrot.lane.b32.xlu0 %v1155, 96
  %v1159 = vpop.permute.xlu0 %1158
  %v1161 = vmul.f32 %v1156, %v1159
  %v1162 = vmul.f32 %v1143, %v1098
  %v1163 = vadd.f32 %v1161, %v1162
  %1165 = vrot.lane.b32.xlu0 %v1163, 96
  %v1166 = vpop.permute.xlu0 %1165
  %v1167 = vsel %vm333, %v1166, 0
  %1169 = vmatpush.msra.mxu0 0.0
  %1170 = vmatpush.msra.mxu0 0.0
  %1171 = vmatpush.msra.mxu0 0.0
  %1172 = vmatpush.msra.mxu0 0.0
  %1173 = vmatpush.msra.mxu0 0.0
  %1174 = vmatpush.msra.mxu0 0.0
  %1175 = vmatpush.msra.mxu0 0.0
  %1176 = vmatpush.msra.mxu0 0.0
  %1177 = vmatpush.msra.mxu0 0.0
  %1178 = vmatpush.msra.mxu0 0.0
  %1179 = vmatpush.msra.mxu0 0.0
  %1180 = vmatpush.msra.mxu0 0.0
  %1181 = vmatpush.msra.mxu0 %v637
  %1182 = vmatpush.msra.mxu0 %v636
  %1183 = vmatpush.msra.mxu0 %v635
  %1184 = vmatpush.msra.mxu0 %v634
  %1185 = vmatmul.f32.gmra.mxu0 %v1167
  %v1186 = vpop.f32.mrf.mxu0
  %v1187 = vadd.f32 0.0, %v1186
  %1188 = vdwg.mxu0
  %v1189 = vadd.f32 %v715, %v1187
  %v1190 = vxor.u32 %v1189, 2147483648
  %v1191 = vmul.f32 %v1190, 1.442695
  %v1192 = vpow.pop %v1191
  %v1193 = vadd.f32 %v1192, 1.0
  %v1194 = vrcp.pop %v1193
  %v1195 = vmul.f32 %v1193, %v1194
  %v1196 = vsub.f32 1.0, %v1195
  %v1197 = vmul.f32 %v1194, %v1196
  %v1198 = vadd.f32 %v1194, %v1197
  %vm1199 = vweird.f32 %v1193
  %vm1200 = vweird.f32 %v1194
  %vm1201 = vmor %vm1199, %vm1200
  %v1202 = vsel %vm1201, %v1194, %v1198
  %v1203 = vand.u32 2147483647, %v1193
  %vm1204 = vcmp.eq.f32.partialorder %v1203, 8.507059e+37
  %v1205 = vand.u32 %v1193, 2147483648
  %v1206 = vor.u32 1.1754944e-38, %v1205
  %v1207 = vsel %vm1204, %v1206, %v1202
  %v1208 = vmul.f32 1.0, %v1207
  %v1209 = vadd.f32 %v1187, %v882
  %1211 = vrot.lane.b32.xlu0 %v1209, 64
  %v1212 = vpop.permute.xlu0 %1211
  %v1214 = vmul.f32 %v1208, %v1212
  %1216 = vrot.lane.b32.xlu0 %v1214, 64
  %v1217 = vpop.permute.xlu0 %1216
  %v1219 = vadd.f32 %v715, %v1217
  %v1220 = vtanh.pop %v1219
  %v1221 = vsub.f32 1.0, %v1208
  %1223 = vrot.lane.b32.xlu0 %v1220, 96
  %v1224 = vpop.permute.xlu0 %1223
  %v1226 = vmul.f32 %v1221, %v1224
  %v1227 = vmul.f32 %v1208, %v1163
  %v1228 = vadd.f32 %v1226, %v1227
  %1230 = vrot.lane.b32.xlu0 %v1228, 96
  %v1231 = vpop.permute.xlu0 %1230
  %v1232 = vsel %vm333, %v1231, 0
  %1234 = vmatpush.msra.mxu0 0.0
  %1235 = vmatpush.msra.mxu0 0.0
  %1236 = vmatpush.msra.mxu0 0.0
  %1237 = vmatpush.msra.mxu0 0.0
  %1238 = vmatpush.msra.mxu0 0.0
  %1239 = vmatpush.msra.mxu0 0.0
  %1240 = vmatpush.msra.mxu0 0.0
  %1241 = vmatpush.msra.mxu0 0.0
  %1242 = vmatpush.msra.mxu0 0.0
  %1243 = vmatpush.msra.mxu0 0.0
  %1244 = vmatpush.msra.mxu0 0.0
  %1245 = vmatpush.msra.mxu0 0.0
  %1246 = vmatpush.msra.mxu0 %v637
  %1247 = vmatpush.msra.mxu0 %v636
  %1248 = vmatpush.msra.mxu0 %v635
  %1249 = vmatpush.msra.mxu0 %v634
  %1250 = vmatmul.f32.gmra.mxu0 %v1232
  %v1251 = vpop.f32.mrf.mxu0
  %v1252 = vadd.f32 0.0, %v1251
  %1253 = vdwg.mxu0
  %v1254 = vadd.f32 %v718, %v1252
  %v1255 = vxor.u32 %v1254, 2147483648
  %v1256 = vmul.f32 %v1255, 1.442695
  %v1257 = vpow.pop %v1256
  %v1258 = vadd.f32 %v1257, 1.0
  %v1259 = vrcp.pop %v1258
  %v1260 = vmul.f32 %v1258, %v1259
  %v1261 = vsub.f32 1.0, %v1260
  %v1262 = vmul.f32 %v1259, %v1261
  %v1263 = vadd.f32 %v1259, %v1262
  %vm1264 = vweird.f32 %v1258
  %vm1265 = vweird.f32 %v1259
  %vm1266 = vmor %vm1264, %vm1265
  %v1267 = vsel %vm1266, %v1259, %v1263
  %v1268 = vand.u32 2147483647, %v1258
  %vm1269 = vcmp.eq.f32.partialorder %v1268, 8.507059e+37
  %v1270 = vand.u32 %v1258, 2147483648
  %v1271 = vor.u32 1.1754944e-38, %v1270
  %v1272 = vsel %vm1269, %v1271, %v1267
  %v1273 = vmul.f32 1.0, %v1272
  %v1274 = vadd.f32 %v1252, %v882
  %1276 = vrot.lane.b32.xlu0 %v1274, 64
  %v1277 = vpop.permute.xlu0 %1276
  %v1279 = vmul.f32 %v1273, %v1277
  %1281 = vrot.lane.b32.xlu0 %v1279, 64
  %v1282 = vpop.permute.xlu0 %1281
  %v1284 = vadd.f32 %v718, %v1282
  %v1285 = vtanh.pop %v1284
  %v1286 = vsub.f32 1.0, %v1273
  %1288 = vrot.lane.b32.xlu0 %v1285, 96
  %v1289 = vpop.permute.xlu0 %1288
  %v1291 = vmul.f32 %v1286, %v1289
  %v1292 = vmul.f32 %v1273, %v1228
  %v1293 = vadd.f32 %v1291, %v1292
  %1295 = vrot.lane.b32.xlu0 %v1293, 96
  %v1296 = vpop.permute.xlu0 %1295
  %v1297 = vsel %vm333, %v1296, 0
  %1299 = vmatpush.msra.mxu0 0.0
  %1300 = vmatpush.msra.mxu0 0.0
  %1301 = vmatpush.msra.mxu0 0.0
  %1302 = vmatpush.msra.mxu0 0.0
  %1303 = vmatpush.msra.mxu0 0.0
  %1304 = vmatpush.msra.mxu0 0.0
  %1305 = vmatpush.msra.mxu0 0.0
  %1306 = vmatpush.msra.mxu0 0.0
  %1307 = vmatpush.msra.mxu0 0.0
  %1308 = vmatpush.msra.mxu0 0.0
  %1309 = vmatpush.msra.mxu0 0.0
  %1310 = vmatpush.msra.mxu0 0.0
  %1311 = vmatpush.msra.mxu0 %v637
  %1312 = vmatpush.msra.mxu0 %v636
  %1313 = vmatpush.msra.mxu0 %v635
  %1314 = vmatpush.msra.mxu0 %v634
  %1315 = vmatmul.f32.gmra.mxu0 %v1297
  %v1316 = vpop.f32.mrf.mxu0
  %v1317 = vadd.f32 0.0, %v1316
  %1318 = vdwg.mxu0
  %v1319 = vadd.f32 %v721, %v1317
  %v1320 = vxor.u32 %v1319, 2147483648
  %v1321 = vmul.f32 %v1320, 1.442695
  %v1322 = vpow.pop %v1321
  %v1323 = vadd.f32 %v1322, 1.0
  %v1324 = vrcp.pop %v1323
  %v1325 = vmul.f32 %v1323, %v1324
  %v1326 = vsub.f32 1.0, %v1325
  %v1327 = vmul.f32 %v1324, %v1326
  %v1328 = vadd.f32 %v1324, %v1327
  %vm1329 = vweird.f32 %v1323
  %vm1330 = vweird.f32 %v1324
  %vm1331 = vmor %vm1329, %vm1330
  %v1332 = vsel %vm1331, %v1324, %v1328
  %v1333 = vand.u32 2147483647, %v1323
  %vm1334 = vcmp.eq.f32.partialorder %v1333, 8.507059e+37
  %v1335 = vand.u32 %v1323, 2147483648
  %v1336 = vor.u32 1.1754944e-38, %v1335
  %v1337 = vsel %vm1334, %v1336, %v1332
  %v1338 = vmul.f32 1.0, %v1337
  %v1339 = vadd.f32 %v1317, %v882
  %1341 = vrot.lane.b32.xlu0 %v1339, 64
  %v1342 = vpop.permute.xlu0 %1341
  %v1344 = vmul.f32 %v1338, %v1342
  %1346 = vrot.lane.b32.xlu0 %v1344, 64
  %v1347 = vpop.permute.xlu0 %1346
  %v1349 = vadd.f32 %v721, %v1347
  %v1350 = vtanh.pop %v1349
  %v1351 = vsub.f32 1.0, %v1338
  %1353 = vrot.lane.b32.xlu0 %v1350, 96
  %v1354 = vpop.permute.xlu0 %1353
  %v1356 = vmul.f32 %v1351, %v1354
  %v1357 = vmul.f32 %v1338, %v1293
  %v1358 = vadd.f32 %v1356, %v1357
  %1360 = vrot.lane.b32.xlu0 %v1358, 96
  %v1361 = vpop.permute.xlu0 %1360
  %v1362 = vsel %vm333, %v1361, 0
  %1364 = vmatpush.msra.mxu0 0.0
  %1365 = vmatpush.msra.mxu0 0.0
  %1366 = vmatpush.msra.mxu0 0.0
  %1367 = vmatpush.msra.mxu0 0.0
  %1368 = vmatpush.msra.mxu0 0.0
  %1369 = vmatpush.msra.mxu0 0.0
  %1370 = vmatpush.msra.mxu0 0.0
  %1371 = vmatpush.msra.mxu0 0.0
  %1372 = vmatpush.msra.mxu0 0.0
  %1373 = vmatpush.msra.mxu0 0.0
  %1374 = vmatpush.msra.mxu0 0.0
  %1375 = vmatpush.msra.mxu0 0.0
  %1376 = vmatpush.msra.mxu0 %v637
  %1377 = vmatpush.msra.mxu0 %v636
  %1378 = vmatpush.msra.mxu0 %v635
  %1379 = vmatpush.msra.mxu0 %v634
  %1380 = vmatmul.f32.gmra.mxu0 %v1362
  %v1381 = vpop.f32.mrf.mxu0
  %v1382 = vadd.f32 0.0, %v1381
  %1383 = vdwg.mxu0
  %v1384 = vadd.f32 %v724, %v1382
  %v1385 = vxor.u32 %v1384, 2147483648
  %v1386 = vmul.f32 %v1385, 1.442695
  %v1387 = vpow.pop %v1386
  %v1388 = vadd.f32 %v1387, 1.0
  %v1389 = vrcp.pop %v1388
  %v1390 = vmul.f32 %v1388, %v1389
  %v1391 = vsub.f32 1.0, %v1390
  %v1392 = vmul.f32 %v1389, %v1391
  %v1393 = vadd.f32 %v1389, %v1392
  %vm1394 = vweird.f32 %v1388
  %vm1395 = vweird.f32 %v1389
  %vm1396 = vmor %vm1394, %vm1395
  %v1397 = vsel %vm1396, %v1389, %v1393
  %v1398 = vand.u32 2147483647, %v1388
  %vm1399 = vcmp.eq.f32.partialorder %v1398, 8.507059e+37
  %v1400 = vand.u32 %v1388, 2147483648
  %v1401 = vor.u32 1.1754944e-38, %v1400
  %v1402 = vsel %vm1399, %v1401, %v1397
  %v1403 = vmul.f32 1.0, %v1402
  %v1404 = vadd.f32 %v1382, %v882
  %1406 = vrot.lane.b32.xlu0 %v1404, 64
  %v1407 = vpop.permute.xlu0 %1406
  %v1409 = vmul.f32 %v1403, %v1407
  %1411 = vrot.lane.b32.xlu0 %v1409, 64
  %v1412 = vpop.permute.xlu0 %1411
  %v1414 = vadd.f32 %v724, %v1412
  %v1415 = vtanh.pop %v1414
  %v1416 = vsub.f32 1.0, %v1403
  %1418 = vrot.lane.b32.xlu0 %v1415, 96
  %v1419 = vpop.permute.xlu0 %1418
  %v1421 = vmul.f32 %v1416, %v1419
  %v1422 = vmul.f32 %v1403, %v1358
  %v1423 = vadd.f32 %v1421, %v1422
  %1425 = vrot.lane.b32.xlu0 %v1423, 96
  %v1426 = vpop.permute.xlu0 %1425
  %v1427 = vsel %vm333, %v1426, 0
  %1429 = vmatpush.msra.mxu0 0.0
  %1430 = vmatpush.msra.mxu0 0.0
  %1431 = vmatpush.msra.mxu0 0.0
  %1432 = vmatpush.msra.mxu0 0.0
  %1433 = vmatpush.msra.mxu0 0.0
  %1434 = vmatpush.msra.mxu0 0.0
  %1435 = vmatpush.msra.mxu0 0.0
  %1436 = vmatpush.msra.mxu0 0.0
  %1437 = vmatpush.msra.mxu0 0.0
  %1438 = vmatpush.msra.mxu0 0.0
  %1439 = vmatpush.msra.mxu0 0.0
  %1440 = vmatpush.msra.mxu0 0.0
  %1441 = vmatpush.msra.mxu0 %v637
  %1442 = vmatpush.msra.mxu0 %v636
  %1443 = vmatpush.msra.mxu0 %v635
  %1444 = vmatpush.msra.mxu0 %v634
  %1445 = vmatmul.f32.gmra.mxu0 %v1427
  %v1446 = vpop.f32.mrf.mxu0
  %v1447 = vadd.f32 0.0, %v1446
  %1448 = vdwg.mxu0
  %v1449 = vadd.f32 %v727, %v1447
  %v1450 = vxor.u32 %v1449, 2147483648
  %v1451 = vmul.f32 %v1450, 1.442695
  %v1452 = vpow.pop %v1451
  %v1453 = vadd.f32 %v1452, 1.0
  %v1454 = vrcp.pop %v1453
  %v1455 = vmul.f32 %v1453, %v1454
  %v1456 = vsub.f32 1.0, %v1455
  %v1457 = vmul.f32 %v1454, %v1456
  %v1458 = vadd.f32 %v1454, %v1457
  %vm1459 = vweird.f32 %v1453
  %vm1460 = vweird.f32 %v1454
  %vm1461 = vmor %vm1459, %vm1460
  %v1462 = vsel %vm1461, %v1454, %v1458
  %v1463 = vand.u32 2147483647, %v1453
  %vm1464 = vcmp.eq.f32.partialorder %v1463, 8.507059e+37
  %v1465 = vand.u32 %v1453, 2147483648
  %v1466 = vor.u32 1.1754944e-38, %v1465
  %v1467 = vsel %vm1464, %v1466, %v1462
  %v1468 = vmul.f32 1.0, %v1467
  %v1469 = vadd.f32 %v1447, %v882
  %1471 = vrot.lane.b32.xlu0 %v1469, 64
  %v1472 = vpop.permute.xlu0 %1471
  %v1474 = vmul.f32 %v1468, %v1472
  %1476 = vrot.lane.b32.xlu0 %v1474, 64
  %v1477 = vpop.permute.xlu0 %1476
  %v1479 = vadd.f32 %v727, %v1477
  %v1480 = vtanh.pop %v1479
  %v1481 = vsub.f32 1.0, %v1468
  %1483 = vrot.lane.b32.xlu0 %v1480, 96
  %v1484 = vpop.permute.xlu0 %1483
  %v1486 = vmul.f32 %v1481, %v1484
  %v1487 = vmul.f32 %v1468, %v1423
  %v1488 = vadd.f32 %v1486, %v1487
  %1490 = vrot.lane.b32.xlu0 %v1488, 96
  %v1491 = vpop.permute.xlu0 %1490
  %v1492 = vsel %vm333, %v1491, 0
  %1494 = vmatpush.msra.mxu0 0.0
  %1495 = vmatpush.msra.mxu0 0.0
  %1496 = vmatpush.msra.mxu0 0.0
  %1497 = vmatpush.msra.mxu0 0.0
  %1498 = vmatpush.msra.mxu0 0.0
  %1499 = vmatpush.msra.mxu0 0.0
  %1500 = vmatpush.msra.mxu0 0.0
  %1501 = vmatpush.msra.mxu0 0.0
  %1502 = vmatpush.msra.mxu0 0.0
  %1503 = vmatpush.msra.mxu0 0.0
  %1504 = vmatpush.msra.mxu0 0.0
  %1505 = vmatpush.msra.mxu0 0.0
  %1506 = vmatpush.msra.mxu0 %v637
  %1507 = vmatpush.msra.mxu0 %v636
  %1508 = vmatpush.msra.mxu0 %v635
  %1509 = vmatpush.msra.mxu0 %v634
  %1510 = vmatmul.f32.gmra.mxu0 %v1492
  %v1511 = vpop.f32.mrf.mxu0
  %v1512 = vadd.f32 0.0, %v1511
  %1513 = vdwg.mxu0
  %v1514 = vadd.f32 %v730, %v1512
  %v1515 = vxor.u32 %v1514, 2147483648
  %v1516 = vmul.f32 %v1515, 1.442695
  %v1517 = vpow.pop %v1516
  %v1518 = vadd.f32 %v1517, 1.0
  %v1519 = vrcp.pop %v1518
  %v1520 = vmul.f32 %v1518, %v1519
  %v1521 = vsub.f32 1.0, %v1520
  %v1522 = vmul.f32 %v1519, %v1521
  %v1523 = vadd.f32 %v1519, %v1522
  %vm1524 = vweird.f32 %v1518
  %vm1525 = vweird.f32 %v1519
  %vm1526 = vmor %vm1524, %vm1525
  %v1527 = vsel %vm1526, %v1519, %v1523
  %v1528 = vand.u32 2147483647, %v1518
  %vm1529 = vcmp.eq.f32.partialorder %v1528, 8.507059e+37
  %v1530 = vand.u32 %v1518, 2147483648
  %v1531 = vor.u32 1.1754944e-38, %v1530
  %v1532 = vsel %vm1529, %v1531, %v1527
  %v1533 = vmul.f32 1.0, %v1532
  %v1534 = vadd.f32 %v1512, %v882
  %1536 = vrot.lane.b32.xlu0 %v1534, 64
  %v1537 = vpop.permute.xlu0 %1536
  %v1539 = vmul.f32 %v1533, %v1537
  %1541 = vrot.lane.b32.xlu0 %v1539, 64
  %v1542 = vpop.permute.xlu0 %1541
  %v1544 = vadd.f32 %v730, %v1542
  %v1545 = vtanh.pop %v1544
  %v1546 = vsub.f32 1.0, %v1533
  %1548 = vrot.lane.b32.xlu0 %v1545, 96
  %v1549 = vpop.permute.xlu0 %1548
  %v1551 = vmul.f32 %v1546, %v1549
  %v1552 = vmul.f32 %v1533, %v1488
  %v1553 = vadd.f32 %v1551, %v1552
  %1555 = vrot.lane.b32.xlu0 %v1553, 96
  %v1556 = vpop.permute.xlu0 %1555
  %v1557 = vsel %vm333, %v1556, 0
  %1559 = vmatpush.msra.mxu0 0.0
  %1560 = vmatpush.msra.mxu0 0.0
  %1561 = vmatpush.msra.mxu0 0.0
  %1562 = vmatpush.msra.mxu0 0.0
  %1563 = vmatpush.msra.mxu0 0.0
  %1564 = vmatpush.msra.mxu0 0.0
  %1565 = vmatpush.msra.mxu0 0.0
  %1566 = vmatpush.msra.mxu0 0.0
  %1567 = vmatpush.msra.mxu0 0.0
  %1568 = vmatpush.msra.mxu0 0.0
  %1569 = vmatpush.msra.mxu0 0.0
  %1570 = vmatpush.msra.mxu0 0.0
  %1571 = vmatpush.msra.mxu0 %v637
  %1572 = vmatpush.msra.mxu0 %v636
  %1573 = vmatpush.msra.mxu0 %v635
  %1574 = vmatpush.msra.mxu0 %v634
  %1575 = vmatmul.f32.gmra.mxu0 %v1557
  %v1576 = vpop.f32.mrf.mxu0
  %v1577 = vadd.f32 0.0, %v1576
  %1578 = vdwg.mxu0
  %v1579 = vadd.f32 %v733, %v1577
  %v1580 = vxor.u32 %v1579, 2147483648
  %v1581 = vmul.f32 %v1580, 1.442695
  %v1582 = vpow.pop %v1581
  %v1583 = vadd.f32 %v1582, 1.0
  %v1584 = vrcp.pop %v1583
  %v1585 = vmul.f32 %v1583, %v1584
  %v1586 = vsub.f32 1.0, %v1585
  %v1587 = vmul.f32 %v1584, %v1586
  %v1588 = vadd.f32 %v1584, %v1587
  %vm1589 = vweird.f32 %v1583
  %vm1590 = vweird.f32 %v1584
  %vm1591 = vmor %vm1589, %vm1590
  %v1592 = vsel %vm1591, %v1584, %v1588
  %v1593 = vand.u32 2147483647, %v1583
  %vm1594 = vcmp.eq.f32.partialorder %v1593, 8.507059e+37
  %v1595 = vand.u32 %v1583, 2147483648
  %v1596 = vor.u32 1.1754944e-38, %v1595
  %v1597 = vsel %vm1594, %v1596, %v1592
  %v1598 = vmul.f32 1.0, %v1597
  %v1599 = vadd.f32 %v1577, %v882
  %1601 = vrot.lane.b32.xlu0 %v1599, 64
  %v1602 = vpop.permute.xlu0 %1601
  %v1604 = vmul.f32 %v1598, %v1602
  %1606 = vrot.lane.b32.xlu0 %v1604, 64
  %v1607 = vpop.permute.xlu0 %1606
  %v1609 = vadd.f32 %v733, %v1607
  %v1610 = vtanh.pop %v1609
  %v1611 = vsub.f32 1.0, %v1598
  %1613 = vrot.lane.b32.xlu0 %v1610, 96
  %v1614 = vpop.permute.xlu0 %1613
  %v1616 = vmul.f32 %v1611, %v1614
  %v1617 = vmul.f32 %v1598, %v1553
  %v1618 = vadd.f32 %v1616, %v1617
  %1620 = vrot.lane.b32.xlu0 %v1618, 96
  %v1621 = vpop.permute.xlu0 %1620
  %v1622 = vsel %vm333, %v1621, 0
  %1624 = vmatpush.msra.mxu0 0.0
  %1625 = vmatpush.msra.mxu0 0.0
  %1626 = vmatpush.msra.mxu0 0.0
  %1627 = vmatpush.msra.mxu0 0.0
  %1628 = vmatpush.msra.mxu0 0.0
  %1629 = vmatpush.msra.mxu0 0.0
  %1630 = vmatpush.msra.mxu0 0.0
  %1631 = vmatpush.msra.mxu0 0.0
  %1632 = vmatpush.msra.mxu0 0.0
  %1633 = vmatpush.msra.mxu0 0.0
  %1634 = vmatpush.msra.mxu0 0.0
  %1635 = vmatpush.msra.mxu0 0.0
  %1636 = vmatpush.msra.mxu0 %v637
  %1637 = vmatpush.msra.mxu0 %v636
  %1638 = vmatpush.msra.mxu0 %v635
  %1639 = vmatpush.msra.mxu0 %v634
  %1640 = vmatmul.f32.gmra.mxu0 %v1622
  %v1641 = vpop.f32.mrf.mxu0
  %v1642 = vadd.f32 0.0, %v1641
  %1643 = vdwg.mxu0
  %v1644 = vadd.f32 %v736, %v1642
  %v1645 = vxor.u32 %v1644, 2147483648
  %v1646 = vmul.f32 %v1645, 1.442695
  %v1647 = vpow.pop %v1646
  %v1648 = vadd.f32 %v1647, 1.0
  %v1649 = vrcp.pop %v1648
  %v1650 = vmul.f32 %v1648, %v1649
  %v1651 = vsub.f32 1.0, %v1650
  %v1652 = vmul.f32 %v1649, %v1651
  %v1653 = vadd.f32 %v1649, %v1652
  %vm1654 = vweird.f32 %v1648
  %vm1655 = vweird.f32 %v1649
  %vm1656 = vmor %vm1654, %vm1655
  %v1657 = vsel %vm1656, %v1649, %v1653
  %v1658 = vand.u32 2147483647, %v1648
  %vm1659 = vcmp.eq.f32.partialorder %v1658, 8.507059e+37
  %v1660 = vand.u32 %v1648, 2147483648
  %v1661 = vor.u32 1.1754944e-38, %v1660
  %v1662 = vsel %vm1659, %v1661, %v1657
  %v1663 = vmul.f32 1.0, %v1662
  %v1664 = vadd.f32 %v1642, %v882
  %1666 = vrot.lane.b32.xlu0 %v1664, 64
  %v1667 = vpop.permute.xlu0 %1666
  %v1669 = vmul.f32 %v1663, %v1667
  %1671 = vrot.lane.b32.xlu0 %v1669, 64
  %v1672 = vpop.permute.xlu0 %1671
  %v1674 = vadd.f32 %v736, %v1672
  %v1675 = vtanh.pop %v1674
  %v1676 = vsub.f32 1.0, %v1663
  %1678 = vrot.lane.b32.xlu0 %v1675, 96
  %v1679 = vpop.permute.xlu0 %1678
  %v1681 = vmul.f32 %v1676, %v1679
  %v1682 = vmul.f32 %v1663, %v1618
  %v1683 = vadd.f32 %v1681, %v1682
  %1685 = vrot.lane.b32.xlu0 %v1683, 96
  %v1686 = vpop.permute.xlu0 %1685
  %v1687 = vsel %vm333, %v1686, 0
  %1689 = vmatpush.msra.mxu0 0.0
  %1690 = vmatpush.msra.mxu0 0.0
  %1691 = vmatpush.msra.mxu0 0.0
  %1692 = vmatpush.msra.mxu0 0.0
  %1693 = vmatpush.msra.mxu0 0.0
  %1694 = vmatpush.msra.mxu0 0.0
  %1695 = vmatpush.msra.mxu0 0.0
  %1696 = vmatpush.msra.mxu0 0.0
  %1697 = vmatpush.msra.mxu0 0.0
  %1698 = vmatpush.msra.mxu0 0.0
  %1699 = vmatpush.msra.mxu0 0.0
  %1700 = vmatpush.msra.mxu0 0.0
  %1701 = vmatpush.msra.mxu0 %v637
  %1702 = vmatpush.msra.mxu0 %v636
  %1703 = vmatpush.msra.mxu0 %v635
  %1704 = vmatpush.msra.mxu0 %v634
  %1705 = vmatmul.f32.gmra.mxu0 %v1687
  %v1706 = vpop.f32.mrf.mxu0
  %v1707 = vadd.f32 0.0, %v1706
  %1708 = vdwg.mxu0
  %v1709 = vadd.f32 %v739, %v1707
  %v1710 = vxor.u32 %v1709, 2147483648
  %v1711 = vmul.f32 %v1710, 1.442695
  %v1712 = vpow.pop %v1711
  %v1713 = vadd.f32 %v1712, 1.0
  %v1714 = vrcp.pop %v1713
  %v1715 = vmul.f32 %v1713, %v1714
  %v1716 = vsub.f32 1.0, %v1715
  %v1717 = vmul.f32 %v1714, %v1716
  %v1718 = vadd.f32 %v1714, %v1717
  %vm1719 = vweird.f32 %v1713
  %vm1720 = vweird.f32 %v1714
  %vm1721 = vmor %vm1719, %vm1720
  %v1722 = vsel %vm1721, %v1714, %v1718
  %v1723 = vand.u32 2147483647, %v1713
  %vm1724 = vcmp.eq.f32.partialorder %v1723, 8.507059e+37
  %v1725 = vand.u32 %v1713, 2147483648
  %v1726 = vor.u32 1.1754944e-38, %v1725
  %v1727 = vsel %vm1724, %v1726, %v1722
  %v1728 = vmul.f32 1.0, %v1727
  %v1729 = vadd.f32 %v1707, %v882
  %1731 = vrot.lane.b32.xlu0 %v1729, 64
  %v1732 = vpop.permute.xlu0 %1731
  %v1734 = vmul.f32 %v1728, %v1732
  %1736 = vrot.lane.b32.xlu0 %v1734, 64
  %v1737 = vpop.permute.xlu0 %1736
  %v1739 = vadd.f32 %v739, %v1737
  %v1740 = vtanh.pop %v1739
  %v1741 = vsub.f32 1.0, %v1728
  %1743 = vrot.lane.b32.xlu0 %v1740, 96
  %v1744 = vpop.permute.xlu0 %1743
  %v1746 = vmul.f32 %v1741, %v1744
  %v1747 = vmul.f32 %v1728, %v1683
  %v1748 = vadd.f32 %v1746, %v1747
  %1750 = vrot.lane.b32.xlu0 %v1748, 96
  %v1751 = vpop.permute.xlu0 %1750
  %v1752 = vsel %vm333, %v1751, 0
  %1754 = vmatpush.msra.mxu0 0.0
  %1755 = vmatpush.msra.mxu0 0.0
  %1756 = vmatpush.msra.mxu0 0.0
  %1757 = vmatpush.msra.mxu0 0.0
  %1758 = vmatpush.msra.mxu0 0.0
  %1759 = vmatpush.msra.mxu0 0.0
  %1760 = vmatpush.msra.mxu0 0.0
  %1761 = vmatpush.msra.mxu0 0.0
  %1762 = vmatpush.msra.mxu0 0.0
  %1763 = vmatpush.msra.mxu0 0.0
  %1764 = vmatpush.msra.mxu0 0.0
  %1765 = vmatpush.msra.mxu0 0.0
  %1766 = vmatpush.msra.mxu0 %v637
  %1767 = vmatpush.msra.mxu0 %v636
  %1768 = vmatpush.msra.mxu0 %v635
  %1769 = vmatpush.msra.mxu0 %v634
  %1770 = vmatmul.f32.gmra.mxu0 %v1752
  %v1771 = vpop.f32.mrf.mxu0
  %v1772 = vadd.f32 0.0, %v1771
  %1773 = vdwg.mxu0
  %v1774 = vadd.f32 %v798, %v1772
  %v1775 = vxor.u32 %v1774, 2147483648
  %v1776 = vmul.f32 %v1775, 1.442695
  %v1777 = vpow.pop %v1776
  %v1778 = vadd.f32 %v1777, 1.0
  %v1779 = vrcp.pop %v1778
  %v1780 = vmul.f32 %v1778, %v1779
  %v1781 = vsub.f32 1.0, %v1780
  %v1782 = vmul.f32 %v1779, %v1781
  %v1783 = vadd.f32 %v1779, %v1782
  %vm1784 = vweird.f32 %v1778
  %vm1785 = vweird.f32 %v1779
  %vm1786 = vmor %vm1784, %vm1785
  %v1787 = vsel %vm1786, %v1779, %v1783
  %v1788 = vand.u32 2147483647, %v1778
  %vm1789 = vcmp.eq.f32.partialorder %v1788, 8.507059e+37
  %v1790 = vand.u32 %v1778, 2147483648
  %v1791 = vor.u32 1.1754944e-38, %v1790
  %v1792 = vsel %vm1789, %v1791, %v1787
  %v1793 = vmul.f32 1.0, %v1792
  %v1794 = vadd.f32 %v1772, %v882
  %1796 = vrot.lane.b32.xlu0 %v1794, 64
  %v1797 = vpop.permute.xlu0 %1796
  %v1799 = vmul.f32 %v1793, %v1797
  %1801 = vrot.lane.b32.xlu0 %v1799, 64
  %v1802 = vpop.permute.xlu0 %1801
  %v1804 = vadd.f32 %v798, %v1802
  %v1805 = vtanh.pop %v1804
  %v1806 = vsub.f32 1.0, %v1793
  %1808 = vrot.lane.b32.xlu0 %v1805, 96
  %v1809 = vpop.permute.xlu0 %1808
  %v1811 = vmul.f32 %v1806, %v1809
  %v1812 = vmul.f32 %v1793, %v1748
  %v1813 = vadd.f32 %v1811, %v1812
  %1815 = vrot.lane.b32.xlu0 %v1813, 96
  %v1816 = vpop.permute.xlu0 %1815
  %v1817 = vsel %vm333, %v1816, 0
  %1819 = vmatpush.msra.mxu0 0.0
  %1820 = vmatpush.msra.mxu0 0.0
  %1821 = vmatpush.msra.mxu0 0.0
  %1822 = vmatpush.msra.mxu0 0.0
  %1823 = vmatpush.msra.mxu0 0.0
  %1824 = vmatpush.msra.mxu0 0.0
  %1825 = vmatpush.msra.mxu0 0.0
  %1826 = vmatpush.msra.mxu0 0.0
  %1827 = vmatpush.msra.mxu0 0.0
  %1828 = vmatpush.msra.mxu0 0.0
  %1829 = vmatpush.msra.mxu0 0.0
  %1830 = vmatpush.msra.mxu0 0.0
  %1831 = vmatpush.msra.mxu0 %v637
  %1832 = vmatpush.msra.mxu0 %v636
  %1833 = vmatpush.msra.mxu0 %v635
  %1834 = vmatpush.msra.mxu0 %v634
  %1835 = vmatmul.f32.gmra.mxu0 %v1817
  %v1836 = vpop.f32.mrf.mxu0
  %v1837 = vadd.f32 0.0, %v1836
  %1838 = vdwg.mxu0
  %v1839 = vadd.f32 %v801, %v1837
  %v1840 = vxor.u32 %v1839, 2147483648
  %v1841 = vmul.f32 %v1840, 1.442695
  %v1842 = vpow.pop %v1841
  %v1843 = vadd.f32 %v1842, 1.0
  %v1844 = vrcp.pop %v1843
  %v1845 = vmul.f32 %v1843, %v1844
  %v1846 = vsub.f32 1.0, %v1845
  %v1847 = vmul.f32 %v1844, %v1846
  %v1848 = vadd.f32 %v1844, %v1847
  %vm1849 = vweird.f32 %v1843
  %vm1850 = vweird.f32 %v1844
  %vm1851 = vmor %vm1849, %vm1850
  %v1852 = vsel %vm1851, %v1844, %v1848
  %v1853 = vand.u32 2147483647, %v1843
  %vm1854 = vcmp.eq.f32.partialorder %v1853, 8.507059e+37
  %v1855 = vand.u32 %v1843, 2147483648
  %v1856 = vor.u32 1.1754944e-38, %v1855
  %v1857 = vsel %vm1854, %v1856, %v1852
  %v1858 = vmul.f32 1.0, %v1857
  %v1859 = vadd.f32 %v1837, %v882
  %1861 = vrot.lane.b32.xlu0 %v1859, 64
  %v1862 = vpop.permute.xlu0 %1861
  %v1864 = vmul.f32 %v1858, %v1862
  %1866 = vrot.lane.b32.xlu0 %v1864, 64
  %v1867 = vpop.permute.xlu0 %1866
  %v1869 = vadd.f32 %v801, %v1867
  %v1870 = vtanh.pop %v1869
  %v1871 = vsub.f32 1.0, %v1858
  %1873 = vrot.lane.b32.xlu0 %v1870, 96
  %v1874 = vpop.permute.xlu0 %1873
  %v1876 = vmul.f32 %v1871, %v1874
  %v1877 = vmul.f32 %v1858, %v1813
  %v1878 = vadd.f32 %v1876, %v1877
  %1880 = vrot.lane.b32.xlu0 %v1878, 96
  %v1881 = vpop.permute.xlu0 %1880
  %v1882 = vsel %vm333, %v1881, 0
  %1884 = vmatpush.msra.mxu0 0.0
  %1885 = vmatpush.msra.mxu0 0.0
  %1886 = vmatpush.msra.mxu0 0.0
  %1887 = vmatpush.msra.mxu0 0.0
  %1888 = vmatpush.msra.mxu0 0.0
  %1889 = vmatpush.msra.mxu0 0.0
  %1890 = vmatpush.msra.mxu0 0.0
  %1891 = vmatpush.msra.mxu0 0.0
  %1892 = vmatpush.msra.mxu0 0.0
  %1893 = vmatpush.msra.mxu0 0.0
  %1894 = vmatpush.msra.mxu0 0.0
  %1895 = vmatpush.msra.mxu0 0.0
  %1896 = vmatpush.msra.mxu0 %v637
  %1897 = vmatpush.msra.mxu0 %v636
  %1898 = vmatpush.msra.mxu0 %v635
  %1899 = vmatpush.msra.mxu0 %v634
  %1900 = vmatmul.f32.gmra.mxu0 %v1882
  %v1901 = vpop.f32.mrf.mxu0
  %v1902 = vadd.f32 0.0, %v1901
  %1903 = vdwg.mxu0
  %v1904 = vadd.f32 %v804, %v1902
  %v1905 = vxor.u32 %v1904, 2147483648
  %v1906 = vmul.f32 %v1905, 1.442695
  %v1907 = vpow.pop %v1906
  %v1908 = vadd.f32 %v1907, 1.0
  %v1909 = vrcp.pop %v1908
  %v1910 = vmul.f32 %v1908, %v1909
  %v1911 = vsub.f32 1.0, %v1910
  %v1912 = vmul.f32 %v1909, %v1911
  %v1913 = vadd.f32 %v1909, %v1912
  %vm1914 = vweird.f32 %v1908
  %vm1915 = vweird.f32 %v1909
  %vm1916 = vmor %vm1914, %vm1915
  %v1917 = vsel %vm1916, %v1909, %v1913
  %v1918 = vand.u32 2147483647, %v1908
  %vm1919 = vcmp.eq.f32.partialorder %v1918, 8.507059e+37
  %v1920 = vand.u32 %v1908, 2147483648
  %v1921 = vor.u32 1.1754944e-38, %v1920
  %v1922 = vsel %vm1919, %v1921, %v1917
  %v1923 = vmul.f32 1.0, %v1922
  %v1924 = vadd.f32 %v1902, %v882
  %1926 = vrot.lane.b32.xlu0 %v1924, 64
  %v1927 = vpop.permute.xlu0 %1926
  %v1929 = vmul.f32 %v1923, %v1927
  %1931 = vrot.lane.b32.xlu0 %v1929, 64
  %v1932 = vpop.permute.xlu0 %1931
  %v1934 = vadd.f32 %v804, %v1932
  %v1935 = vtanh.pop %v1934
  %v1936 = vsub.f32 1.0, %v1923
  %1938 = vrot.lane.b32.xlu0 %v1935, 96
  %v1939 = vpop.permute.xlu0 %1938
  %v1941 = vmul.f32 %v1936, %v1939
  %v1942 = vmul.f32 %v1923, %v1878
  %v1943 = vadd.f32 %v1941, %v1942
  %1945 = vrot.lane.b32.xlu0 %v1943, 96
  %v1946 = vpop.permute.xlu0 %1945
  %v1947 = vsel %vm333, %v1946, 0
  %1949 = vmatpush.msra.mxu0 0.0
  %1950 = vmatpush.msra.mxu0 0.0
  %1951 = vmatpush.msra.mxu0 0.0
  %1952 = vmatpush.msra.mxu0 0.0
  %1953 = vmatpush.msra.mxu0 0.0
  %1954 = vmatpush.msra.mxu0 0.0
  %1955 = vmatpush.msra.mxu0 0.0
  %1956 = vmatpush.msra.mxu0 0.0
  %1957 = vmatpush.msra.mxu0 0.0
  %1958 = vmatpush.msra.mxu0 0.0
  %1959 = vmatpush.msra.mxu0 0.0
  %1960 = vmatpush.msra.mxu0 0.0
  %1961 = vmatpush.msra.mxu0 %v637
  %1962 = vmatpush.msra.mxu0 %v636
  %1963 = vmatpush.msra.mxu0 %v635
  %1964 = vmatpush.msra.mxu0 %v634
  %1965 = vmatmul.f32.gmra.mxu0 %v1947
  %v1966 = vpop.f32.mrf.mxu0
  %v1967 = vadd.f32 0.0, %v1966
  %1968 = vdwg.mxu0
  %v1969 = vadd.f32 %v807, %v1967
  %v1970 = vxor.u32 %v1969, 2147483648
  %v1971 = vmul.f32 %v1970, 1.442695
  %v1972 = vpow.pop %v1971
  %v1973 = vadd.f32 %v1972, 1.0
  %v1974 = vrcp.pop %v1973
  %v1975 = vmul.f32 %v1973, %v1974
  %v1976 = vsub.f32 1.0, %v1975
  %v1977 = vmul.f32 %v1974, %v1976
  %v1978 = vadd.f32 %v1974, %v1977
  %vm1979 = vweird.f32 %v1973
  %vm1980 = vweird.f32 %v1974
  %vm1981 = vmor %vm1979, %vm1980
  %v1982 = vsel %vm1981, %v1974, %v1978
  %v1983 = vand.u32 2147483647, %v1973
  %vm1984 = vcmp.eq.f32.partialorder %v1983, 8.507059e+37
  %v1985 = vand.u32 %v1973, 2147483648
  %v1986 = vor.u32 1.1754944e-38, %v1985
  %v1987 = vsel %vm1984, %v1986, %v1982
  %v1988 = vmul.f32 1.0, %v1987
  %v1989 = vadd.f32 %v1967, %v882
  %1991 = vrot.lane.b32.xlu0 %v1989, 64
  %v1992 = vpop.permute.xlu0 %1991
  %v1994 = vmul.f32 %v1988, %v1992
  %1996 = vrot.lane.b32.xlu0 %v1994, 64
  %v1997 = vpop.permute.xlu0 %1996
  %v1999 = vadd.f32 %v807, %v1997
  %v2000 = vtanh.pop %v1999
  %v2001 = vsub.f32 1.0, %v1988
  %2003 = vrot.lane.b32.xlu0 %v2000, 96
  %v2004 = vpop.permute.xlu0 %2003
  %v2006 = vmul.f32 %v2001, %v2004
  %v2007 = vmul.f32 %v1988, %v1943
  %v2008 = vadd.f32 %v2006, %v2007
  %2010 = vrot.lane.b32.xlu0 %v2008, 96
  %v2011 = vpop.permute.xlu0 %2010
  %v2012 = vsel %vm333, %v2011, 0
  %2014 = vmatpush.msra.mxu0 0.0
  %2015 = vmatpush.msra.mxu0 0.0
  %2016 = vmatpush.msra.mxu0 0.0
  %2017 = vmatpush.msra.mxu0 0.0
  %2018 = vmatpush.msra.mxu0 0.0
  %2019 = vmatpush.msra.mxu0 0.0
  %2020 = vmatpush.msra.mxu0 0.0
  %2021 = vmatpush.msra.mxu0 0.0
  %2022 = vmatpush.msra.mxu0 0.0
  %2023 = vmatpush.msra.mxu0 0.0
  %2024 = vmatpush.msra.mxu0 0.0
  %2025 = vmatpush.msra.mxu0 0.0
  %2026 = vmatpush.msra.mxu0 %v637
  %2027 = vmatpush.msra.mxu0 %v636
  %2028 = vmatpush.msra.mxu0 %v635
  %2029 = vmatpush.msra.mxu0 %v634
  %2030 = vmatmul.f32.gmra.mxu0 %v2012
  %v2031 = vpop.f32.mrf.mxu0
  %v2032 = vadd.f32 0.0, %v2031
  %2033 = vdwg.mxu0
  %v2034 = vadd.f32 %v810, %v2032
  %v2035 = vxor.u32 %v2034, 2147483648
  %v2036 = vmul.f32 %v2035, 1.442695
  %v2037 = vpow.pop %v2036
  %v2038 = vadd.f32 %v2037, 1.0
  %v2039 = vrcp.pop %v2038
  %v2040 = vmul.f32 %v2038, %v2039
  %v2041 = vsub.f32 1.0, %v2040
  %v2042 = vmul.f32 %v2039, %v2041
  %v2043 = vadd.f32 %v2039, %v2042
  %vm2044 = vweird.f32 %v2038
  %vm2045 = vweird.f32 %v2039
  %vm2046 = vmor %vm2044, %vm2045
  %v2047 = vsel %vm2046, %v2039, %v2043
  %v2048 = vand.u32 2147483647, %v2038
  %vm2049 = vcmp.eq.f32.partialorder %v2048, 8.507059e+37
  %v2050 = vand.u32 %v2038, 2147483648
  %v2051 = vor.u32 1.1754944e-38, %v2050
  %v2052 = vsel %vm2049, %v2051, %v2047
  %v2053 = vmul.f32 1.0, %v2052
  %v2054 = vadd.f32 %v2032, %v882
  %2056 = vrot.lane.b32.xlu0 %v2054, 64
  %v2057 = vpop.permute.xlu0 %2056
  %v2059 = vmul.f32 %v2053, %v2057
  %2061 = vrot.lane.b32.xlu0 %v2059, 64
  %v2062 = vpop.permute.xlu0 %2061
  %v2064 = vadd.f32 %v810, %v2062
  %v2065 = vtanh.pop %v2064
  %v2066 = vsub.f32 1.0, %v2053
  %2068 = vrot.lane.b32.xlu0 %v2065, 96
  %v2069 = vpop.permute.xlu0 %2068
  %v2071 = vmul.f32 %v2066, %v2069
  %v2072 = vmul.f32 %v2053, %v2008
  %v2073 = vadd.f32 %v2071, %v2072
  %2075 = vrot.lane.b32.xlu0 %v2073, 96
  %v2076 = vpop.permute.xlu0 %2075
  %v2077 = vsel %vm333, %v2076, 0
  %2079 = vmatpush.msra.mxu0 0.0
  %2080 = vmatpush.msra.mxu0 0.0
  %2081 = vmatpush.msra.mxu0 0.0
  %2082 = vmatpush.msra.mxu0 0.0
  %2083 = vmatpush.msra.mxu0 0.0
  %2084 = vmatpush.msra.mxu0 0.0
  %2085 = vmatpush.msra.mxu0 0.0
  %2086 = vmatpush.msra.mxu0 0.0
  %2087 = vmatpush.msra.mxu0 0.0
  %2088 = vmatpush.msra.mxu0 0.0
  %2089 = vmatpush.msra.mxu0 0.0
  %2090 = vmatpush.msra.mxu0 0.0
  %2091 = vmatpush.msra.mxu0 %v637
  %2092 = vmatpush.msra.mxu0 %v636
  %2093 = vmatpush.msra.mxu0 %v635
  %2094 = vmatpush.msra.mxu0 %v634
  %2095 = vmatmul.f32.gmra.mxu0 %v2077
  %v2096 = vpop.f32.mrf.mxu0
  %v2097 = vadd.f32 0.0, %v2096
  %2098 = vdwg.mxu0
  %v2099 = vadd.f32 %v813, %v2097
  %v2100 = vxor.u32 %v2099, 2147483648
  %v2101 = vmul.f32 %v2100, 1.442695
  %v2102 = vpow.pop %v2101
  %v2103 = vadd.f32 %v2102, 1.0
  %v2104 = vrcp.pop %v2103
  %v2105 = vmul.f32 %v2103, %v2104
  %v2106 = vsub.f32 1.0, %v2105
  %v2107 = vmul.f32 %v2104, %v2106
  %v2108 = vadd.f32 %v2104, %v2107
  %vm2109 = vweird.f32 %v2103
  %vm2110 = vweird.f32 %v2104
  %vm2111 = vmor %vm2109, %vm2110
  %v2112 = vsel %vm2111, %v2104, %v2108
  %v2113 = vand.u32 2147483647, %v2103
  %vm2114 = vcmp.eq.f32.partialorder %v2113, 8.507059e+37
  %v2115 = vand.u32 %v2103, 2147483648
  %v2116 = vor.u32 1.1754944e-38, %v2115
  %v2117 = vsel %vm2114, %v2116, %v2112
  %v2118 = vmul.f32 1.0, %v2117
  %v2119 = vadd.f32 %v2097, %v882
  %2121 = vrot.lane.b32.xlu0 %v2119, 64
  %v2122 = vpop.permute.xlu0 %2121
  %v2124 = vmul.f32 %v2118, %v2122
  %2126 = vrot.lane.b32.xlu0 %v2124, 64
  %v2127 = vpop.permute.xlu0 %2126
  %v2129 = vadd.f32 %v813, %v2127
  %v2130 = vtanh.pop %v2129
  %v2131 = vsub.f32 1.0, %v2118
  %2133 = vrot.lane.b32.xlu0 %v2130, 96
  %v2134 = vpop.permute.xlu0 %2133
  %v2136 = vmul.f32 %v2131, %v2134
  %v2137 = vmul.f32 %v2118, %v2073
  %v2138 = vadd.f32 %v2136, %v2137
  %2140 = vrot.lane.b32.xlu0 %v2138, 96
  %v2141 = vpop.permute.xlu0 %2140
  %v2142 = vsel %vm333, %v2141, 0
  %2144 = vmatpush.msra.mxu0 0.0
  %2145 = vmatpush.msra.mxu0 0.0
  %2146 = vmatpush.msra.mxu0 0.0
  %2147 = vmatpush.msra.mxu0 0.0
  %2148 = vmatpush.msra.mxu0 0.0
  %2149 = vmatpush.msra.mxu0 0.0
  %2150 = vmatpush.msra.mxu0 0.0
  %2151 = vmatpush.msra.mxu0 0.0
  %2152 = vmatpush.msra.mxu0 0.0
  %2153 = vmatpush.msra.mxu0 0.0
  %2154 = vmatpush.msra.mxu0 0.0
  %2155 = vmatpush.msra.mxu0 0.0
  %2156 = vmatpush.msra.mxu0 %v637
  %2157 = vmatpush.msra.mxu0 %v636
  %2158 = vmatpush.msra.mxu0 %v635
  %2159 = vmatpush.msra.mxu0 %v634
  %2160 = vmatmul.f32.gmra.mxu0 %v2142
  %v2161 = vpop.f32.mrf.mxu0
  %v2162 = vadd.f32 0.0, %v2161
  %2163 = vdwg.mxu0
  %v2164 = vadd.f32 %v816, %v2162
  %v2165 = vxor.u32 %v2164, 2147483648
  %v2166 = vmul.f32 %v2165, 1.442695
  %v2167 = vpow.pop %v2166
  %v2168 = vadd.f32 %v2167, 1.0
  %v2169 = vrcp.pop %v2168
  %v2170 = vmul.f32 %v2168, %v2169
  %v2171 = vsub.f32 1.0, %v2170
  %v2172 = vmul.f32 %v2169, %v2171
  %v2173 = vadd.f32 %v2169, %v2172
  %vm2174 = vweird.f32 %v2168
  %vm2175 = vweird.f32 %v2169
  %vm2176 = vmor %vm2174, %vm2175
  %v2177 = vsel %vm2176, %v2169, %v2173
  %v2178 = vand.u32 2147483647, %v2168
  %vm2179 = vcmp.eq.f32.partialorder %v2178, 8.507059e+37
  %v2180 = vand.u32 %v2168, 2147483648
  %v2181 = vor.u32 1.1754944e-38, %v2180
  %v2182 = vsel %vm2179, %v2181, %v2177
  %v2183 = vmul.f32 1.0, %v2182
  %v2184 = vadd.f32 %v2162, %v882
  %2186 = vrot.lane.b32.xlu0 %v2184, 64
  %v2187 = vpop.permute.xlu0 %2186
  %v2189 = vmul.f32 %v2183, %v2187
  %2191 = vrot.lane.b32.xlu0 %v2189, 64
  %v2192 = vpop.permute.xlu0 %2191
  %v2194 = vadd.f32 %v816, %v2192
  %v2195 = vtanh.pop %v2194
  %v2196 = vsub.f32 1.0, %v2183
  %2198 = vrot.lane.b32.xlu0 %v2195, 96
  %v2199 = vpop.permute.xlu0 %2198
  %v2201 = vmul.f32 %v2196, %v2199
  %v2202 = vmul.f32 %v2183, %v2138
  %v2203 = vadd.f32 %v2201, %v2202
  %2205 = vrot.lane.b32.xlu0 %v2203, 96
  %v2206 = vpop.permute.xlu0 %2205
  %v2207 = vsel %vm333, %v2206, 0
  %2209 = vmatpush.msra.mxu0 0.0
  %2210 = vmatpush.msra.mxu0 0.0
  %2211 = vmatpush.msra.mxu0 0.0
  %2212 = vmatpush.msra.mxu0 0.0
  %2213 = vmatpush.msra.mxu0 0.0
  %2214 = vmatpush.msra.mxu0 0.0
  %2215 = vmatpush.msra.mxu0 0.0
  %2216 = vmatpush.msra.mxu0 0.0
  %2217 = vmatpush.msra.mxu0 0.0
  %2218 = vmatpush.msra.mxu0 0.0
  %2219 = vmatpush.msra.mxu0 0.0
  %2220 = vmatpush.msra.mxu0 0.0
  %2221 = vmatpush.msra.mxu0 %v637
  %2222 = vmatpush.msra.mxu0 %v636
  %2223 = vmatpush.msra.mxu0 %v635
  %2224 = vmatpush.msra.mxu0 %v634
  %2225 = vmatmul.f32.gmra.mxu0 %v2207
  %v2226 = vpop.f32.mrf.mxu0
  %v2227 = vadd.f32 0.0, %v2226
  %2228 = vdwg.mxu0
  %v2229 = vadd.f32 %v819, %v2227
  %v2230 = vxor.u32 %v2229, 2147483648
  %v2231 = vmul.f32 %v2230, 1.442695
  %v2232 = vpow.pop %v2231
  %v2233 = vadd.f32 %v2232, 1.0
  %v2234 = vrcp.pop %v2233
  %v2235 = vmul.f32 %v2233, %v2234
  %v2236 = vsub.f32 1.0, %v2235
  %v2237 = vmul.f32 %v2234, %v2236
  %v2238 = vadd.f32 %v2234, %v2237
  %vm2239 = vweird.f32 %v2233
  %vm2240 = vweird.f32 %v2234
  %vm2241 = vmor %vm2239, %vm2240
  %v2242 = vsel %vm2241, %v2234, %v2238
  %v2243 = vand.u32 2147483647, %v2233
  %vm2244 = vcmp.eq.f32.partialorder %v2243, 8.507059e+37
  %v2245 = vand.u32 %v2233, 2147483648
  %v2246 = vor.u32 1.1754944e-38, %v2245
  %v2247 = vsel %vm2244, %v2246, %v2242
  %v2248 = vmul.f32 1.0, %v2247
  %v2249 = vadd.f32 %v2227, %v882
  %2251 = vrot.lane.b32.xlu0 %v2249, 64
  %v2252 = vpop.permute.xlu0 %2251
  %v2254 = vmul.f32 %v2248, %v2252
  %2256 = vrot.lane.b32.xlu0 %v2254, 64
  %v2257 = vpop.permute.xlu0 %2256
  %v2259 = vadd.f32 %v819, %v2257
  %v2260 = vtanh.pop %v2259
  %v2261 = vsub.f32 1.0, %v2248
  %2263 = vrot.lane.b32.xlu0 %v2260, 96
  %v2264 = vpop.permute.xlu0 %2263
  %v2266 = vmul.f32 %v2261, %v2264
  %v2267 = vmul.f32 %v2248, %v2203
  %v2268 = vadd.f32 %v2266, %v2267
  %2270 = vrot.lane.b32.xlu0 %v2268, 96
  %v2271 = vpop.permute.xlu0 %2270
  %v2272 = vsel %vm333, %v2271, 0
  %2274 = vmatpush.msra.mxu0 0.0
  %2275 = vmatpush.msra.mxu0 0.0
  %2276 = vmatpush.msra.mxu0 0.0
  %2277 = vmatpush.msra.mxu0 0.0
  %2278 = vmatpush.msra.mxu0 0.0
  %2279 = vmatpush.msra.mxu0 0.0
  %2280 = vmatpush.msra.mxu0 0.0
  %2281 = vmatpush.msra.mxu0 0.0
  %2282 = vmatpush.msra.mxu0 0.0
  %2283 = vmatpush.msra.mxu0 0.0
  %2284 = vmatpush.msra.mxu0 0.0
  %2285 = vmatpush.msra.mxu0 0.0
  %2286 = vmatpush.msra.mxu0 %v637
  %2287 = vmatpush.msra.mxu0 %v636
  %2288 = vmatpush.msra.mxu0 %v635
  %2289 = vmatpush.msra.mxu0 %v634
  %2290 = vmatmul.f32.gmra.mxu0 %v2272
  %v2291 = vpop.f32.mrf.mxu0
  %v2292 = vadd.f32 0.0, %v2291
  %2293 = vdwg.mxu0
  %v2294 = vadd.f32 %v822, %v2292
  %v2295 = vxor.u32 %v2294, 2147483648
  %v2296 = vmul.f32 %v2295, 1.442695
  %v2297 = vpow.pop %v2296
  %v2298 = vadd.f32 %v2297, 1.0
  %v2299 = vrcp.pop %v2298
  %v2300 = vmul.f32 %v2298, %v2299
  %v2301 = vsub.f32 1.0, %v2300
  %v2302 = vmul.f32 %v2299, %v2301
  %v2303 = vadd.f32 %v2299, %v2302
  %vm2304 = vweird.f32 %v2298
  %vm2305 = vweird.f32 %v2299
  %vm2306 = vmor %vm2304, %vm2305
  %v2307 = vsel %vm2306, %v2299, %v2303
  %v2308 = vand.u32 2147483647, %v2298
  %vm2309 = vcmp.eq.f32.partialorder %v2308, 8.507059e+37
  %v2310 = vand.u32 %v2298, 2147483648
  %v2311 = vor.u32 1.1754944e-38, %v2310
  %v2312 = vsel %vm2309, %v2311, %v2307
  %v2313 = vmul.f32 1.0, %v2312
  %v2314 = vadd.f32 %v2292, %v882
  %2316 = vrot.lane.b32.xlu0 %v2314, 64
  %v2317 = vpop.permute.xlu0 %2316
  %v2319 = vmul.f32 %v2313, %v2317
  %2321 = vrot.lane.b32.xlu0 %v2319, 64
  %v2322 = vpop.permute.xlu0 %2321
  %v2324 = vadd.f32 %v822, %v2322
  %v2325 = vtanh.pop %v2324
  %v2326 = vsub.f32 1.0, %v2313
  %2328 = vrot.lane.b32.xlu0 %v2325, 96
  %v2329 = vpop.permute.xlu0 %2328
  %v2331 = vmul.f32 %v2326, %v2329
  %v2332 = vmul.f32 %v2313, %v2268
  %v2333 = vadd.f32 %v2331, %v2332
  %2335 = vrot.lane.b32.xlu0 %v2333, 96
  %v2336 = vpop.permute.xlu0 %2335
  %v2337 = vsel %vm333, %v2336, 0
  %2339 = vmatpush.msra.mxu0 0.0
  %2340 = vmatpush.msra.mxu0 0.0
  %2341 = vmatpush.msra.mxu0 0.0
  %2342 = vmatpush.msra.mxu0 0.0
  %2343 = vmatpush.msra.mxu0 0.0
  %2344 = vmatpush.msra.mxu0 0.0
  %2345 = vmatpush.msra.mxu0 0.0
  %2346 = vmatpush.msra.mxu0 0.0
  %2347 = vmatpush.msra.mxu0 0.0
  %2348 = vmatpush.msra.mxu0 0.0
  %2349 = vmatpush.msra.mxu0 0.0
  %2350 = vmatpush.msra.mxu0 0.0
  %2351 = vmatpush.msra.mxu0 %v637
  %2352 = vmatpush.msra.mxu0 %v636
  %2353 = vmatpush.msra.mxu0 %v635
  %2354 = vmatpush.msra.mxu0 %v634
  %2355 = vmatmul.f32.gmra.mxu0 %v2337
  %v2356 = vpop.f32.mrf.mxu0
  %v2357 = vadd.f32 0.0, %v2356
  %2358 = vdwg.mxu0
  %v2359 = vadd.f32 %v825, %v2357
  %v2360 = vxor.u32 %v2359, 2147483648
  %v2361 = vmul.f32 %v2360, 1.442695
  %v2362 = vpow.pop %v2361
  %v2363 = vadd.f32 %v2362, 1.0
  %v2364 = vrcp.pop %v2363
  %v2365 = vmul.f32 %v2363, %v2364
  %v2366 = vsub.f32 1.0, %v2365
  %v2367 = vmul.f32 %v2364, %v2366
  %v2368 = vadd.f32 %v2364, %v2367
  %vm2369 = vweird.f32 %v2363
  %vm2370 = vweird.f32 %v2364
  %vm2371 = vmor %vm2369, %vm2370
  %v2372 = vsel %vm2371, %v2364, %v2368
  %v2373 = vand.u32 2147483647, %v2363
  %vm2374 = vcmp.eq.f32.partialorder %v2373, 8.507059e+37
  %v2375 = vand.u32 %v2363, 2147483648
  %v2376 = vor.u32 1.1754944e-38, %v2375
  %v2377 = vsel %vm2374, %v2376, %v2372
  %v2378 = vmul.f32 1.0, %v2377
  %v2379 = vadd.f32 %v2357, %v882
  %2381 = vrot.lane.b32.xlu0 %v2379, 64
  %v2382 = vpop.permute.xlu0 %2381
  %v2384 = vmul.f32 %v2378, %v2382
  %2386 = vrot.lane.b32.xlu0 %v2384, 64
  %v2387 = vpop.permute.xlu0 %2386
  %v2389 = vadd.f32 %v825, %v2387
  %v2390 = vtanh.pop %v2389
  %v2391 = vsub.f32 1.0, %v2378
  %2393 = vrot.lane.b32.xlu0 %v2390, 96
  %v2394 = vpop.permute.xlu0 %2393
  %v2396 = vmul.f32 %v2391, %v2394
  %v2397 = vmul.f32 %v2378, %v2333
  %v2398 = vadd.f32 %v2396, %v2397
  %2400 = vrot.lane.b32.xlu0 %v2398, 96
  %v2401 = vpop.permute.xlu0 %2400
  %v2402 = vsel %vm333, %v2401, 0
  %2404 = vmatpush.msra.mxu0 0.0
  %2405 = vmatpush.msra.mxu0 0.0
  %2406 = vmatpush.msra.mxu0 0.0
  %2407 = vmatpush.msra.mxu0 0.0
  %2408 = vmatpush.msra.mxu0 0.0
  %2409 = vmatpush.msra.mxu0 0.0
  %2410 = vmatpush.msra.mxu0 0.0
  %2411 = vmatpush.msra.mxu0 0.0
  %2412 = vmatpush.msra.mxu0 0.0
  %2413 = vmatpush.msra.mxu0 0.0
  %2414 = vmatpush.msra.mxu0 0.0
  %2415 = vmatpush.msra.mxu0 0.0
  %2416 = vmatpush.msra.mxu0 %v637
  %2417 = vmatpush.msra.mxu0 %v636
  %2418 = vmatpush.msra.mxu0 %v635
  %2419 = vmatpush.msra.mxu0 %v634
  %2420 = vmatmul.f32.gmra.mxu0 %v2402
  %v2421 = vpop.f32.mrf.mxu0
  %v2422 = vadd.f32 0.0, %v2421
  %2423 = vdwg.mxu0
  %v2424 = vadd.f32 %v828, %v2422
  %v2425 = vxor.u32 %v2424, 2147483648
  %v2426 = vmul.f32 %v2425, 1.442695
  %v2427 = vpow.pop %v2426
  %v2428 = vadd.f32 %v2427, 1.0
  %v2429 = vrcp.pop %v2428
  %v2430 = vmul.f32 %v2428, %v2429
  %v2431 = vsub.f32 1.0, %v2430
  %v2432 = vmul.f32 %v2429, %v2431
  %v2433 = vadd.f32 %v2429, %v2432
  %vm2434 = vweird.f32 %v2428
  %vm2435 = vweird.f32 %v2429
  %vm2436 = vmor %vm2434, %vm2435
  %v2437 = vsel %vm2436, %v2429, %v2433
  %v2438 = vand.u32 2147483647, %v2428
  %vm2439 = vcmp.eq.f32.partialorder %v2438, 8.507059e+37
  %v2440 = vand.u32 %v2428, 2147483648
  %v2441 = vor.u32 1.1754944e-38, %v2440
  %v2442 = vsel %vm2439, %v2441, %v2437
  %v2443 = vmul.f32 1.0, %v2442
  %v2444 = vadd.f32 %v2422, %v882
  %2446 = vrot.lane.b32.xlu0 %v2444, 64
  %v2447 = vpop.permute.xlu0 %2446
  %v2449 = vmul.f32 %v2443, %v2447
  %2451 = vrot.lane.b32.xlu0 %v2449, 64
  %v2452 = vpop.permute.xlu0 %2451
  %v2454 = vadd.f32 %v828, %v2452
  %v2455 = vtanh.pop %v2454
  %v2456 = vsub.f32 1.0, %v2443
  %2458 = vrot.lane.b32.xlu0 %v2455, 96
  %v2459 = vpop.permute.xlu0 %2458
  %v2461 = vmul.f32 %v2456, %v2459
  %v2462 = vmul.f32 %v2443, %v2398
  %v2463 = vadd.f32 %v2461, %v2462
  %2465 = vrot.lane.b32.xlu0 %v2463, 96
  %v2466 = vpop.permute.xlu0 %2465
  %v2467 = vsel %vm333, %v2466, 0
  %2469 = vmatpush.msra.mxu0 0.0
  %2470 = vmatpush.msra.mxu0 0.0
  %2471 = vmatpush.msra.mxu0 0.0
  %2472 = vmatpush.msra.mxu0 0.0
  %2473 = vmatpush.msra.mxu0 0.0
  %2474 = vmatpush.msra.mxu0 0.0
  %2475 = vmatpush.msra.mxu0 0.0
  %2476 = vmatpush.msra.mxu0 0.0
  %2477 = vmatpush.msra.mxu0 0.0
  %2478 = vmatpush.msra.mxu0 0.0
  %2479 = vmatpush.msra.mxu0 0.0
  %2480 = vmatpush.msra.mxu0 0.0
  %2481 = vmatpush.msra.mxu0 %v637
  %2482 = vmatpush.msra.mxu0 %v636
  %2483 = vmatpush.msra.mxu0 %v635
  %2484 = vmatpush.msra.mxu0 %v634
  %2485 = vmatmul.f32.gmra.mxu0 %v2467
  %v2486 = vpop.f32.mrf.mxu0
  %v2487 = vadd.f32 0.0, %v2486
  %2488 = vdwg.mxu0
  %v2489 = vadd.f32 %v831, %v2487
  %v2490 = vxor.u32 %v2489, 2147483648
  %v2491 = vmul.f32 %v2490, 1.442695
  %v2492 = vpow.pop %v2491
  %v2493 = vadd.f32 %v2492, 1.0
  %v2494 = vrcp.pop %v2493
  %v2495 = vmul.f32 %v2493, %v2494
  %v2496 = vsub.f32 1.0, %v2495
  %v2497 = vmul.f32 %v2494, %v2496
  %v2498 = vadd.f32 %v2494, %v2497
  %vm2499 = vweird.f32 %v2493
  %vm2500 = vweird.f32 %v2494
  %vm2501 = vmor %vm2499, %vm2500
  %v2502 = vsel %vm2501, %v2494, %v2498
  %v2503 = vand.u32 2147483647, %v2493
  %vm2504 = vcmp.eq.f32.partialorder %v2503, 8.507059e+37
  %v2505 = vand.u32 %v2493, 2147483648
  %v2506 = vor.u32 1.1754944e-38, %v2505
  %v2507 = vsel %vm2504, %v2506, %v2502
  %v2508 = vmul.f32 1.0, %v2507
  %v2509 = vadd.f32 %v2487, %v882
  %2511 = vrot.lane.b32.xlu0 %v2509, 64
  %v2512 = vpop.permute.xlu0 %2511
  %v2514 = vmul.f32 %v2508, %v2512
  %2516 = vrot.lane.b32.xlu0 %v2514, 64
  %v2517 = vpop.permute.xlu0 %2516
  %v2519 = vadd.f32 %v831, %v2517
  %v2520 = vtanh.pop %v2519
  %v2521 = vsub.f32 1.0, %v2508
  %2523 = vrot.lane.b32.xlu0 %v2520, 96
  %v2524 = vpop.permute.xlu0 %2523
  %v2526 = vmul.f32 %v2521, %v2524
  %v2527 = vmul.f32 %v2508, %v2463
  %v2528 = vadd.f32 %v2526, %v2527
  %2530 = vrot.lane.b32.xlu0 %v2528, 96
  %v2531 = vpop.permute.xlu0 %2530
  %v2532 = vsel %vm333, %v2531, 0
  %2534 = vmatpush.msra.mxu0 0.0
  %2535 = vmatpush.msra.mxu0 0.0
  %2536 = vmatpush.msra.mxu0 0.0
  %2537 = vmatpush.msra.mxu0 0.0
  %2538 = vmatpush.msra.mxu0 0.0
  %2539 = vmatpush.msra.mxu0 0.0
  %2540 = vmatpush.msra.mxu0 0.0
  %2541 = vmatpush.msra.mxu0 0.0
  %2542 = vmatpush.msra.mxu0 0.0
  %2543 = vmatpush.msra.mxu0 0.0
  %2544 = vmatpush.msra.mxu0 0.0
  %2545 = vmatpush.msra.mxu0 0.0
  %2546 = vmatpush.msra.mxu0 %v637
  %2547 = vmatpush.msra.mxu0 %v636
  %2548 = vmatpush.msra.mxu0 %v635
  %2549 = vmatpush.msra.mxu0 %v634
  %2550 = vmatmul.f32.gmra.mxu0 %v2532
  %v2551 = vpop.f32.mrf.mxu0
  %v2552 = vadd.f32 0.0, %v2551
  %2553 = vdwg.mxu0
  %v2554 = vadd.f32 %v834, %v2552
  %v2555 = vxor.u32 %v2554, 2147483648
  %v2556 = vmul.f32 %v2555, 1.442695
  %v2557 = vpow.pop %v2556
  %v2558 = vadd.f32 %v2557, 1.0
  %v2559 = vrcp.pop %v2558
  %v2560 = vmul.f32 %v2558, %v2559
  %v2561 = vsub.f32 1.0, %v2560
  %v2562 = vmul.f32 %v2559, %v2561
  %v2563 = vadd.f32 %v2559, %v2562
  %vm2564 = vweird.f32 %v2558
  %vm2565 = vweird.f32 %v2559
  %vm2566 = vmor %vm2564, %vm2565
  %v2567 = vsel %vm2566, %v2559, %v2563
  %v2568 = vand.u32 2147483647, %v2558
  %vm2569 = vcmp.eq.f32.partialorder %v2568, 8.507059e+37
  %v2570 = vand.u32 %v2558, 2147483648
  %v2571 = vor.u32 1.1754944e-38, %v2570
  %v2572 = vsel %vm2569, %v2571, %v2567
  %v2573 = vmul.f32 1.0, %v2572
  %v2574 = vadd.f32 %v2552, %v882
  %2576 = vrot.lane.b32.xlu0 %v2574, 64
  %v2577 = vpop.permute.xlu0 %2576
  %v2579 = vmul.f32 %v2573, %v2577
  %2581 = vrot.lane.b32.xlu0 %v2579, 64
  %v2582 = vpop.permute.xlu0 %2581
  %v2584 = vadd.f32 %v834, %v2582
  %v2585 = vtanh.pop %v2584
  %v2586 = vsub.f32 1.0, %v2573
  %2588 = vrot.lane.b32.xlu0 %v2585, 96
  %v2589 = vpop.permute.xlu0 %2588
  %v2591 = vmul.f32 %v2586, %v2589
  %v2592 = vmul.f32 %v2573, %v2528
  %v2593 = vadd.f32 %v2591, %v2592
  %v2594 = vperm.slane %v233, 3
  %2596 = vrot.lane.b32.xlu0 %v2594, 32
  %v2597 = vpop.permute.xlu0 %2596
  %v2599 = vmul.f32 %v2593, %v2597
  %2601 = vrot.lane.b32.xlu0 %v2599, 96
  %v2602 = vpop.permute.xlu0 %2601
  %v2604 = vsel %vm333, %v2602, 0.0
  %2605 = vadd.xlane.f32.xlu0 %v2604
  %v2606 = vpop.xlane.xlu0 %2605
  %v2607 = vperm.slane %v233, 4
  %v2608 = vadd.f32 %v2606, %v2607
  %v2609 = vxor.u32 %v2608, 2147483648
  %v2610 = vmul.f32 %v2609, 1.442695
  %v2611 = vpow.pop %v2610
  %v2612 = vadd.f32 %v2611, 1.0
  %v2613 = vrcp.pop %v2612
  %v2614 = vmul.f32 %v2612, %v2613
  %v2615 = vsub.f32 1.0, %v2614
  %v2616 = vmul.f32 %v2613, %v2615
  %v2617 = vadd.f32 %v2613, %v2616
  %vm2618 = vweird.f32 %v2612
  %vm2619 = vweird.f32 %v2613
  %vm2620 = vmor %vm2618, %vm2619
  %v2621 = vsel %vm2620, %v2613, %v2617
  %v2622 = vand.u32 2147483647, %v2612
  %vm2623 = vcmp.eq.f32.partialorder %v2622, 8.507059e+37
  %v2624 = vand.u32 %v2612, 2147483648
  %v2625 = vor.u32 1.1754944e-38, %v2624
  %v2626 = vsel %vm2623, %v2625, %v2621
  %v2627 = vmul.f32 1.0, %v2626
  %vm2628 = vcmask 7168
  %2629 = vst.msk [vmem:[%s3] sm:$0xff] %vm2628, %v2627
  // Predicated region
  $region14: #{crnn_forward.1} parent=0 // pred_check
    _
  $region15: #{crnn_forward.1} parent=0 // pred_check_branch
    %2631 = sbr.rel (0) target = $region17
  $region16: #{crnn_forward.1} parent=0 // pred_region
    _
  $region17: #{crnn_forward.1} parent=0 // pred_fallthru
    _
  // Predicated region
  $region18: #{crnn_forward.1} parent=0 // pred_check
    _
  $region19: #{crnn_forward.1} parent=0 // pred_check_branch
    %2633 = sbr.rel (0) target = $region21
  $region20: #{crnn_forward.1} parent=0 // pred_region
    _
  $region21: #{crnn_forward.1} parent=0 // pred_fallthru
    _

</llo_original>
